<compile_context>
chip_gen: v6e
topology: v6e:2x2x1
jax: 0.10.0
libtpu: 0.0.40
codegen_flags: <defaults>
</compile_context>

<pallas_src>
import functools

import jax
import jax.numpy as jnp
from jax.experimental import pallas as pl
from jax.experimental.pallas import tpu as pltpu

FEAT = 32      # feat_dim of the module (Cout of every conv)
C_PAD = 128    # lane-dense channel padding for weights / activations inside the kernel
PAD_ROWS = 8   # extra scratch rows so shifted tap reads never run past the slab end


# ----------------------------- fused encoder kernel -------------------------------------------
def _make_encoder_kernel(group, R1, R2, R3, R4):
    """Fused 4-layer conv+ReLU kernel.  `group` = B_blk * OW_pad = rows per output row."""

    def conv_taps(src_ref, w_ref, bias, r_out):
        # Output slab row r corresponds to pixel (oh, b, ow); its tap-(ki, kj) input lives at
        # row r + ki*group + kj of the source slab (same (oh, b, ow) row-major layout, shared
        # OW padding), so the tap shift is just a static start offset of a contiguous ref slice.
        # Padded / out-of-range columns only ever feed padded output rows (never stored results).
        acc = None
        for t in range(9):
            ki, kj = t // 3, t % 3
            lhs = src_ref[pl.ds(ki * group + kj, r_out), :].astype(jnp.bfloat16)
            p = jnp.dot(lhs, w_ref[t], preferred_element_type=jnp.float32)
            acc = p if acc is None else acc + p
        return jnp.maximum(acc + bias, 0.0)          # fused bias + ReLU on the whole slab

    def kernel(x_ref, w1_ref, w2_ref, w3_ref, w4_ref, b_ref, o_ref, h1_ref, h2_ref, h3_ref):
        # x_ref : (1, R1, KINP) bf16   im2col'd conv1 input for this batch block, rows=(oh, b, ow)
        # w1_ref: (KINP, 128)   bf16   fused 9-tap conv1 weight
        # w2..4 : (9, 128, 128) bf16   per-tap weights (Cin/Cout zero-padded to 128)
        # b_ref : (4, 128)      f32    biases of conv1..4 (zero-padded)
        # o_ref : (1, R4, 128)  f32    conv4 output slab
        # h1/2/3: VMEM f32 scratch slabs holding the intermediate feature maps
        b_all = b_ref[...]

        # conv1 (stride 2): the whole layer is a single (R1, KINP) x (KINP, 128) MXU matmul.
        p1 = jnp.dot(x_ref[0], w1_ref[...], preferred_element_type=jnp.float32)
        h1_ref[pl.ds(0, R1), :] = jnp.maximum(p1 + b_all[0], 0.0)

        # conv2..4 (stride 1): 9 slab dots each, reading the previous layer's VMEM slab.
        h2_ref[pl.ds(0, R2), :] = conv_taps(h1_ref, w2_ref, b_all[1], R2)
        h3_ref[pl.ds(0, R3), :] = conv_taps(h2_ref, w3_ref, b_all[2], R3)
        o_ref[0] = conv_taps(h3_ref, w4_ref, b_all[3], R4)

    return kernel


# ----------------------------- parameter init & one-time layout prep --------------------------
def init_encoder_params(key, obs_ch, feat_dim=32):
    """Deterministic synthetic init in torch layout (Cout, Cin, KH, KW) + (Cout,)."""
    ks = jax.random.split(key, 4)

    def conv_param(k, cin, cout, ksz):
        fan_in = cin * ksz * ksz
        w = jax.random.normal(k, (cout, cin, ksz, ksz), jnp.float32) * (2.0 / fan_in) ** 0.5
        b = jnp.zeros((cout,), jnp.float32)
        return w, b

    return {
        "conv1": conv_param(ks[0], obs_ch, feat_dim, 3),     # stride 2
        "conv2": conv_param(ks[1], feat_dim, feat_dim, 3),   # stride 1
        "conv3": conv_param(ks[2], feat_dim, feat_dim, 3),   # stride 1
        "conv4": conv_param(ks[3], feat_dim, feat_dim, 3),   # stride 1
    }


def prepare_kernel_params(params):
    """One-time relayout: bf16 weights, fused-tap conv1 / per-tap conv2..4, channels padded."""
    w1, b1 = params["conv1"]
    w2, b2 = params["conv2"]
    w3, b3 = params["conv3"]
    w4, b4 = params["conv4"]

    cin = w1.shape[1]
    kin = 9 * cin
    kinp = ((kin + C_PAD - 1) // C_PAD) * C_PAD

    # conv1: fuse all 9 taps into one (9*Cin, Cout) matrix; feature order (ki, kj, cin) matches
    # the wrapper's im2col concatenation order.
    w1f = jnp.transpose(w1, (2, 3, 1, 0)).reshape(kin, w1.shape[0])
    w1p = jnp.zeros((kinp, C_PAD), jnp.float32).at[:kin, : w1.shape[0]].set(w1f)

    def conv_taps(w):
        cout, ci, kh, kw = w.shape
        taps = jnp.transpose(w, (2, 3, 1, 0)).reshape(kh * kw, ci, cout)   # (9, Cin, Cout)
        out = jnp.zeros((kh * kw, C_PAD, C_PAD), jnp.float32)
        return out.at[:, :ci, :cout].set(taps)

    b = jnp.zeros((4, C_PAD), jnp.float32)
    for i, bi in enumerate((b1, b2, b3, b4)):
        b = b.at[i, : bi.shape[0]].set(bi)

    return {
        "w1": w1p.astype(jnp.bfloat16),            # (KINP, 128)
        "w2": conv_taps(w2).astype(jnp.bfloat16),  # (9, 128, 128)
        "w3": conv_taps(w3).astype(jnp.bfloat16),
        "w4": conv_taps(w4).astype(jnp.bfloat16),
        "b": b,                                    # (4, 128) f32
    }


# ----------------------------- forward pass ----------------------------------------------------
@functools.partial(jax.jit, static_argnames=("scale", "batch_block"))
def encoder_forward(kparams, obs_nchw, scale=1.0, batch_block=4):
    """Forward pass of Encoder. obs_nchw: (N, C, H, W) f32, values <= 1.0. Returns (rev, norev)."""
    # TODO(synk): grad_reverse only changes the backward pass (grad * scale); no custom_vjp wired.
    N, Cin, H, W = obs_nchw.shape
    OH1, OW1 = (H - 3) // 2 + 1, (W - 3) // 2 + 1   # conv1: 3x3 stride 2, VALID
    OH2, OW2 = OH1 - 2, OW1 - 2                     # conv2..4: 3x3 stride 1, VALID
    OH3, OW3 = OH2 - 2, OW2 - 2
    OH4, OW4 = OH3 - 2, OW3 - 2
    assert OH4 >= 1 and OW4 >= 1, "input must be at least 15x15 for the 4-layer VALID chain"

    OWP = ((OW1 + 7) // 8) * 8                      # shared padded width for every layer's slab
    KIN = 9 * Cin
    KINP = ((KIN + C_PAD - 1) // C_PAD) * C_PAD
    assert kparams["w1"].shape == (KINP, C_PAD)

    B_blk = min(N, batch_block)                     # batch elements per grid step (folded into M)
    n_blocks = -(-N // B_blk)
    Npad = n_blocks * B_blk
    GROUP = B_blk * OWP
    R1, R2, R3, R4 = OH1 * GROUP, OH2 * GROUP, OH3 * GROUP, OH4 * GROUP

    # ---- wrapper-side im2col for conv1 (stride 2), laid out as (oh, b, ow) rows ----
    x_nhwc = jnp.transpose(obs_nchw, (0, 2, 3, 1))                      # (N, H, W, Cin)
    taps = [x_nhwc[:, ki:ki + 2 * OH1 - 1:2, kj:kj + 2 * OW1 - 1:2, :]
            for ki in range(3) for kj in range(3)]                      # 9 x (N, OH1, OW1, Cin)
    x_col = jnp.concatenate(taps, axis=-1)                              # (N, OH1, OW1, 9*Cin)
    x_col = jnp.pad(x_col, ((0, Npad - N), (0, 0), (0, OWP - OW1), (0, KINP - KIN)))
    x_col = x_col.reshape(n_blocks, B_blk, OH1, OWP, KINP)
    x_col = jnp.transpose(x_col, (0, 2, 1, 3, 4))                       # (blk, OH1, B, OWP, KINP)
    x_col = x_col.reshape(n_blocks, R1, KINP).astype(jnp.bfloat16)

    kernel = _make_encoder_kernel(GROUP, R1, R2, R3, R4)

    out = pl.pallas_call(
        kernel,
        out_shape=jax.ShapeDtypeStruct((n_blocks, R4, C_PAD), jnp.float32),
        grid=(n_blocks,),
        in_specs=[
            pl.BlockSpec((1, R1, KINP), lambda n: (n, 0, 0)),
            pl.BlockSpec((KINP, C_PAD), lambda n: (0, 0)),
            pl.BlockSpec((9, C_PAD, C_PAD), lambda n: (0, 0, 0)),
            pl.BlockSpec((9, C_PAD, C_PAD), lambda n: (0, 0, 0)),
            pl.BlockSpec((9, C_PAD, C_PAD), lambda n: (0, 0, 0)),
            pl.BlockSpec((4, C_PAD), lambda n: (0, 0)),
        ],
        out_specs=pl.BlockSpec((1, R4, C_PAD), lambda n: (n, 0, 0)),
        scratch_shapes=[
            pltpu.VMEM((OH1 * GROUP + PAD_ROWS, C_PAD), jnp.float32),
            pltpu.VMEM((OH2 * GROUP + PAD_ROWS, C_PAD), jnp.float32),
            pltpu.VMEM((OH3 * GROUP + PAD_ROWS, C_PAD), jnp.float32),
        ],
        compiler_params=pltpu.CompilerParams(dimension_semantics=("parallel",)),
    )(x_col, kparams["w1"], kparams["w2"], kparams["w3"], kparams["w4"], kparams["b"])

    # ---- unpack (oh, b, ow) rows back to NCHW and flatten like torch's h.view(N, -1) ----
    out = out.reshape(n_blocks, OH4, B_blk, OWP, C_PAD)
    out = jnp.transpose(out, (0, 2, 1, 3, 4)).reshape(Npad, OH4, OWP, C_PAD)
    feats = out[:N, :, :OW4, :FEAT]                      # drop batch/width/lane padding
    norev = jnp.transpose(feats, (0, 3, 1, 2)).reshape(N, -1)
    rev = norev                                          # grad_reverse: identity in forward
    return rev, norev


# ----------------------------- pure-JAX reference (correctness check) --------------------------
def _reference_forward(params, obs_nchw):
    x = obs_nchw
    for name, stride in (("conv1", 2), ("conv2", 1), ("conv3", 1), ("conv4", 1)):
        w, b = params[name]
        x = jax.lax.conv_general_dilated(
            x, w, (stride, stride), "VALID", dimension_numbers=("NCHW", "OIHW", "NCHW"))
        x = jnp.maximum(x + b[None, :, None, None], 0.0)
    return x.reshape(x.shape[0], -1)


if __name__ == "__main__":
    key = jax.random.PRNGKey(0)
    k_obs, k_par = jax.random.split(key)

    # small shapes consistent with the module: batch=2, obs channels=4, spatial=16x16
    obs = jax.random.uniform(k_obs, (2, 4, 16, 16), jnp.float32)   # values in [0, 1)

    # replicate the module's input assertion: no value may exceed 1.0
    assert int(jnp.sum(obs > 1.0)) == 0

    params = init_encoder_params(k_par, obs_ch=4, feat_dim=FEAT)
    kparams = prepare_kernel_params(params)

    rev, norev = encoder_forward(kparams, obs)
    jax.block_until_ready((rev, norev))

    # sanity: 16 -> conv1(s2) 7 -> 5 -> 3 -> 1, so flattened dim = 32*1*1
    assert rev.shape == (2, FEAT) and norev.shape == (2, FEAT)
    assert bool(jnp.all(rev == norev))

    # numerical check against a pure-JAX f32 reference (bf16 MXU inputs -> loose tolerance)
    ref = _reference_forward(params, obs)
    assert bool(jnp.allclose(norev, ref, rtol=1e-1, atol=1e-1)), \
        f"max abs diff {float(jnp.max(jnp.abs(norev - ref)))}"

    print("KERNEL_OK")
</pallas_src>

<mosaic_0001>
module attributes {stable_mosaic.version = 11 : i64} {
  func.func @kernel(%arg0: i32, %arg1: memref<1x112x128xbf16, #tpu.memory_space<vmem>>, %arg2: memref<128x128xbf16, #tpu.memory_space<vmem>>, %arg3: memref<9x128x128xbf16, #tpu.memory_space<vmem>>, %arg4: memref<9x128x128xbf16, #tpu.memory_space<vmem>>, %arg5: memref<9x128x128xbf16, #tpu.memory_space<vmem>>, %arg6: memref<4x128xf32, #tpu.memory_space<vmem>>, %arg7: memref<1x16x128xf32, #tpu.memory_space<vmem>>, %arg8: memref<120x128xf32, #tpu.memory_space<vmem>>, %arg9: memref<88x128xf32, #tpu.memory_space<vmem>>, %arg10: memref<56x128xf32, #tpu.memory_space<vmem>>) attributes {dimension_semantics = [#tpu.dimension_semantics<parallel>], iteration_bounds = array<i64: 1>, scalar_prefetch = 0 : i64, scratch_operands = 3 : i64, tpu.core_type = #tpu.core_type<tc>, window_params = [{transform_indices = @transform_0, window_bounds = array<i64: 1, 112, 128>}, {pipeline_mode = #tpu.pipeline_mode<synchronous>, transform_indices = @transform_1, window_bounds = array<i64: 128, 128>}, {pipeline_mode = #tpu.pipeline_mode<synchronous>, transform_indices = @transform_2, window_bounds = array<i64: 9, 128, 128>}, {pipeline_mode = #tpu.pipeline_mode<synchronous>, transform_indices = @transform_3, window_bounds = array<i64: 9, 128, 128>}, {pipeline_mode = #tpu.pipeline_mode<synchronous>, transform_indices = @transform_4, window_bounds = array<i64: 9, 128, 128>}, {pipeline_mode = #tpu.pipeline_mode<synchronous>, transform_indices = @transform_5, window_bounds = array<i64: 4, 128>}, {transform_indices = @transform_6, window_bounds = array<i64: 1, 16, 128>}]} {
    %c0 = arith.constant 0 : index
    %c0_0 = arith.constant 0 : index
    %0 = vector.load %arg6[%c0, %c0_0] : memref<4x128xf32, #tpu.memory_space<vmem>>, vector<4x128xf32>
    %c0_1 = arith.constant 0 : index
    %c0_2 = arith.constant 0 : index
    %c0_3 = arith.constant 0 : index
    %1 = vector.load %arg1[%c0_1, %c0_2, %c0_3] : memref<1x112x128xbf16, #tpu.memory_space<vmem>>, vector<1x112x128xbf16>
    %2 = vector.shape_cast %1 : vector<1x112x128xbf16> to vector<112x128xbf16>
    %c0_4 = arith.constant 0 : index
    %c0_5 = arith.constant 0 : index
    %3 = vector.load %arg2[%c0_4, %c0_5] : memref<128x128xbf16, #tpu.memory_space<vmem>>, vector<128x128xbf16>
    %cst = arith.constant dense<0.000000e+00> : vector<112x128xf32>
    %4 = tpu.matmul %2, %3, %cst {dimension_numbers = #tpu.dot_dimension_numbers<[1], [0], [0], [1], [0, 0, 1, 1], [], []>} : vector<112x128xbf16>, vector<128x128xbf16>, vector<112x128xf32> -> vector<112x128xf32>
    %5 = vector.extract_strided_slice %0 {offsets = [0, 0], sizes = [1, 128], strides = [1, 1]} : vector<4x128xf32> to vector<1x128xf32>
    %6 = vector.shape_cast %5 : vector<1x128xf32> to vector<128xf32>
    %7 = vector.shape_cast %6 : vector<128xf32> to vector<1x128xf32>
    %8 = vector.broadcast %7 : vector<1x128xf32> to vector<112x128xf32>
    %9 = arith.addf %4, %8 : vector<112x128xf32>
    %cst_6 = arith.constant 0.000000e+00 : f32
    %10 = vector.broadcast %cst_6 : f32 to vector<112x128xf32>
    %11 = arith.maximumf %9, %10 : vector<112x128xf32>
    %c0_7 = arith.constant 0 : index
    %c0_8 = arith.constant 0 : index
    %12 = vector.load %arg8[%c0_7, %c0_8] : memref<120x128xf32, #tpu.memory_space<vmem>>, vector<112x128xf32>
    tpu.vector_store %arg8[%c0_7, %c0_8], %11 {strides = array<i32>} : memref<120x128xf32, #tpu.memory_space<vmem>>, vector<112x128xf32>,
    %13 = vector.extract_strided_slice %0 {offsets = [1, 0], sizes = [1, 128], strides = [1, 1]} : vector<4x128xf32> to vector<1x128xf32>
    %14 = vector.shape_cast %13 : vector<1x128xf32> to vector<128xf32>
    %c0_9 = arith.constant 0 : index
    %c0_10 = arith.constant 0 : index
    %15 = vector.load %arg8[%c0_9, %c0_10] : memref<120x128xf32, #tpu.memory_space<vmem>>, vector<80x128xf32>
    %16 = arith.truncf %15 : vector<80x128xf32> to vector<80x128xbf16>
    %c0_11 = arith.constant 0 : index
    %c0_12 = arith.constant 0 : index
    %c0_13 = arith.constant 0 : index
    %17 = vector.load %arg3[%c0_11, %c0_12, %c0_13] : memref<9x128x128xbf16, #tpu.memory_space<vmem>>, vector<1x128x128xbf16>
    %18 = vector.shape_cast %17 : vector<1x128x128xbf16> to vector<128x128xbf16>
    %cst_14 = arith.constant dense<0.000000e+00> : vector<80x128xf32>
    %19 = tpu.matmul %16, %18, %cst_14 {dimension_numbers = #tpu.dot_dimension_numbers<[1], [0], [0], [1], [0, 0, 1, 1], [], []>} : vector<80x128xbf16>, vector<128x128xbf16>, vector<80x128xf32> -> vector<80x128xf32>
    %c1 = arith.constant 1 : index
    %c0_15 = arith.constant 0 : index
    %20 = vector.load %arg8[%c1, %c0_15] : memref<120x128xf32, #tpu.memory_space<vmem>>, vector<80x128xf32>
    %21 = arith.truncf %20 : vector<80x128xf32> to vector<80x128xbf16>
    %c1_16 = arith.constant 1 : index
    %c0_17 = arith.constant 0 : index
    %c0_18 = arith.constant 0 : index
    %22 = vector.load %arg3[%c1_16, %c0_17, %c0_18] : memref<9x128x128xbf16, #tpu.memory_space<vmem>>, vector<1x128x128xbf16>
    %23 = vector.shape_cast %22 : vector<1x128x128xbf16> to vector<128x128xbf16>
    %cst_19 = arith.constant dense<0.000000e+00> : vector<80x128xf32>
    %24 = tpu.matmul %21, %23, %cst_19 {dimension_numbers = #tpu.dot_dimension_numbers<[1], [0], [0], [1], [0, 0, 1, 1], [], []>} : vector<80x128xbf16>, vector<128x128xbf16>, vector<80x128xf32> -> vector<80x128xf32>
    %25 = arith.addf %19, %24 : vector<80x128xf32>
    %c2 = arith.constant 2 : index
    %c0_20 = arith.constant 0 : index
    %26 = vector.load %arg8[%c2, %c0_20] : memref<120x128xf32, #tpu.memory_space<vmem>>, vector<80x128xf32>
    %27 = arith.truncf %26 : vector<80x128xf32> to vector<80x128xbf16>
    %c2_21 = arith.constant 2 : index
    %c0_22 = arith.constant 0 : index
    %c0_23 = arith.constant 0 : index
    %28 = vector.load %arg3[%c2_21, %c0_22, %c0_23] : memref<9x128x128xbf16, #tpu.memory_space<vmem>>, vector<1x128x128xbf16>
    %29 = vector.shape_cast %28 : vector<1x128x128xbf16> to vector<128x128xbf16>
    %cst_24 = arith.constant dense<0.000000e+00> : vector<80x128xf32>
    %30 = tpu.matmul %27, %29, %cst_24 {dimension_numbers = #tpu.dot_dimension_numbers<[1], [0], [0], [1], [0, 0, 1, 1], [], []>} : vector<80x128xbf16>, vector<128x128xbf16>, vector<80x128xf32> -> vector<80x128xf32>
    %31 = arith.addf %25, %30 : vector<80x128xf32>
    %c16 = arith.constant 16 : index
    %c0_25 = arith.constant 0 : index
    %32 = vector.load %arg8[%c16, %c0_25] : memref<120x128xf32, #tpu.memory_space<vmem>>, vector<80x128xf32>
    %33 = arith.truncf %32 : vector<80x128xf32> to vector<80x128xbf16>
    %c3 = arith.constant 3 : index
    %c0_26 = arith.constant 0 : index
    %c0_27 = arith.constant 0 : index
    %34 = vector.load %arg3[%c3, %c0_26, %c0_27] : memref<9x128x128xbf16, #tpu.memory_space<vmem>>, vector<1x128x128xbf16>
    %35 = vector.shape_cast %34 : vector<1x128x128xbf16> to vector<128x128xbf16>
    %cst_28 = arith.constant dense<0.000000e+00> : vector<80x128xf32>
    %36 = tpu.matmul %33, %35, %cst_28 {dimension_numbers = #tpu.dot_dimension_numbers<[1], [0], [0], [1], [0, 0, 1, 1], [], []>} : vector<80x128xbf16>, vector<128x128xbf16>, vector<80x128xf32> -> vector<80x128xf32>
    %37 = arith.addf %31, %36 : vector<80x128xf32>
    %c17 = arith.constant 17 : index
    %c0_29 = arith.constant 0 : index
    %38 = vector.load %arg8[%c17, %c0_29] : memref<120x128xf32, #tpu.memory_space<vmem>>, vector<80x128xf32>
    %39 = arith.truncf %38 : vector<80x128xf32> to vector<80x128xbf16>
    %c4 = arith.constant 4 : index
    %c0_30 = arith.constant 0 : index
    %c0_31 = arith.constant 0 : index
    %40 = vector.load %arg3[%c4, %c0_30, %c0_31] : memref<9x128x128xbf16, #tpu.memory_space<vmem>>, vector<1x128x128xbf16>
    %41 = vector.shape_cast %40 : vector<1x128x128xbf16> to vector<128x128xbf16>
    %cst_32 = arith.constant dense<0.000000e+00> : vector<80x128xf32>
    %42 = tpu.matmul %39, %41, %cst_32 {dimension_numbers = #tpu.dot_dimension_numbers<[1], [0], [0], [1], [0, 0, 1, 1], [], []>} : vector<80x128xbf16>, vector<128x128xbf16>, vector<80x128xf32> -> vector<80x128xf32>
    %43 = arith.addf %37, %42 : vector<80x128xf32>
    %c18 = arith.constant 18 : index
    %c0_33 = arith.constant 0 : index
    %44 = vector.load %arg8[%c18, %c0_33] : memref<120x128xf32, #tpu.memory_space<vmem>>, vector<80x128xf32>
    %45 = arith.truncf %44 : vector<80x128xf32> to vector<80x128xbf16>
    %c5 = arith.constant 5 : index
    %c0_34 = arith.constant 0 : index
    %c0_35 = arith.constant 0 : index
    %46 = vector.load %arg3[%c5, %c0_34, %c0_35] : memref<9x128x128xbf16, #tpu.memory_space<vmem>>, vector<1x128x128xbf16>
    %47 = vector.shape_cast %46 : vector<1x128x128xbf16> to vector<128x128xbf16>
    %cst_36 = arith.constant dense<0.000000e+00> : vector<80x128xf32>
    %48 = tpu.matmul %45, %47, %cst_36 {dimension_numbers = #tpu.dot_dimension_numbers<[1], [0], [0], [1], [0, 0, 1, 1], [], []>} : vector<80x128xbf16>, vector<128x128xbf16>, vector<80x128xf32> -> vector<80x128xf32>
    %49 = arith.addf %43, %48 : vector<80x128xf32>
    %c32 = arith.constant 32 : index
    %c0_37 = arith.constant 0 : index
    %50 = vector.load %arg8[%c32, %c0_37] : memref<120x128xf32, #tpu.memory_space<vmem>>, vector<80x128xf32>
    %51 = arith.truncf %50 : vector<80x128xf32> to vector<80x128xbf16>
    %c6 = arith.constant 6 : index
    %c0_38 = arith.constant 0 : index
    %c0_39 = arith.constant 0 : index
    %52 = vector.load %arg3[%c6, %c0_38, %c0_39] : memref<9x128x128xbf16, #tpu.memory_space<vmem>>, vector<1x128x128xbf16>
    %53 = vector.shape_cast %52 : vector<1x128x128xbf16> to vector<128x128xbf16>
    %cst_40 = arith.constant dense<0.000000e+00> : vector<80x128xf32>
    %54 = tpu.matmul %51, %53, %cst_40 {dimension_numbers = #tpu.dot_dimension_numbers<[1], [0], [0], [1], [0, 0, 1, 1], [], []>} : vector<80x128xbf16>, vector<128x128xbf16>, vector<80x128xf32> -> vector<80x128xf32>
    %55 = arith.addf %49, %54 : vector<80x128xf32>
    %c33 = arith.constant 33 : index
    %c0_41 = arith.constant 0 : index
    %56 = vector.load %arg8[%c33, %c0_41] : memref<120x128xf32, #tpu.memory_space<vmem>>, vector<80x128xf32>
    %57 = arith.truncf %56 : vector<80x128xf32> to vector<80x128xbf16>
    %c7 = arith.constant 7 : index
    %c0_42 = arith.constant 0 : index
    %c0_43 = arith.constant 0 : index
    %58 = vector.load %arg3[%c7, %c0_42, %c0_43] : memref<9x128x128xbf16, #tpu.memory_space<vmem>>, vector<1x128x128xbf16>
    %59 = vector.shape_cast %58 : vector<1x128x128xbf16> to vector<128x128xbf16>
    %cst_44 = arith.constant dense<0.000000e+00> : vector<80x128xf32>
    %60 = tpu.matmul %57, %59, %cst_44 {dimension_numbers = #tpu.dot_dimension_numbers<[1], [0], [0], [1], [0, 0, 1, 1], [], []>} : vector<80x128xbf16>, vector<128x128xbf16>, vector<80x128xf32> -> vector<80x128xf32>
    %61 = arith.addf %55, %60 : vector<80x128xf32>
    %c34 = arith.constant 34 : index
    %c0_45 = arith.constant 0 : index
    %62 = vector.load %arg8[%c34, %c0_45] : memref<120x128xf32, #tpu.memory_space<vmem>>, vector<80x128xf32>
    %63 = arith.truncf %62 : vector<80x128xf32> to vector<80x128xbf16>
    %c8 = arith.constant 8 : index
    %c0_46 = arith.constant 0 : index
    %c0_47 = arith.constant 0 : index
    %64 = vector.load %arg3[%c8, %c0_46, %c0_47] : memref<9x128x128xbf16, #tpu.memory_space<vmem>>, vector<1x128x128xbf16>
    %65 = vector.shape_cast %64 : vector<1x128x128xbf16> to vector<128x128xbf16>
    %cst_48 = arith.constant dense<0.000000e+00> : vector<80x128xf32>
    %66 = tpu.matmul %63, %65, %cst_48 {dimension_numbers = #tpu.dot_dimension_numbers<[1], [0], [0], [1], [0, 0, 1, 1], [], []>} : vector<80x128xbf16>, vector<128x128xbf16>, vector<80x128xf32> -> vector<80x128xf32>
    %67 = arith.addf %61, %66 : vector<80x128xf32>
    %68 = vector.shape_cast %14 : vector<128xf32> to vector<1x128xf32>
    %69 = vector.broadcast %68 : vector<1x128xf32> to vector<80x128xf32>
    %70 = arith.addf %67, %69 : vector<80x128xf32>
    %cst_49 = arith.constant 0.000000e+00 : f32
    %71 = vector.broadcast %cst_49 : f32 to vector<80x128xf32>
    %72 = arith.maximumf %70, %71 : vector<80x128xf32>
    %c0_50 = arith.constant 0 : index
    %c0_51 = arith.constant 0 : index
    %73 = vector.load %arg9[%c0_50, %c0_51] : memref<88x128xf32, #tpu.memory_space<vmem>>, vector<80x128xf32>
    tpu.vector_store %arg9[%c0_50, %c0_51], %72 {strides = array<i32>} : memref<88x128xf32, #tpu.memory_space<vmem>>, vector<80x128xf32>,
    %74 = vector.extract_strided_slice %0 {offsets = [2, 0], sizes = [1, 128], strides = [1, 1]} : vector<4x128xf32> to vector<1x128xf32>
    %75 = vector.shape_cast %74 : vector<1x128xf32> to vector<128xf32>
    %c0_52 = arith.constant 0 : index
    %c0_53 = arith.constant 0 : index
    %76 = vector.load %arg9[%c0_52, %c0_53] : memref<88x128xf32, #tpu.memory_space<vmem>>, vector<48x128xf32>
    %77 = arith.truncf %76 : vector<48x128xf32> to vector<48x128xbf16>
    %c0_54 = arith.constant 0 : index
    %c0_55 = arith.constant 0 : index
    %c0_56 = arith.constant 0 : index
    %78 = vector.load %arg4[%c0_54, %c0_55, %c0_56] : memref<9x128x128xbf16, #tpu.memory_space<vmem>>, vector<1x128x128xbf16>
    %79 = vector.shape_cast %78 : vector<1x128x128xbf16> to vector<128x128xbf16>
    %cst_57 = arith.constant dense<0.000000e+00> : vector<48x128xf32>
    %80 = tpu.matmul %77, %79, %cst_57 {dimension_numbers = #tpu.dot_dimension_numbers<[1], [0], [0], [1], [0, 0, 1, 1], [], []>} : vector<48x128xbf16>, vector<128x128xbf16>, vector<48x128xf32> -> vector<48x128xf32>
    %c1_58 = arith.constant 1 : index
    %c0_59 = arith.constant 0 : index
    %81 = vector.load %arg9[%c1_58, %c0_59] : memref<88x128xf32, #tpu.memory_space<vmem>>, vector<48x128xf32>
    %82 = arith.truncf %81 : vector<48x128xf32> to vector<48x128xbf16>
    %c1_60 = arith.constant 1 : index
    %c0_61 = arith.constant 0 : index
    %c0_62 = arith.constant 0 : index
    %83 = vector.load %arg4[%c1_60, %c0_61, %c0_62] : memref<9x128x128xbf16, #tpu.memory_space<vmem>>, vector<1x128x128xbf16>
    %84 = vector.shape_cast %83 : vector<1x128x128xbf16> to vector<128x128xbf16>
    %cst_63 = arith.constant dense<0.000000e+00> : vector<48x128xf32>
    %85 = tpu.matmul %82, %84, %cst_63 {dimension_numbers = #tpu.dot_dimension_numbers<[1], [0], [0], [1], [0, 0, 1, 1], [], []>} : vector<48x128xbf16>, vector<128x128xbf16>, vector<48x128xf32> -> vector<48x128xf32>
    %86 = arith.addf %80, %85 : vector<48x128xf32>
    %c2_64 = arith.constant 2 : index
    %c0_65 = arith.constant 0 : index
    %87 = vector.load %arg9[%c2_64, %c0_65] : memref<88x128xf32, #tpu.memory_space<vmem>>, vector<48x128xf32>
    %88 = arith.truncf %87 : vector<48x128xf32> to vector<48x128xbf16>
    %c2_66 = arith.constant 2 : index
    %c0_67 = arith.constant 0 : index
    %c0_68 = arith.constant 0 : index
    %89 = vector.load %arg4[%c2_66, %c0_67, %c0_68] : memref<9x128x128xbf16, #tpu.memory_space<vmem>>, vector<1x128x128xbf16>
    %90 = vector.shape_cast %89 : vector<1x128x128xbf16> to vector<128x128xbf16>
    %cst_69 = arith.constant dense<0.000000e+00> : vector<48x128xf32>
    %91 = tpu.matmul %88, %90, %cst_69 {dimension_numbers = #tpu.dot_dimension_numbers<[1], [0], [0], [1], [0, 0, 1, 1], [], []>} : vector<48x128xbf16>, vector<128x128xbf16>, vector<48x128xf32> -> vector<48x128xf32>
    %92 = arith.addf %86, %91 : vector<48x128xf32>
    %c16_70 = arith.constant 16 : index
    %c0_71 = arith.constant 0 : index
    %93 = vector.load %arg9[%c16_70, %c0_71] : memref<88x128xf32, #tpu.memory_space<vmem>>, vector<48x128xf32>
    %94 = arith.truncf %93 : vector<48x128xf32> to vector<48x128xbf16>
    %c3_72 = arith.constant 3 : index
    %c0_73 = arith.constant 0 : index
    %c0_74 = arith.constant 0 : index
    %95 = vector.load %arg4[%c3_72, %c0_73, %c0_74] : memref<9x128x128xbf16, #tpu.memory_space<vmem>>, vector<1x128x128xbf16>
    %96 = vector.shape_cast %95 : vector<1x128x128xbf16> to vector<128x128xbf16>
    %cst_75 = arith.constant dense<0.000000e+00> : vector<48x128xf32>
    %97 = tpu.matmul %94, %96, %cst_75 {dimension_numbers = #tpu.dot_dimension_numbers<[1], [0], [0], [1], [0, 0, 1, 1], [], []>} : vector<48x128xbf16>, vector<128x128xbf16>, vector<48x128xf32> -> vector<48x128xf32>
    %98 = arith.addf %92, %97 : vector<48x128xf32>
    %c17_76 = arith.constant 17 : index
    %c0_77 = arith.constant 0 : index
    %99 = vector.load %arg9[%c17_76, %c0_77] : memref<88x128xf32, #tpu.memory_space<vmem>>, vector<48x128xf32>
    %100 = arith.truncf %99 : vector<48x128xf32> to vector<48x128xbf16>
    %c4_78 = arith.constant 4 : index
    %c0_79 = arith.constant 0 : index
    %c0_80 = arith.constant 0 : index
    %101 = vector.load %arg4[%c4_78, %c0_79, %c0_80] : memref<9x128x128xbf16, #tpu.memory_space<vmem>>, vector<1x128x128xbf16>
    %102 = vector.shape_cast %101 : vector<1x128x128xbf16> to vector<128x128xbf16>
    %cst_81 = arith.constant dense<0.000000e+00> : vector<48x128xf32>
    %103 = tpu.matmul %100, %102, %cst_81 {dimension_numbers = #tpu.dot_dimension_numbers<[1], [0], [0], [1], [0, 0, 1, 1], [], []>} : vector<48x128xbf16>, vector<128x128xbf16>, vector<48x128xf32> -> vector<48x128xf32>
    %104 = arith.addf %98, %103 : vector<48x128xf32>
    %c18_82 = arith.constant 18 : index
    %c0_83 = arith.constant 0 : index
    %105 = vector.load %arg9[%c18_82, %c0_83] : memref<88x128xf32, #tpu.memory_space<vmem>>, vector<48x128xf32>
    %106 = arith.truncf %105 : vector<48x128xf32> to vector<48x128xbf16>
    %c5_84 = arith.constant 5 : index
    %c0_85 = arith.constant 0 : index
    %c0_86 = arith.constant 0 : index
    %107 = vector.load %arg4[%c5_84, %c0_85, %c0_86] : memref<9x128x128xbf16, #tpu.memory_space<vmem>>, vector<1x128x128xbf16>
    %108 = vector.shape_cast %107 : vector<1x128x128xbf16> to vector<128x128xbf16>
    %cst_87 = arith.constant dense<0.000000e+00> : vector<48x128xf32>
    %109 = tpu.matmul %106, %108, %cst_87 {dimension_numbers = #tpu.dot_dimension_numbers<[1], [0], [0], [1], [0, 0, 1, 1], [], []>} : vector<48x128xbf16>, vector<128x128xbf16>, vector<48x128xf32> -> vector<48x128xf32>
    %110 = arith.addf %104, %109 : vector<48x128xf32>
    %c32_88 = arith.constant 32 : index
    %c0_89 = arith.constant 0 : index
    %111 = vector.load %arg9[%c32_88, %c0_89] : memref<88x128xf32, #tpu.memory_space<vmem>>, vector<48x128xf32>
    %112 = arith.truncf %111 : vector<48x128xf32> to vector<48x128xbf16>
    %c6_90 = arith.constant 6 : index
    %c0_91 = arith.constant 0 : index
    %c0_92 = arith.constant 0 : index
    %113 = vector.load %arg4[%c6_90, %c0_91, %c0_92] : memref<9x128x128xbf16, #tpu.memory_space<vmem>>, vector<1x128x128xbf16>
    %114 = vector.shape_cast %113 : vector<1x128x128xbf16> to vector<128x128xbf16>
    %cst_93 = arith.constant dense<0.000000e+00> : vector<48x128xf32>
    %115 = tpu.matmul %112, %114, %cst_93 {dimension_numbers = #tpu.dot_dimension_numbers<[1], [0], [0], [1], [0, 0, 1, 1], [], []>} : vector<48x128xbf16>, vector<128x128xbf16>, vector<48x128xf32> -> vector<48x128xf32>
    %116 = arith.addf %110, %115 : vector<48x128xf32>
    %c33_94 = arith.constant 33 : index
    %c0_95 = arith.constant 0 : index
    %117 = vector.load %arg9[%c33_94, %c0_95] : memref<88x128xf32, #tpu.memory_space<vmem>>, vector<48x128xf32>
    %118 = arith.truncf %117 : vector<48x128xf32> to vector<48x128xbf16>
    %c7_96 = arith.constant 7 : index
    %c0_97 = arith.constant 0 : index
    %c0_98 = arith.constant 0 : index
    %119 = vector.load %arg4[%c7_96, %c0_97, %c0_98] : memref<9x128x128xbf16, #tpu.memory_space<vmem>>, vector<1x128x128xbf16>
    %120 = vector.shape_cast %119 : vector<1x128x128xbf16> to vector<128x128xbf16>
    %cst_99 = arith.constant dense<0.000000e+00> : vector<48x128xf32>
    %121 = tpu.matmul %118, %120, %cst_99 {dimension_numbers = #tpu.dot_dimension_numbers<[1], [0], [0], [1], [0, 0, 1, 1], [], []>} : vector<48x128xbf16>, vector<128x128xbf16>, vector<48x128xf32> -> vector<48x128xf32>
    %122 = arith.addf %116, %121 : vector<48x128xf32>
    %c34_100 = arith.constant 34 : index
    %c0_101 = arith.constant 0 : index
    %123 = vector.load %arg9[%c34_100, %c0_101] : memref<88x128xf32, #tpu.memory_space<vmem>>, vector<48x128xf32>
    %124 = arith.truncf %123 : vector<48x128xf32> to vector<48x128xbf16>
    %c8_102 = arith.constant 8 : index
    %c0_103 = arith.constant 0 : index
    %c0_104 = arith.constant 0 : index
    %125 = vector.load %arg4[%c8_102, %c0_103, %c0_104] : memref<9x128x128xbf16, #tpu.memory_space<vmem>>, vector<1x128x128xbf16>
    %126 = vector.shape_cast %125 : vector<1x128x128xbf16> to vector<128x128xbf16>
    %cst_105 = arith.constant dense<0.000000e+00> : vector<48x128xf32>
    %127 = tpu.matmul %124, %126, %cst_105 {dimension_numbers = #tpu.dot_dimension_numbers<[1], [0], [0], [1], [0, 0, 1, 1], [], []>} : vector<48x128xbf16>, vector<128x128xbf16>, vector<48x128xf32> -> vector<48x128xf32>
    %128 = arith.addf %122, %127 : vector<48x128xf32>
    %129 = vector.shape_cast %75 : vector<128xf32> to vector<1x128xf32>
    %130 = vector.broadcast %129 : vector<1x128xf32> to vector<48x128xf32>
    %131 = arith.addf %128, %130 : vector<48x128xf32>
    %cst_106 = arith.constant 0.000000e+00 : f32
    %132 = vector.broadcast %cst_106 : f32 to vector<48x128xf32>
    %133 = arith.maximumf %131, %132 : vector<48x128xf32>
    %c0_107 = arith.constant 0 : index
    %c0_108 = arith.constant 0 : index
    %134 = vector.load %arg10[%c0_107, %c0_108] : memref<56x128xf32, #tpu.memory_space<vmem>>, vector<48x128xf32>
    tpu.vector_store %arg10[%c0_107, %c0_108], %133 {strides = array<i32>} : memref<56x128xf32, #tpu.memory_space<vmem>>, vector<48x128xf32>,
    %135 = vector.extract_strided_slice %0 {offsets = [3, 0], sizes = [1, 128], strides = [1, 1]} : vector<4x128xf32> to vector<1x128xf32>
    %136 = vector.shape_cast %135 : vector<1x128xf32> to vector<128xf32>
    %c0_109 = arith.constant 0 : index
    %c0_110 = arith.constant 0 : index
    %137 = vector.load %arg10[%c0_109, %c0_110] : memref<56x128xf32, #tpu.memory_space<vmem>>, vector<16x128xf32>
    %138 = arith.truncf %137 : vector<16x128xf32> to vector<16x128xbf16>
    %c0_111 = arith.constant 0 : index
    %c0_112 = arith.constant 0 : index
    %c0_113 = arith.constant 0 : index
    %139 = vector.load %arg5[%c0_111, %c0_112, %c0_113] : memref<9x128x128xbf16, #tpu.memory_space<vmem>>, vector<1x128x128xbf16>
    %140 = vector.shape_cast %139 : vector<1x128x128xbf16> to vector<128x128xbf16>
    %cst_114 = arith.constant dense<0.000000e+00> : vector<16x128xf32>
    %141 = tpu.matmul %138, %140, %cst_114 {dimension_numbers = #tpu.dot_dimension_numbers<[1], [0], [0], [1], [0, 0, 1, 1], [], []>} : vector<16x128xbf16>, vector<128x128xbf16>, vector<16x128xf32> -> vector<16x128xf32>
    %c1_115 = arith.constant 1 : index
    %c0_116 = arith.constant 0 : index
    %142 = vector.load %arg10[%c1_115, %c0_116] : memref<56x128xf32, #tpu.memory_space<vmem>>, vector<16x128xf32>
    %143 = arith.truncf %142 : vector<16x128xf32> to vector<16x128xbf16>
    %c1_117 = arith.constant 1 : index
    %c0_118 = arith.constant 0 : index
    %c0_119 = arith.constant 0 : index
    %144 = vector.load %arg5[%c1_117, %c0_118, %c0_119] : memref<9x128x128xbf16, #tpu.memory_space<vmem>>, vector<1x128x128xbf16>
    %145 = vector.shape_cast %144 : vector<1x128x128xbf16> to vector<128x128xbf16>
    %cst_120 = arith.constant dense<0.000000e+00> : vector<16x128xf32>
    %146 = tpu.matmul %143, %145, %cst_120 {dimension_numbers = #tpu.dot_dimension_numbers<[1], [0], [0], [1], [0, 0, 1, 1], [], []>} : vector<16x128xbf16>, vector<128x128xbf16>, vector<16x128xf32> -> vector<16x128xf32>
    %147 = arith.addf %141, %146 : vector<16x128xf32>
    %c2_121 = arith.constant 2 : index
    %c0_122 = arith.constant 0 : index
    %148 = vector.load %arg10[%c2_121, %c0_122] : memref<56x128xf32, #tpu.memory_space<vmem>>, vector<16x128xf32>
    %149 = arith.truncf %148 : vector<16x128xf32> to vector<16x128xbf16>
    %c2_123 = arith.constant 2 : index
    %c0_124 = arith.constant 0 : index
    %c0_125 = arith.constant 0 : index
    %150 = vector.load %arg5[%c2_123, %c0_124, %c0_125] : memref<9x128x128xbf16, #tpu.memory_space<vmem>>, vector<1x128x128xbf16>
    %151 = vector.shape_cast %150 : vector<1x128x128xbf16> to vector<128x128xbf16>
    %cst_126 = arith.constant dense<0.000000e+00> : vector<16x128xf32>
    %152 = tpu.matmul %149, %151, %cst_126 {dimension_numbers = #tpu.dot_dimension_numbers<[1], [0], [0], [1], [0, 0, 1, 1], [], []>} : vector<16x128xbf16>, vector<128x128xbf16>, vector<16x128xf32> -> vector<16x128xf32>
    %153 = arith.addf %147, %152 : vector<16x128xf32>
    %c16_127 = arith.constant 16 : index
    %c0_128 = arith.constant 0 : index
    %154 = vector.load %arg10[%c16_127, %c0_128] : memref<56x128xf32, #tpu.memory_space<vmem>>, vector<16x128xf32>
    %155 = arith.truncf %154 : vector<16x128xf32> to vector<16x128xbf16>
    %c3_129 = arith.constant 3 : index
    %c0_130 = arith.constant 0 : index
    %c0_131 = arith.constant 0 : index
    %156 = vector.load %arg5[%c3_129, %c0_130, %c0_131] : memref<9x128x128xbf16, #tpu.memory_space<vmem>>, vector<1x128x128xbf16>
    %157 = vector.shape_cast %156 : vector<1x128x128xbf16> to vector<128x128xbf16>
    %cst_132 = arith.constant dense<0.000000e+00> : vector<16x128xf32>
    %158 = tpu.matmul %155, %157, %cst_132 {dimension_numbers = #tpu.dot_dimension_numbers<[1], [0], [0], [1], [0, 0, 1, 1], [], []>} : vector<16x128xbf16>, vector<128x128xbf16>, vector<16x128xf32> -> vector<16x128xf32>
    %159 = arith.addf %153, %158 : vector<16x128xf32>
    %c17_133 = arith.constant 17 : index
    %c0_134 = arith.constant 0 : index
    %160 = vector.load %arg10[%c17_133, %c0_134] : memref<56x128xf32, #tpu.memory_space<vmem>>, vector<16x128xf32>
    %161 = arith.truncf %160 : vector<16x128xf32> to vector<16x128xbf16>
    %c4_135 = arith.constant 4 : index
    %c0_136 = arith.constant 0 : index
    %c0_137 = arith.constant 0 : index
    %162 = vector.load %arg5[%c4_135, %c0_136, %c0_137] : memref<9x128x128xbf16, #tpu.memory_space<vmem>>, vector<1x128x128xbf16>
    %163 = vector.shape_cast %162 : vector<1x128x128xbf16> to vector<128x128xbf16>
    %cst_138 = arith.constant dense<0.000000e+00> : vector<16x128xf32>
    %164 = tpu.matmul %161, %163, %cst_138 {dimension_numbers = #tpu.dot_dimension_numbers<[1], [0], [0], [1], [0, 0, 1, 1], [], []>} : vector<16x128xbf16>, vector<128x128xbf16>, vector<16x128xf32> -> vector<16x128xf32>
    %165 = arith.addf %159, %164 : vector<16x128xf32>
    %c18_139 = arith.constant 18 : index
    %c0_140 = arith.constant 0 : index
    %166 = vector.load %arg10[%c18_139, %c0_140] : memref<56x128xf32, #tpu.memory_space<vmem>>, vector<16x128xf32>
    %167 = arith.truncf %166 : vector<16x128xf32> to vector<16x128xbf16>
    %c5_141 = arith.constant 5 : index
    %c0_142 = arith.constant 0 : index
    %c0_143 = arith.constant 0 : index
    %168 = vector.load %arg5[%c5_141, %c0_142, %c0_143] : memref<9x128x128xbf16, #tpu.memory_space<vmem>>, vector<1x128x128xbf16>
    %169 = vector.shape_cast %168 : vector<1x128x128xbf16> to vector<128x128xbf16>
    %cst_144 = arith.constant dense<0.000000e+00> : vector<16x128xf32>
    %170 = tpu.matmul %167, %169, %cst_144 {dimension_numbers = #tpu.dot_dimension_numbers<[1], [0], [0], [1], [0, 0, 1, 1], [], []>} : vector<16x128xbf16>, vector<128x128xbf16>, vector<16x128xf32> -> vector<16x128xf32>
    %171 = arith.addf %165, %170 : vector<16x128xf32>
    %c32_145 = arith.constant 32 : index
    %c0_146 = arith.constant 0 : index
    %172 = vector.load %arg10[%c32_145, %c0_146] : memref<56x128xf32, #tpu.memory_space<vmem>>, vector<16x128xf32>
    %173 = arith.truncf %172 : vector<16x128xf32> to vector<16x128xbf16>
    %c6_147 = arith.constant 6 : index
    %c0_148 = arith.constant 0 : index
    %c0_149 = arith.constant 0 : index
    %174 = vector.load %arg5[%c6_147, %c0_148, %c0_149] : memref<9x128x128xbf16, #tpu.memory_space<vmem>>, vector<1x128x128xbf16>
    %175 = vector.shape_cast %174 : vector<1x128x128xbf16> to vector<128x128xbf16>
    %cst_150 = arith.constant dense<0.000000e+00> : vector<16x128xf32>
    %176 = tpu.matmul %173, %175, %cst_150 {dimension_numbers = #tpu.dot_dimension_numbers<[1], [0], [0], [1], [0, 0, 1, 1], [], []>} : vector<16x128xbf16>, vector<128x128xbf16>, vector<16x128xf32> -> vector<16x128xf32>
    %177 = arith.addf %171, %176 : vector<16x128xf32>
    %c33_151 = arith.constant 33 : index
    %c0_152 = arith.constant 0 : index
    %178 = vector.load %arg10[%c33_151, %c0_152] : memref<56x128xf32, #tpu.memory_space<vmem>>, vector<16x128xf32>
    %179 = arith.truncf %178 : vector<16x128xf32> to vector<16x128xbf16>
    %c7_153 = arith.constant 7 : index
    %c0_154 = arith.constant 0 : index
    %c0_155 = arith.constant 0 : index
    %180 = vector.load %arg5[%c7_153, %c0_154, %c0_155] : memref<9x128x128xbf16, #tpu.memory_space<vmem>>, vector<1x128x128xbf16>
    %181 = vector.shape_cast %180 : vector<1x128x128xbf16> to vector<128x128xbf16>
    %cst_156 = arith.constant dense<0.000000e+00> : vector<16x128xf32>
    %182 = tpu.matmul %179, %181, %cst_156 {dimension_numbers = #tpu.dot_dimension_numbers<[1], [0], [0], [1], [0, 0, 1, 1], [], []>} : vector<16x128xbf16>, vector<128x128xbf16>, vector<16x128xf32> -> vector<16x128xf32>
    %183 = arith.addf %177, %182 : vector<16x128xf32>
    %c34_157 = arith.constant 34 : index
    %c0_158 = arith.constant 0 : index
    %184 = vector.load %arg10[%c34_157, %c0_158] : memref<56x128xf32, #tpu.memory_space<vmem>>, vector<16x128xf32>
    %185 = arith.truncf %184 : vector<16x128xf32> to vector<16x128xbf16>
    %c8_159 = arith.constant 8 : index
    %c0_160 = arith.constant 0 : index
    %c0_161 = arith.constant 0 : index
    %186 = vector.load %arg5[%c8_159, %c0_160, %c0_161] : memref<9x128x128xbf16, #tpu.memory_space<vmem>>, vector<1x128x128xbf16>
    %187 = vector.shape_cast %186 : vector<1x128x128xbf16> to vector<128x128xbf16>
    %cst_162 = arith.constant dense<0.000000e+00> : vector<16x128xf32>
    %188 = tpu.matmul %185, %187, %cst_162 {dimension_numbers = #tpu.dot_dimension_numbers<[1], [0], [0], [1], [0, 0, 1, 1], [], []>} : vector<16x128xbf16>, vector<128x128xbf16>, vector<16x128xf32> -> vector<16x128xf32>
    %189 = arith.addf %183, %188 : vector<16x128xf32>
    %190 = vector.shape_cast %136 : vector<128xf32> to vector<1x128xf32>
    %191 = vector.broadcast %190 : vector<1x128xf32> to vector<16x128xf32>
    %192 = arith.addf %189, %191 : vector<16x128xf32>
    %cst_163 = arith.constant 0.000000e+00 : f32
    %193 = vector.broadcast %cst_163 : f32 to vector<16x128xf32>
    %194 = arith.maximumf %192, %193 : vector<16x128xf32>
    %c0_164 = arith.constant 0 : index
    %c0_165 = arith.constant 0 : index
    %c0_166 = arith.constant 0 : index
    %195 = vector.load %arg7[%c0_164, %c0_165, %c0_166] : memref<1x16x128xf32, #tpu.memory_space<vmem>>, vector<1x16x128xf32>
    %196 = vector.shape_cast %195 : vector<1x16x128xf32> to vector<16x128xf32>
    %197 = vector.shape_cast %194 : vector<16x128xf32> to vector<1x16x128xf32>
    tpu.vector_store %arg7[%c0_164, %c0_165, %c0_166], %197 {strides = array<i32>} : memref<1x16x128xf32, #tpu.memory_space<vmem>>, vector<1x16x128xf32>,
    return
  }
  func.func @transform_0(%arg0: i32) -> (i32, i32, i32) {
    %c0_i32 = arith.constant 0 : i32
    %c0_i32_0 = arith.constant 0 : i32
    %c0_i32_1 = arith.constant 0 : i32
    return %arg0, %c0_i32, %c0_i32_0 : i32, i32, i32
  }
  func.func @transform_1(%arg0: i32) -> (i32, i32) {
    %c0_i32 = arith.constant 0 : i32
    %c0_i32_0 = arith.constant 0 : i32
    %c0_i32_1 = arith.constant 0 : i32
    return %c0_i32, %c0_i32_0 : i32, i32
  }
  func.func @transform_2(%arg0: i32) -> (i32, i32, i32) {
    %c0_i32 = arith.constant 0 : i32
    %c0_i32_0 = arith.constant 0 : i32
    %c0_i32_1 = arith.constant 0 : i32
    %c0_i32_2 = arith.constant 0 : i32
    return %c0_i32, %c0_i32_0, %c0_i32_1 : i32, i32, i32
  }
  func.func @transform_3(%arg0: i32) -> (i32, i32, i32) {
    %c0_i32 = arith.constant 0 : i32
    %c0_i32_0 = arith.constant 0 : i32
    %c0_i32_1 = arith.constant 0 : i32
    %c0_i32_2 = arith.constant 0 : i32
    return %c0_i32, %c0_i32_0, %c0_i32_1 : i32, i32, i32
  }
  func.func @transform_4(%arg0: i32) -> (i32, i32, i32) {
    %c0_i32 = arith.constant 0 : i32
    %c0_i32_0 = arith.constant 0 : i32
    %c0_i32_1 = arith.constant 0 : i32
    %c0_i32_2 = arith.constant 0 : i32
    return %c0_i32, %c0_i32_0, %c0_i32_1 : i32, i32, i32
  }
  func.func @transform_5(%arg0: i32) -> (i32, i32) {
    %c0_i32 = arith.constant 0 : i32
    %c0_i32_0 = arith.constant 0 : i32
    %c0_i32_1 = arith.constant 0 : i32
    return %c0_i32, %c0_i32_0 : i32, i32
  }
  func.func @transform_6(%arg0: i32) -> (i32, i32, i32) {
    %c0_i32 = arith.constant 0 : i32
    %c0_i32_0 = arith.constant 0 : i32
    %c0_i32_1 = arith.constant 0 : i32
    return %arg0, %c0_i32, %c0_i32_0 : i32, i32, i32
  }
}

</mosaic_0001>

<llo_original>
// kernel: encoder_forward.1
$region0: #{encoder_forward.1}
  #allocation0 [shape = 'u32[]', space=smem, size = 0x4, offset = 0x4, fixed_abs, tag = 'smem constant byte address 0x4 - core index']
  #allocation1 [shape = 'u32[144,128]{1,0:T(1,128)}', space=vmem, size = 0x12000, scoped, tag = 'internal scratch']
  #allocation2 [shape = 'f32[120,128]{1,0:T(8,128)}', space=vmem, size = 0xf000, scoped, tag = 'scratch operand']
  #allocation3 [shape = 'f32[88,128]{1,0:T(8,128)}', space=vmem, size = 0xb000, scoped, tag = 'scratch operand']
  #allocation4 [shape = 'f32[56,128]{1,0:T(8,128)}', space=vmem, size = 0x7000, scoped, tag = 'scratch operand']
  %s0 = inlined_call_operand.vmem [shape: bf16[1,112,128], index: 0, kind: input, shape index: {}]
  %s1 = inlined_call_operand.vmem [shape: bf16[128,128], index: 1, kind: input, shape index: {}]
  %s2 = inlined_call_operand.vmem [shape: bf16[9,128,128], index: 2, kind: input, shape index: {}]
  %s3 = inlined_call_operand.vmem [shape: bf16[9,128,128], index: 3, kind: input, shape index: {}]
  %s4 = inlined_call_operand.vmem [shape: bf16[9,128,128], index: 4, kind: input, shape index: {}]
  %s5 = inlined_call_operand.vmem [shape: f32[4,128], index: 5, kind: input, shape index: {}]
  %s6 = inlined_call_operand.vmem [shape: f32[1,16,128], index: 6, kind: output, shape index: {}]
  %s7 = sld [smem:[#allocation0]]
  $region34: #{encoder_forward.1} parent=0
    _
  %s9 = ssub.s32 1, %s7
  %s10 = scalar_select 0, %s9, %s7
  // Predicated region
  $region2: #{encoder_forward.1} parent=0 // pred_check
    _
  $region3: #{encoder_forward.1} parent=0 // pred_check_branch
    %12 = sbr.rel (0) target = $region5
  $region4: #{encoder_forward.1} parent=0 // pred_region
    _
  $region5: #{encoder_forward.1} parent=0 // pred_fallthru
    _
  // Predicated region
  $region6: #{encoder_forward.1} parent=0 // pred_check
    _
  $region7: #{encoder_forward.1} parent=0 // pred_check_branch
    %14 = sbr.rel (0) target = $region9
  $region8: #{encoder_forward.1} parent=0 // pred_region
    _
  $region9: #{encoder_forward.1} parent=0 // pred_fallthru
    _
  // Predicated region
  $region10: #{encoder_forward.1} parent=0 // pred_check
    _
  $region11: #{encoder_forward.1} parent=0 // pred_check_branch
    %16 = sbr.rel (0) target = $region13
  $region12: #{encoder_forward.1} parent=0 // pred_region
    _
  $region13: #{encoder_forward.1} parent=0 // pred_fallthru
    _
  // Predicated region
  $region14: #{encoder_forward.1} parent=0 // pred_check
    _
  $region15: #{encoder_forward.1} parent=0 // pred_check_branch
    %18 = sbr.rel (0) target = $region17
  $region16: #{encoder_forward.1} parent=0 // pred_region
    _
  $region17: #{encoder_forward.1} parent=0 // pred_fallthru
    _
  // Predicated region
  $region18: #{encoder_forward.1} parent=0 // pred_check
    _
  $region19: #{encoder_forward.1} parent=0 // pred_check_branch
    %20 = sbr.rel (0) target = $region21
  $region20: #{encoder_forward.1} parent=0 // pred_region
    _
  $region21: #{encoder_forward.1} parent=0 // pred_fallthru
    _
  // Predicated region
  $region22: #{encoder_forward.1} parent=0 // pred_check
    _
  $region23: #{encoder_forward.1} parent=0 // pred_check_branch
    %22 = sbr.rel (0) target = $region25
  $region24: #{encoder_forward.1} parent=0 // pred_region
    _
  $region25: #{encoder_forward.1} parent=0 // pred_fallthru
    _
  %v24 = vld [vmem:[%s5] sm:$0xf]
  %v25 = vld [vmem:[%s0] sm:$0xf]
  %v26 = vld [vmem:[%s0 + $0x4] sm:$0xf]
  %v27 = vld [vmem:[%s0 + $0x8] sm:$0xf]
  %v28 = vld [vmem:[%s0 + $0xc] sm:$0xf]
  %v29 = vld [vmem:[%s0 + $0x10] sm:$0xf]
  %v30 = vld [vmem:[%s0 + $0x14] sm:$0xf]
  %v31 = vld [vmem:[%s0 + $0x18] sm:$0xf]
  %v32 = vld [vmem:[%s0 + $0x1c] sm:$0xf]
  %v33 = vld [vmem:[%s0 + $0x20] sm:$0xf]
  %v34 = vld [vmem:[%s0 + $0x24] sm:$0xf]
  %v35 = vld [vmem:[%s0 + $0x28] sm:$0xf]
  %v36 = vld [vmem:[%s0 + $0x2c] sm:$0xf]
  %v37 = vld [vmem:[%s0 + $0x30] sm:$0xf]
  %v38 = vld [vmem:[%s0 + $0x34] sm:$0xf]
  %v39 = vld [vmem:[%s1] sm:$0xf]
  %v40 = vld [vmem:[%s1 + $0x4] sm:$0xf]
  %v41 = vld [vmem:[%s1 + $0x8] sm:$0xf]
  %v42 = vld [vmem:[%s1 + $0xc] sm:$0xf]
  %v43 = vld [vmem:[%s1 + $0x10] sm:$0xf]
  %v44 = vld [vmem:[%s1 + $0x14] sm:$0xf]
  %v45 = vld [vmem:[%s1 + $0x18] sm:$0xf]
  %v46 = vld [vmem:[%s1 + $0x1c] sm:$0xf]
  %v47 = vld [vmem:[%s1 + $0x20] sm:$0xf]
  %v48 = vld [vmem:[%s1 + $0x24] sm:$0xf]
  %v49 = vld [vmem:[%s1 + $0x28] sm:$0xf]
  %v50 = vld [vmem:[%s1 + $0x2c] sm:$0xf]
  %v51 = vld [vmem:[%s1 + $0x30] sm:$0xf]
  %v52 = vld [vmem:[%s1 + $0x34] sm:$0xf]
  %v53 = vld [vmem:[%s1 + $0x38] sm:$0xf]
  %v54 = vld [vmem:[%s1 + $0x3c] sm:$0xf]
  %v55 = vlaneseq
  %v56 = vshrl.u32 %v55, 7
  %v57 = vsub.s32 0, %v56
  %v58 = vrot.slane %v24, %v57
  %v73 = vunpack.c.l.b16 %v25
  %v74 = vunpack.c.l.b16 %v26
  %v75 = vunpack.c.l.b16 %v27
  %v76 = vunpack.c.l.b16 %v28
  %v77 = vunpack.c.l.b16 %v29
  %v78 = vunpack.c.l.b16 %v30
  %v79 = vunpack.c.l.b16 %v31
  %v80 = vunpack.c.l.b16 %v32
  %v81 = vunpack.c.l.b16 %v33
  %v82 = vunpack.c.l.b16 %v34
  %v83 = vunpack.c.l.b16 %v35
  %v84 = vunpack.c.l.b16 %v36
  %v85 = vunpack.c.l.b16 %v37
  %v86 = vunpack.c.l.b16 %v38
  %v87 = vpack.c.b16 %v74, %v73
  %v88 = vpack.c.b16 %v76, %v75
  %v89 = vpack.c.b16 %v78, %v77
  %v90 = vpack.c.b16 %v80, %v79
  %v91 = vpack.c.b16 %v82, %v81
  %v92 = vpack.c.b16 %v84, %v83
  %v93 = vpack.c.b16 %v86, %v85
  %v117 = vunpack.c.l.b16 %v39
  %v118 = vunpack.c.l.b16 %v40
  %v119 = vunpack.c.l.b16 %v41
  %v120 = vunpack.c.l.b16 %v42
  %v121 = vunpack.c.l.b16 %v43
  %v122 = vunpack.c.l.b16 %v44
  %v123 = vunpack.c.l.b16 %v45
  %v124 = vunpack.c.l.b16 %v46
  %v125 = vunpack.c.l.b16 %v47
  %v126 = vunpack.c.l.b16 %v48
  %v127 = vunpack.c.l.b16 %v49
  %v128 = vunpack.c.l.b16 %v50
  %v129 = vunpack.c.l.b16 %v51
  %v130 = vunpack.c.l.b16 %v52
  %v131 = vunpack.c.l.b16 %v53
  %v132 = vunpack.c.l.b16 %v54
  %v133 = vpack.c.b16 %v118, %v117
  %v134 = vpack.c.b16 %v120, %v119
  %v135 = vpack.c.b16 %v122, %v121
  %v136 = vpack.c.b16 %v124, %v123
  %v137 = vpack.c.b16 %v126, %v125
  %v138 = vpack.c.b16 %v128, %v127
  %v139 = vpack.c.b16 %v130, %v129
  %v140 = vpack.c.b16 %v132, %v131
  %149 = vmatprep.subr.bf16.mxu0 0
  %150 = vmatpush1.bf16.msra.mxu0 %v140
  %151 = vmatprep.subr.bf16.mxu0 0
  %152 = vmatpush1.bf16.msra.mxu0 %v139
  %153 = vmatprep.subr.bf16.mxu0 0
  %154 = vmatpush1.bf16.msra.mxu0 %v138
  %155 = vmatprep.subr.bf16.mxu0 0
  %156 = vmatpush1.bf16.msra.mxu0 %v137
  %157 = vmatprep.subr.bf16.mxu0 0
  %158 = vmatpush1.bf16.msra.mxu0 %v136
  %159 = vmatprep.subr.bf16.mxu0 0
  %160 = vmatpush1.bf16.msra.mxu0 %v135
  %161 = vmatprep.subr.bf16.mxu0 0
  %162 = vmatpush1.bf16.msra.mxu0 %v134
  %163 = vmatprep.subr.bf16.mxu0 0
  %164 = vmatpush1.bf16.msra.mxu0 %v133
  %165 = vmatprep.subr.bf16.mxu0 0
  %166 = vmatpush2.bf16.msra.mxu0 0
  %167 = vmatprep.subr.bf16.mxu0 0
  %168 = vmatpush2.bf16.msra.mxu0 0
  %169 = vmatprep.subr.bf16.mxu0 0
  %170 = vmatpush2.bf16.msra.mxu0 0
  %171 = vmatprep.subr.bf16.mxu0 0
  %172 = vmatpush2.bf16.msra.mxu0 0
  %173 = vmatprep.subr.bf16.mxu0 0
  %174 = vmatpush2.bf16.msra.mxu0 0
  %175 = vmatprep.subr.bf16.mxu0 0
  %176 = vmatpush2.bf16.msra.mxu0 0
  %177 = vmatprep.subr.bf16.mxu0 0
  %178 = vmatpush2.bf16.msra.mxu0 0
  %179 = vmatprep.subr.bf16.mxu0 0
  %180 = vmatpush2.bf16.msra.mxu0 0
  %181 = vmatprep.mubr.bf16.mxu0 0
  %182 = vmatmul.mubr.bf16.gmra.mxu0 %v87
  %v183 = vpop.f32.mrf.mxu0
  %v184 = vadd.f32 %v58, %v183
  %v185 = vpop.f32.mrf.mxu0
  %v186 = vpop.f32.mrf.mxu0
  %v187 = vadd.f32 %v58, %v186
  %v188 = vpop.f32.mrf.mxu0
  %189 = vmatprep.mubr.bf16.mxu0 0
  %190 = vmatmul.mubr.bf16.gmra.mxu0 %v88
  %v191 = vpop.f32.mrf.mxu0
  %v192 = vadd.f32 %v58, %v191
  %v193 = vpop.f32.mrf.mxu0
  %v194 = vpop.f32.mrf.mxu0
  %v195 = vadd.f32 %v58, %v194
  %v196 = vpop.f32.mrf.mxu0
  %197 = vmatprep.mubr.bf16.mxu0 0
  %198 = vmatmul.mubr.bf16.gmra.mxu0 %v89
  %v199 = vpop.f32.mrf.mxu0
  %v200 = vadd.f32 %v58, %v199
  %v201 = vpop.f32.mrf.mxu0
  %v202 = vpop.f32.mrf.mxu0
  %v203 = vadd.f32 %v58, %v202
  %v204 = vpop.f32.mrf.mxu0
  %205 = vmatprep.mubr.bf16.mxu0 0
  %206 = vmatmul.mubr.bf16.gmra.mxu0 %v90
  %v207 = vpop.f32.mrf.mxu0
  %v208 = vadd.f32 %v58, %v207
  %v209 = vpop.f32.mrf.mxu0
  %v210 = vpop.f32.mrf.mxu0
  %v211 = vadd.f32 %v58, %v210
  %v212 = vpop.f32.mrf.mxu0
  %213 = vmatprep.mubr.bf16.mxu0 0
  %214 = vmatmul.mubr.bf16.gmra.mxu0 %v91
  %v215 = vpop.f32.mrf.mxu0
  %v216 = vadd.f32 %v58, %v215
  %v217 = vpop.f32.mrf.mxu0
  %v218 = vpop.f32.mrf.mxu0
  %v219 = vadd.f32 %v58, %v218
  %v220 = vpop.f32.mrf.mxu0
  %221 = vmatprep.mubr.bf16.mxu0 0
  %222 = vmatmul.mubr.bf16.gmra.mxu0 %v92
  %v223 = vpop.f32.mrf.mxu0
  %v224 = vadd.f32 %v58, %v223
  %v225 = vpop.f32.mrf.mxu0
  %v226 = vpop.f32.mrf.mxu0
  %v227 = vadd.f32 %v58, %v226
  %v228 = vpop.f32.mrf.mxu0
  %229 = vmatprep.mubr.bf16.mxu0 0
  %230 = vmatmul.mubr.bf16.gmra.mxu0 %v93
  %v231 = vpop.f32.mrf.mxu0
  %v232 = vadd.f32 %v58, %v231
  %v233 = vpop.f32.mrf.mxu0
  %v234 = vpop.f32.mrf.mxu0
  %v235 = vadd.f32 %v58, %v234
  %v236 = vpop.f32.mrf.mxu0
  %237 = vdwg.mxu0
  %v238 = vmax.f32 %v184, 0.0
  %v239 = vmax.f32 %v187, 0.0
  %v240 = vmax.f32 %v192, 0.0
  %v241 = vmax.f32 %v195, 0.0
  %v242 = vmax.f32 %v200, 0.0
  %v243 = vmax.f32 %v203, 0.0
  %v244 = vmax.f32 %v208, 0.0
  %v245 = vmax.f32 %v211, 0.0
  %v246 = vmax.f32 %v216, 0.0
  %v247 = vmax.f32 %v219, 0.0
  %v248 = vmax.f32 %v224, 0.0
  %v249 = vmax.f32 %v227, 0.0
  %v250 = vmax.f32 %v232, 0.0
  %v251 = vmax.f32 %v235, 0.0
  %252 = vst [vmem:[#allocation2] sm:$0xff] %v238
  %253 = vst [vmem:[#allocation2 + $0x8] sm:$0xff] %v239
  %254 = vst [vmem:[#allocation2 + $0x10] sm:$0xff] %v240
  %255 = vst [vmem:[#allocation2 + $0x18] sm:$0xff] %v241
  %256 = vst [vmem:[#allocation2 + $0x20] sm:$0xff] %v242
  %257 = vst [vmem:[#allocation2 + $0x28] sm:$0xff] %v243
  %258 = vst [vmem:[#allocation2 + $0x30] sm:$0xff] %v244
  %259 = vst [vmem:[#allocation2 + $0x38] sm:$0xff] %v245
  %260 = vst [vmem:[#allocation2 + $0x40] sm:$0xff] %v246
  %261 = vst [vmem:[#allocation2 + $0x48] sm:$0xff] %v247
  %262 = vst [vmem:[#allocation2 + $0x50] sm:$0xff] %v248
  %263 = vst [vmem:[#allocation2 + $0x58] sm:$0xff] %v249
  %264 = vst [vmem:[#allocation2 + $0x60] sm:$0xff] %v250
  %265 = vst [vmem:[#allocation2 + $0x68] sm:$0xff] %v251
  %v266 = vld [vmem:[#allocation2] sm:$0xff]
  %v267 = vld [vmem:[#allocation2 + $0x8] sm:$0xff]
  %v268 = vld [vmem:[#allocation2 + $0x10] sm:$0xff]
  %v269 = vld [vmem:[#allocation2 + $0x18] sm:$0xff]
  %v270 = vld [vmem:[#allocation2 + $0x20] sm:$0xff]
  %v271 = vld [vmem:[#allocation2 + $0x28] sm:$0xff]
  %v272 = vld [vmem:[#allocation2 + $0x30] sm:$0xff]
  %v273 = vld [vmem:[#allocation2 + $0x38] sm:$0xff]
  %v274 = vld [vmem:[#allocation2 + $0x40] sm:$0xff]
  %v275 = vld [vmem:[#allocation2 + $0x48] sm:$0xff]
  %v276 = vpack.c.bf16 %v267, %v266
  %v277 = vpack.c.bf16 %v269, %v268
  %v278 = vpack.c.bf16 %v271, %v270
  %v279 = vpack.c.bf16 %v273, %v272
  %v280 = vpack.c.bf16 %v275, %v274
  %v281 = vld [vmem:[%s2] sm:$0xf]
  %v282 = vld [vmem:[%s2 + $0x4] sm:$0xf]
  %v283 = vld [vmem:[%s2 + $0x8] sm:$0xf]
  %v284 = vld [vmem:[%s2 + $0xc] sm:$0xf]
  %v285 = vld [vmem:[%s2 + $0x10] sm:$0xf]
  %v286 = vld [vmem:[%s2 + $0x14] sm:$0xf]
  %v287 = vld [vmem:[%s2 + $0x18] sm:$0xf]
  %v288 = vld [vmem:[%s2 + $0x1c] sm:$0xf]
  %v289 = vld [vmem:[%s2 + $0x20] sm:$0xf]
  %v290 = vld [vmem:[%s2 + $0x24] sm:$0xf]
  %v291 = vld [vmem:[%s2 + $0x28] sm:$0xf]
  %v292 = vld [vmem:[%s2 + $0x2c] sm:$0xf]
  %v293 = vld [vmem:[%s2 + $0x30] sm:$0xf]
  %v294 = vld [vmem:[%s2 + $0x34] sm:$0xf]
  %v295 = vld [vmem:[%s2 + $0x38] sm:$0xf]
  %v296 = vld [vmem:[%s2 + $0x3c] sm:$0xf]
  %v297 = vld [vmem:[#allocation2 + $0x1] sm:$0xff]
  %v298 = vld [vmem:[#allocation2 + $0x9] sm:$0xff]
  %v299 = vld [vmem:[#allocation2 + $0x11] sm:$0xff]
  %v300 = vld [vmem:[#allocation2 + $0x19] sm:$0xff]
  %v301 = vld [vmem:[#allocation2 + $0x21] sm:$0xff]
  %v302 = vld [vmem:[#allocation2 + $0x29] sm:$0xff]
  %v303 = vld [vmem:[#allocation2 + $0x31] sm:$0xff]
  %v304 = vld [vmem:[#allocation2 + $0x39] sm:$0xff]
  %v305 = vld [vmem:[#allocation2 + $0x41] sm:$0xff]
  %v306 = vld [vmem:[#allocation2 + $0x49] sm:$0xff]
  %v307 = vpack.c.bf16 %v298, %v297
  %v308 = vpack.c.bf16 %v300, %v299
  %v309 = vpack.c.bf16 %v302, %v301
  %v310 = vpack.c.bf16 %v304, %v303
  %v311 = vpack.c.bf16 %v306, %v305
  %s312 = scalar_lea.vmem %s2, 64
  %v313 = vld [vmem:[%s312] sm:$0xf]
  %v314 = vld [vmem:[%s312 + $0x4] sm:$0xf]
  %v315 = vld [vmem:[%s312 + $0x8] sm:$0xf]
  %v316 = vld [vmem:[%s312 + $0xc] sm:$0xf]
  %v317 = vld [vmem:[%s312 + $0x10] sm:$0xf]
  %v318 = vld [vmem:[%s312 + $0x14] sm:$0xf]
  %v319 = vld [vmem:[%s312 + $0x18] sm:$0xf]
  %v320 = vld [vmem:[%s312 + $0x1c] sm:$0xf]
  %v321 = vld [vmem:[%s312 + $0x20] sm:$0xf]
  %v322 = vld [vmem:[%s312 + $0x24] sm:$0xf]
  %v323 = vld [vmem:[%s312 + $0x28] sm:$0xf]
  %v324 = vld [vmem:[%s312 + $0x2c] sm:$0xf]
  %v325 = vld [vmem:[%s312 + $0x30] sm:$0xf]
  %v326 = vld [vmem:[%s312 + $0x34] sm:$0xf]
  %v327 = vld [vmem:[%s312 + $0x38] sm:$0xf]
  %v328 = vld [vmem:[%s312 + $0x3c] sm:$0xf]
  %v345 = vunpack.c.l.b16 %v313
  %v346 = vunpack.c.l.b16 %v314
  %v347 = vunpack.c.l.b16 %v315
  %v348 = vunpack.c.l.b16 %v316
  %v349 = vunpack.c.l.b16 %v317
  %v350 = vunpack.c.l.b16 %v318
  %v351 = vunpack.c.l.b16 %v319
  %v352 = vunpack.c.l.b16 %v320
  %v353 = vunpack.c.l.b16 %v321
  %v354 = vunpack.c.l.b16 %v322
  %v355 = vunpack.c.l.b16 %v323
  %v356 = vunpack.c.l.b16 %v324
  %v357 = vunpack.c.l.b16 %v325
  %v358 = vunpack.c.l.b16 %v326
  %v359 = vunpack.c.l.b16 %v327
  %v360 = vunpack.c.l.b16 %v328
  %v361 = vpack.c.b16 %v346, %v345
  %v362 = vpack.c.b16 %v348, %v347
  %v363 = vpack.c.b16 %v350, %v349
  %v364 = vpack.c.b16 %v352, %v351
  %v365 = vpack.c.b16 %v354, %v353
  %v366 = vpack.c.b16 %v356, %v355
  %v367 = vpack.c.b16 %v358, %v357
  %v368 = vpack.c.b16 %v360, %v359
  %377 = vmatprep.subr.bf16.mxu0 0
  %378 = vmatpush1.bf16.msra.mxu0 %v368
  %379 = vmatprep.subr.bf16.mxu0 0
  %380 = vmatpush1.bf16.msra.mxu0 %v367
  %381 = vmatprep.subr.bf16.mxu0 0
  %382 = vmatpush1.bf16.msra.mxu0 %v366
  %383 = vmatprep.subr.bf16.mxu0 0
  %384 = vmatpush1.bf16.msra.mxu0 %v365
  %385 = vmatprep.subr.bf16.mxu0 0
  %386 = vmatpush1.bf16.msra.mxu0 %v364
  %387 = vmatprep.subr.bf16.mxu0 0
  %388 = vmatpush1.bf16.msra.mxu0 %v363
  %389 = vmatprep.subr.bf16.mxu0 0
  %390 = vmatpush1.bf16.msra.mxu0 %v362
  %391 = vmatprep.subr.bf16.mxu0 0
  %392 = vmatpush1.bf16.msra.mxu0 %v361
  %393 = vmatprep.subr.bf16.mxu0 0
  %394 = vmatpush2.bf16.msra.mxu0 0
  %395 = vmatprep.subr.bf16.mxu0 0
  %396 = vmatpush2.bf16.msra.mxu0 0
  %397 = vmatprep.subr.bf16.mxu0 0
  %398 = vmatpush2.bf16.msra.mxu0 0
  %399 = vmatprep.subr.bf16.mxu0 0
  %400 = vmatpush2.bf16.msra.mxu0 0
  %401 = vmatprep.subr.bf16.mxu0 0
  %402 = vmatpush2.bf16.msra.mxu0 0
  %403 = vmatprep.subr.bf16.mxu0 0
  %404 = vmatpush2.bf16.msra.mxu0 0
  %405 = vmatprep.subr.bf16.mxu0 0
  %406 = vmatpush2.bf16.msra.mxu0 0
  %407 = vmatprep.subr.bf16.mxu0 0
  %408 = vmatpush2.bf16.msra.mxu0 0
  %409 = vmatprep.mubr.bf16.mxu0 0
  %410 = vmatmul.mubr.bf16.gmra.mxu0 %v307
  %v411 = vpop.f32.mrf.mxu0
  %v412 = vadd.f32 0.0, %v411
  %v413 = vpop.f32.mrf.mxu0
  %v414 = vpop.f32.mrf.mxu0
  %v415 = vadd.f32 0.0, %v414
  %v416 = vpop.f32.mrf.mxu0
  %417 = vmatprep.mubr.bf16.mxu0 0
  %418 = vmatmul.mubr.bf16.gmra.mxu0 %v308
  %v419 = vpop.f32.mrf.mxu0
  %v420 = vadd.f32 0.0, %v419
  %v421 = vpop.f32.mrf.mxu0
  %v422 = vpop.f32.mrf.mxu0
  %v423 = vadd.f32 0.0, %v422
  %v424 = vpop.f32.mrf.mxu0
  %425 = vmatprep.mubr.bf16.mxu0 0
  %426 = vmatmul.mubr.bf16.gmra.mxu0 %v309
  %v427 = vpop.f32.mrf.mxu0
  %v428 = vadd.f32 0.0, %v427
  %v429 = vpop.f32.mrf.mxu0
  %v430 = vpop.f32.mrf.mxu0
  %v431 = vadd.f32 0.0, %v430
  %v432 = vpop.f32.mrf.mxu0
  %433 = vmatprep.mubr.bf16.mxu0 0
  %434 = vmatmul.mubr.bf16.gmra.mxu0 %v310
  %v435 = vpop.f32.mrf.mxu0
  %v436 = vadd.f32 0.0, %v435
  %v437 = vpop.f32.mrf.mxu0
  %v438 = vpop.f32.mrf.mxu0
  %v439 = vadd.f32 0.0, %v438
  %v440 = vpop.f32.mrf.mxu0
  %441 = vmatprep.mubr.bf16.mxu0 0
  %442 = vmatmul.mubr.bf16.gmra.mxu0 %v311
  %v443 = vpop.f32.mrf.mxu0
  %v444 = vadd.f32 0.0, %v443
  %v445 = vpop.f32.mrf.mxu0
  %v446 = vpop.f32.mrf.mxu0
  %v447 = vadd.f32 0.0, %v446
  %v448 = vpop.f32.mrf.mxu0
  %449 = vdwg.mxu0
  %v466 = vunpack.c.l.b16 %v281
  %v467 = vunpack.c.l.b16 %v282
  %v468 = vunpack.c.l.b16 %v283
  %v469 = vunpack.c.l.b16 %v284
  %v470 = vunpack.c.l.b16 %v285
  %v471 = vunpack.c.l.b16 %v286
  %v472 = vunpack.c.l.b16 %v287
  %v473 = vunpack.c.l.b16 %v288
  %v474 = vunpack.c.l.b16 %v289
  %v475 = vunpack.c.l.b16 %v290
  %v476 = vunpack.c.l.b16 %v291
  %v477 = vunpack.c.l.b16 %v292
  %v478 = vunpack.c.l.b16 %v293
  %v479 = vunpack.c.l.b16 %v294
  %v480 = vunpack.c.l.b16 %v295
  %v481 = vunpack.c.l.b16 %v296
  %v482 = vpack.c.b16 %v467, %v466
  %v483 = vpack.c.b16 %v469, %v468
  %v484 = vpack.c.b16 %v471, %v470
  %v485 = vpack.c.b16 %v473, %v472
  %v486 = vpack.c.b16 %v475, %v474
  %v487 = vpack.c.b16 %v477, %v476
  %v488 = vpack.c.b16 %v479, %v478
  %v489 = vpack.c.b16 %v481, %v480
  %498 = vmatprep.subr.bf16.mxu0 0
  %499 = vmatpush1.bf16.msra.mxu0 %v489
  %500 = vmatprep.subr.bf16.mxu0 0
  %501 = vmatpush1.bf16.msra.mxu0 %v488
  %502 = vmatprep.subr.bf16.mxu0 0
  %503 = vmatpush1.bf16.msra.mxu0 %v487
  %504 = vmatprep.subr.bf16.mxu0 0
  %505 = vmatpush1.bf16.msra.mxu0 %v486
  %506 = vmatprep.subr.bf16.mxu0 0
  %507 = vmatpush1.bf16.msra.mxu0 %v485
  %508 = vmatprep.subr.bf16.mxu0 0
  %509 = vmatpush1.bf16.msra.mxu0 %v484
  %510 = vmatprep.subr.bf16.mxu0 0
  %511 = vmatpush1.bf16.msra.mxu0 %v483
  %512 = vmatprep.subr.bf16.mxu0 0
  %513 = vmatpush1.bf16.msra.mxu0 %v482
  %514 = vmatprep.subr.bf16.mxu0 0
  %515 = vmatpush2.bf16.msra.mxu0 0
  %516 = vmatprep.subr.bf16.mxu0 0
  %517 = vmatpush2.bf16.msra.mxu0 0
  %518 = vmatprep.subr.bf16.mxu0 0
  %519 = vmatpush2.bf16.msra.mxu0 0
  %520 = vmatprep.subr.bf16.mxu0 0
  %521 = vmatpush2.bf16.msra.mxu0 0
  %522 = vmatprep.subr.bf16.mxu0 0
  %523 = vmatpush2.bf16.msra.mxu0 0
  %524 = vmatprep.subr.bf16.mxu0 0
  %525 = vmatpush2.bf16.msra.mxu0 0
  %526 = vmatprep.subr.bf16.mxu0 0
  %527 = vmatpush2.bf16.msra.mxu0 0
  %528 = vmatprep.subr.bf16.mxu0 0
  %529 = vmatpush2.bf16.msra.mxu0 0
  %530 = vmatprep.mubr.bf16.mxu0 0
  %531 = vmatmul.mubr.bf16.gmra.mxu0 %v276
  %v532 = vpop.f32.mrf.mxu0
  %v533 = vadd.f32 %v412, %v532
  %v534 = vpop.f32.mrf.mxu0
  %v535 = vpop.f32.mrf.mxu0
  %v536 = vadd.f32 %v415, %v535
  %v537 = vpop.f32.mrf.mxu0
  %538 = vmatprep.mubr.bf16.mxu0 0
  %539 = vmatmul.mubr.bf16.gmra.mxu0 %v277
  %v540 = vpop.f32.mrf.mxu0
  %v541 = vadd.f32 %v420, %v540
  %v542 = vpop.f32.mrf.mxu0
  %v543 = vpop.f32.mrf.mxu0
  %v544 = vadd.f32 %v423, %v543
  %v545 = vpop.f32.mrf.mxu0
  %546 = vmatprep.mubr.bf16.mxu0 0
  %547 = vmatmul.mubr.bf16.gmra.mxu0 %v278
  %v548 = vpop.f32.mrf.mxu0
  %v549 = vadd.f32 %v428, %v548
  %v550 = vpop.f32.mrf.mxu0
  %v551 = vpop.f32.mrf.mxu0
  %v552 = vadd.f32 %v431, %v551
  %v553 = vpop.f32.mrf.mxu0
  %554 = vmatprep.mubr.bf16.mxu0 0
  %555 = vmatmul.mubr.bf16.gmra.mxu0 %v279
  %v556 = vpop.f32.mrf.mxu0
  %v557 = vadd.f32 %v436, %v556
  %v558 = vpop.f32.mrf.mxu0
  %v559 = vpop.f32.mrf.mxu0
  %v560 = vadd.f32 %v439, %v559
  %v561 = vpop.f32.mrf.mxu0
  %562 = vmatprep.mubr.bf16.mxu0 0
  %563 = vmatmul.mubr.bf16.gmra.mxu0 %v280
  %v564 = vpop.f32.mrf.mxu0
  %v565 = vadd.f32 %v444, %v564
  %v566 = vpop.f32.mrf.mxu0
  %v567 = vpop.f32.mrf.mxu0
  %v568 = vadd.f32 %v447, %v567
  %v569 = vpop.f32.mrf.mxu0
  %570 = vdwg.mxu0
  %v571 = vld [vmem:[#allocation2 + $0x2] sm:$0xff]
  %v572 = vld [vmem:[#allocation2 + $0xa] sm:$0xff]
  %v573 = vld [vmem:[#allocation2 + $0x12] sm:$0xff]
  %v574 = vld [vmem:[#allocation2 + $0x1a] sm:$0xff]
  %v575 = vld [vmem:[#allocation2 + $0x22] sm:$0xff]
  %v576 = vld [vmem:[#allocation2 + $0x2a] sm:$0xff]
  %v577 = vld [vmem:[#allocation2 + $0x32] sm:$0xff]
  %v578 = vld [vmem:[#allocation2 + $0x3a] sm:$0xff]
  %v579 = vld [vmem:[#allocation2 + $0x42] sm:$0xff]
  %v580 = vld [vmem:[#allocation2 + $0x4a] sm:$0xff]
  %v581 = vpack.c.bf16 %v572, %v571
  %v582 = vpack.c.bf16 %v574, %v573
  %v583 = vpack.c.bf16 %v576, %v575
  %v584 = vpack.c.bf16 %v578, %v577
  %v585 = vpack.c.bf16 %v580, %v579
  %s586 = scalar_lea.vmem %s2, 128
  %v587 = vld [vmem:[%s586] sm:$0xf]
  %v588 = vld [vmem:[%s586 + $0x4] sm:$0xf]
  %v589 = vld [vmem:[%s586 + $0x8] sm:$0xf]
  %v590 = vld [vmem:[%s586 + $0xc] sm:$0xf]
  %v591 = vld [vmem:[%s586 + $0x10] sm:$0xf]
  %v592 = vld [vmem:[%s586 + $0x14] sm:$0xf]
  %v593 = vld [vmem:[%s586 + $0x18] sm:$0xf]
  %v594 = vld [vmem:[%s586 + $0x1c] sm:$0xf]
  %v595 = vld [vmem:[%s586 + $0x20] sm:$0xf]
  %v596 = vld [vmem:[%s586 + $0x24] sm:$0xf]
  %v597 = vld [vmem:[%s586 + $0x28] sm:$0xf]
  %v598 = vld [vmem:[%s586 + $0x2c] sm:$0xf]
  %v599 = vld [vmem:[%s586 + $0x30] sm:$0xf]
  %v600 = vld [vmem:[%s586 + $0x34] sm:$0xf]
  %v601 = vld [vmem:[%s586 + $0x38] sm:$0xf]
  %v602 = vld [vmem:[%s586 + $0x3c] sm:$0xf]
  %v619 = vunpack.c.l.b16 %v587
  %v620 = vunpack.c.l.b16 %v588
  %v621 = vunpack.c.l.b16 %v589
  %v622 = vunpack.c.l.b16 %v590
  %v623 = vunpack.c.l.b16 %v591
  %v624 = vunpack.c.l.b16 %v592
  %v625 = vunpack.c.l.b16 %v593
  %v626 = vunpack.c.l.b16 %v594
  %v627 = vunpack.c.l.b16 %v595
  %v628 = vunpack.c.l.b16 %v596
  %v629 = vunpack.c.l.b16 %v597
  %v630 = vunpack.c.l.b16 %v598
  %v631 = vunpack.c.l.b16 %v599
  %v632 = vunpack.c.l.b16 %v600
  %v633 = vunpack.c.l.b16 %v601
  %v634 = vunpack.c.l.b16 %v602
  %v635 = vpack.c.b16 %v620, %v619
  %v636 = vpack.c.b16 %v622, %v621
  %v637 = vpack.c.b16 %v624, %v623
  %v638 = vpack.c.b16 %v626, %v625
  %v639 = vpack.c.b16 %v628, %v627
  %v640 = vpack.c.b16 %v630, %v629
  %v641 = vpack.c.b16 %v632, %v631
  %v642 = vpack.c.b16 %v634, %v633
  %651 = vmatprep.subr.bf16.mxu0 0
  %652 = vmatpush1.bf16.msra.mxu0 %v642
  %653 = vmatprep.subr.bf16.mxu0 0
  %654 = vmatpush1.bf16.msra.mxu0 %v641
  %655 = vmatprep.subr.bf16.mxu0 0
  %656 = vmatpush1.bf16.msra.mxu0 %v640
  %657 = vmatprep.subr.bf16.mxu0 0
  %658 = vmatpush1.bf16.msra.mxu0 %v639
  %659 = vmatprep.subr.bf16.mxu0 0
  %660 = vmatpush1.bf16.msra.mxu0 %v638
  %661 = vmatprep.subr.bf16.mxu0 0
  %662 = vmatpush1.bf16.msra.mxu0 %v637
  %663 = vmatprep.subr.bf16.mxu0 0
  %664 = vmatpush1.bf16.msra.mxu0 %v636
  %665 = vmatprep.subr.bf16.mxu0 0
  %666 = vmatpush1.bf16.msra.mxu0 %v635
  %667 = vmatprep.subr.bf16.mxu0 0
  %668 = vmatpush2.bf16.msra.mxu0 0
  %669 = vmatprep.subr.bf16.mxu0 0
  %670 = vmatpush2.bf16.msra.mxu0 0
  %671 = vmatprep.subr.bf16.mxu0 0
  %672 = vmatpush2.bf16.msra.mxu0 0
  %673 = vmatprep.subr.bf16.mxu0 0
  %674 = vmatpush2.bf16.msra.mxu0 0
  %675 = vmatprep.subr.bf16.mxu0 0
  %676 = vmatpush2.bf16.msra.mxu0 0
  %677 = vmatprep.subr.bf16.mxu0 0
  %678 = vmatpush2.bf16.msra.mxu0 0
  %679 = vmatprep.subr.bf16.mxu0 0
  %680 = vmatpush2.bf16.msra.mxu0 0
  %681 = vmatprep.subr.bf16.mxu0 0
  %682 = vmatpush2.bf16.msra.mxu0 0
  %683 = vmatprep.mubr.bf16.mxu0 0
  %684 = vmatmul.mubr.bf16.gmra.mxu0 %v581
  %v685 = vpop.f32.mrf.mxu0
  %v686 = vadd.f32 0.0, %v685
  %v687 = vpop.f32.mrf.mxu0
  %v688 = vpop.f32.mrf.mxu0
  %v689 = vadd.f32 0.0, %v688
  %v690 = vpop.f32.mrf.mxu0
  %691 = vmatprep.mubr.bf16.mxu0 0
  %692 = vmatmul.mubr.bf16.gmra.mxu0 %v582
  %v693 = vpop.f32.mrf.mxu0
  %v694 = vadd.f32 0.0, %v693
  %v695 = vpop.f32.mrf.mxu0
  %v696 = vpop.f32.mrf.mxu0
  %v697 = vadd.f32 0.0, %v696
  %v698 = vpop.f32.mrf.mxu0
  %699 = vmatprep.mubr.bf16.mxu0 0
  %700 = vmatmul.mubr.bf16.gmra.mxu0 %v583
  %v701 = vpop.f32.mrf.mxu0
  %v702 = vadd.f32 0.0, %v701
  %v703 = vpop.f32.mrf.mxu0
  %v704 = vpop.f32.mrf.mxu0
  %v705 = vadd.f32 0.0, %v704
  %v706 = vpop.f32.mrf.mxu0
  %707 = vmatprep.mubr.bf16.mxu0 0
  %708 = vmatmul.mubr.bf16.gmra.mxu0 %v584
  %v709 = vpop.f32.mrf.mxu0
  %v710 = vadd.f32 0.0, %v709
  %v711 = vpop.f32.mrf.mxu0
  %v712 = vpop.f32.mrf.mxu0
  %v713 = vadd.f32 0.0, %v712
  %v714 = vpop.f32.mrf.mxu0
  %715 = vmatprep.mubr.bf16.mxu0 0
  %716 = vmatmul.mubr.bf16.gmra.mxu0 %v585
  %v717 = vpop.f32.mrf.mxu0
  %v718 = vadd.f32 0.0, %v717
  %v719 = vpop.f32.mrf.mxu0
  %v720 = vpop.f32.mrf.mxu0
  %v721 = vadd.f32 0.0, %v720
  %v722 = vpop.f32.mrf.mxu0
  %723 = vdwg.mxu0
  %v724 = vadd.f32 %v533, %v686
  %v725 = vadd.f32 %v536, %v689
  %v726 = vadd.f32 %v541, %v694
  %v727 = vadd.f32 %v544, %v697
  %v728 = vadd.f32 %v549, %v702
  %v729 = vadd.f32 %v552, %v705
  %v730 = vadd.f32 %v557, %v710
  %v731 = vadd.f32 %v560, %v713
  %v732 = vadd.f32 %v565, %v718
  %v733 = vadd.f32 %v568, %v721
  %v734 = vld [vmem:[#allocation2 + $0x10] sm:$0xff]
  %v735 = vld [vmem:[#allocation2 + $0x18] sm:$0xff]
  %v736 = vld [vmem:[#allocation2 + $0x20] sm:$0xff]
  %v737 = vld [vmem:[#allocation2 + $0x28] sm:$0xff]
  %v738 = vld [vmem:[#allocation2 + $0x30] sm:$0xff]
  %v739 = vld [vmem:[#allocation2 + $0x38] sm:$0xff]
  %v740 = vld [vmem:[#allocation2 + $0x40] sm:$0xff]
  %v741 = vld [vmem:[#allocation2 + $0x48] sm:$0xff]
  %v742 = vld [vmem:[#allocation2 + $0x50] sm:$0xff]
  %v743 = vld [vmem:[#allocation2 + $0x58] sm:$0xff]
  %v744 = vpack.c.bf16 %v735, %v734
  %v745 = vpack.c.bf16 %v737, %v736
  %v746 = vpack.c.bf16 %v739, %v738
  %v747 = vpack.c.bf16 %v741, %v740
  %v748 = vpack.c.bf16 %v743, %v742
  %s749 = scalar_lea.vmem %s2, 192
  %v750 = vld [vmem:[%s749] sm:$0xf]
  %v751 = vld [vmem:[%s749 + $0x4] sm:$0xf]
  %v752 = vld [vmem:[%s749 + $0x8] sm:$0xf]
  %v753 = vld [vmem:[%s749 + $0xc] sm:$0xf]
  %v754 = vld [vmem:[%s749 + $0x10] sm:$0xf]
  %v755 = vld [vmem:[%s749 + $0x14] sm:$0xf]
  %v756 = vld [vmem:[%s749 + $0x18] sm:$0xf]
  %v757 = vld [vmem:[%s749 + $0x1c] sm:$0xf]
  %v758 = vld [vmem:[%s749 + $0x20] sm:$0xf]
  %v759 = vld [vmem:[%s749 + $0x24] sm:$0xf]
  %v760 = vld [vmem:[%s749 + $0x28] sm:$0xf]
  %v761 = vld [vmem:[%s749 + $0x2c] sm:$0xf]
  %v762 = vld [vmem:[%s749 + $0x30] sm:$0xf]
  %v763 = vld [vmem:[%s749 + $0x34] sm:$0xf]
  %v764 = vld [vmem:[%s749 + $0x38] sm:$0xf]
  %v765 = vld [vmem:[%s749 + $0x3c] sm:$0xf]
  %v782 = vunpack.c.l.b16 %v750
  %v783 = vunpack.c.l.b16 %v751
  %v784 = vunpack.c.l.b16 %v752
  %v785 = vunpack.c.l.b16 %v753
  %v786 = vunpack.c.l.b16 %v754
  %v787 = vunpack.c.l.b16 %v755
  %v788 = vunpack.c.l.b16 %v756
  %v789 = vunpack.c.l.b16 %v757
  %v790 = vunpack.c.l.b16 %v758
  %v791 = vunpack.c.l.b16 %v759
  %v792 = vunpack.c.l.b16 %v760
  %v793 = vunpack.c.l.b16 %v761
  %v794 = vunpack.c.l.b16 %v762
  %v795 = vunpack.c.l.b16 %v763
  %v796 = vunpack.c.l.b16 %v764
  %v797 = vunpack.c.l.b16 %v765
  %v798 = vpack.c.b16 %v783, %v782
  %v799 = vpack.c.b16 %v785, %v784
  %v800 = vpack.c.b16 %v787, %v786
  %v801 = vpack.c.b16 %v789, %v788
  %v802 = vpack.c.b16 %v791, %v790
  %v803 = vpack.c.b16 %v793, %v792
  %v804 = vpack.c.b16 %v795, %v794
  %v805 = vpack.c.b16 %v797, %v796
  %814 = vmatprep.subr.bf16.mxu0 0
  %815 = vmatpush1.bf16.msra.mxu0 %v805
  %816 = vmatprep.subr.bf16.mxu0 0
  %817 = vmatpush1.bf16.msra.mxu0 %v804
  %818 = vmatprep.subr.bf16.mxu0 0
  %819 = vmatpush1.bf16.msra.mxu0 %v803
  %820 = vmatprep.subr.bf16.mxu0 0
  %821 = vmatpush1.bf16.msra.mxu0 %v802
  %822 = vmatprep.subr.bf16.mxu0 0
  %823 = vmatpush1.bf16.msra.mxu0 %v801
  %824 = vmatprep.subr.bf16.mxu0 0
  %825 = vmatpush1.bf16.msra.mxu0 %v800
  %826 = vmatprep.subr.bf16.mxu0 0
  %827 = vmatpush1.bf16.msra.mxu0 %v799
  %828 = vmatprep.subr.bf16.mxu0 0
  %829 = vmatpush1.bf16.msra.mxu0 %v798
  %830 = vmatprep.subr.bf16.mxu0 0
  %831 = vmatpush2.bf16.msra.mxu0 0
  %832 = vmatprep.subr.bf16.mxu0 0
  %833 = vmatpush2.bf16.msra.mxu0 0
  %834 = vmatprep.subr.bf16.mxu0 0
  %835 = vmatpush2.bf16.msra.mxu0 0
  %836 = vmatprep.subr.bf16.mxu0 0
  %837 = vmatpush2.bf16.msra.mxu0 0
  %838 = vmatprep.subr.bf16.mxu0 0
  %839 = vmatpush2.bf16.msra.mxu0 0
  %840 = vmatprep.subr.bf16.mxu0 0
  %841 = vmatpush2.bf16.msra.mxu0 0
  %842 = vmatprep.subr.bf16.mxu0 0
  %843 = vmatpush2.bf16.msra.mxu0 0
  %844 = vmatprep.subr.bf16.mxu0 0
  %845 = vmatpush2.bf16.msra.mxu0 0
  %846 = vmatprep.mubr.bf16.mxu0 0
  %847 = vmatmul.mubr.bf16.gmra.mxu0 %v744
  %v848 = vpop.f32.mrf.mxu0
  %v849 = vadd.f32 0.0, %v848
  %v850 = vpop.f32.mrf.mxu0
  %v851 = vpop.f32.mrf.mxu0
  %v852 = vadd.f32 0.0, %v851
  %v853 = vpop.f32.mrf.mxu0
  %854 = vmatprep.mubr.bf16.mxu0 0
  %855 = vmatmul.mubr.bf16.gmra.mxu0 %v745
  %v856 = vpop.f32.mrf.mxu0
  %v857 = vadd.f32 0.0, %v856
  %v858 = vpop.f32.mrf.mxu0
  %v859 = vpop.f32.mrf.mxu0
  %v860 = vadd.f32 0.0, %v859
  %v861 = vpop.f32.mrf.mxu0
  %862 = vmatprep.mubr.bf16.mxu0 0
  %863 = vmatmul.mubr.bf16.gmra.mxu0 %v746
  %v864 = vpop.f32.mrf.mxu0
  %v865 = vadd.f32 0.0, %v864
  %v866 = vpop.f32.mrf.mxu0
  %v867 = vpop.f32.mrf.mxu0
  %v868 = vadd.f32 0.0, %v867
  %v869 = vpop.f32.mrf.mxu0
  %870 = vmatprep.mubr.bf16.mxu0 0
  %871 = vmatmul.mubr.bf16.gmra.mxu0 %v747
  %v872 = vpop.f32.mrf.mxu0
  %v873 = vadd.f32 0.0, %v872
  %v874 = vpop.f32.mrf.mxu0
  %v875 = vpop.f32.mrf.mxu0
  %v876 = vadd.f32 0.0, %v875
  %v877 = vpop.f32.mrf.mxu0
  %878 = vmatprep.mubr.bf16.mxu0 0
  %879 = vmatmul.mubr.bf16.gmra.mxu0 %v748
  %v880 = vpop.f32.mrf.mxu0
  %v881 = vadd.f32 0.0, %v880
  %v882 = vpop.f32.mrf.mxu0
  %v883 = vpop.f32.mrf.mxu0
  %v884 = vadd.f32 0.0, %v883
  %v885 = vpop.f32.mrf.mxu0
  %886 = vdwg.mxu0
  %v887 = vadd.f32 %v724, %v849
  %v888 = vadd.f32 %v725, %v852
  %v889 = vadd.f32 %v726, %v857
  %v890 = vadd.f32 %v727, %v860
  %v891 = vadd.f32 %v728, %v865
  %v892 = vadd.f32 %v729, %v868
  %v893 = vadd.f32 %v730, %v873
  %v894 = vadd.f32 %v731, %v876
  %v895 = vadd.f32 %v732, %v881
  %v896 = vadd.f32 %v733, %v884
  %v897 = vld [vmem:[#allocation2 + $0x11] sm:$0xff]
  %v898 = vld [vmem:[#allocation2 + $0x19] sm:$0xff]
  %v899 = vld [vmem:[#allocation2 + $0x21] sm:$0xff]
  %v900 = vld [vmem:[#allocation2 + $0x29] sm:$0xff]
  %v901 = vld [vmem:[#allocation2 + $0x31] sm:$0xff]
  %v902 = vld [vmem:[#allocation2 + $0x39] sm:$0xff]
  %v903 = vld [vmem:[#allocation2 + $0x41] sm:$0xff]
  %v904 = vld [vmem:[#allocation2 + $0x49] sm:$0xff]
  %v905 = vld [vmem:[#allocation2 + $0x51] sm:$0xff]
  %v906 = vld [vmem:[#allocation2 + $0x59] sm:$0xff]
  %v907 = vpack.c.bf16 %v898, %v897
  %v908 = vpack.c.bf16 %v900, %v899
  %v909 = vpack.c.bf16 %v902, %v901
  %v910 = vpack.c.bf16 %v904, %v903
  %v911 = vpack.c.bf16 %v906, %v905
  %s912 = scalar_lea.vmem %s2, 256
  %v913 = vld [vmem:[%s912] sm:$0xf]
  %v914 = vld [vmem:[%s912 + $0x4] sm:$0xf]
  %v915 = vld [vmem:[%s912 + $0x8] sm:$0xf]
  %v916 = vld [vmem:[%s912 + $0xc] sm:$0xf]
  %v917 = vld [vmem:[%s912 + $0x10] sm:$0xf]
  %v918 = vld [vmem:[%s912 + $0x14] sm:$0xf]
  %v919 = vld [vmem:[%s912 + $0x18] sm:$0xf]
  %v920 = vld [vmem:[%s912 + $0x1c] sm:$0xf]
  %v921 = vld [vmem:[%s912 + $0x20] sm:$0xf]
  %v922 = vld [vmem:[%s912 + $0x24] sm:$0xf]
  %v923 = vld [vmem:[%s912 + $0x28] sm:$0xf]
  %v924 = vld [vmem:[%s912 + $0x2c] sm:$0xf]
  %v925 = vld [vmem:[%s912 + $0x30] sm:$0xf]
  %v926 = vld [vmem:[%s912 + $0x34] sm:$0xf]
  %v927 = vld [vmem:[%s912 + $0x38] sm:$0xf]
  %v928 = vld [vmem:[%s912 + $0x3c] sm:$0xf]
  %v945 = vunpack.c.l.b16 %v913
  %v946 = vunpack.c.l.b16 %v914
  %v947 = vunpack.c.l.b16 %v915
  %v948 = vunpack.c.l.b16 %v916
  %v949 = vunpack.c.l.b16 %v917
  %v950 = vunpack.c.l.b16 %v918
  %v951 = vunpack.c.l.b16 %v919
  %v952 = vunpack.c.l.b16 %v920
  %v953 = vunpack.c.l.b16 %v921
  %v954 = vunpack.c.l.b16 %v922
  %v955 = vunpack.c.l.b16 %v923
  %v956 = vunpack.c.l.b16 %v924
  %v957 = vunpack.c.l.b16 %v925
  %v958 = vunpack.c.l.b16 %v926
  %v959 = vunpack.c.l.b16 %v927
  %v960 = vunpack.c.l.b16 %v928
  %v961 = vpack.c.b16 %v946, %v945
  %v962 = vpack.c.b16 %v948, %v947
  %v963 = vpack.c.b16 %v950, %v949
  %v964 = vpack.c.b16 %v952, %v951
  %v965 = vpack.c.b16 %v954, %v953
  %v966 = vpack.c.b16 %v956, %v955
  %v967 = vpack.c.b16 %v958, %v957
  %v968 = vpack.c.b16 %v960, %v959
  %977 = vmatprep.subr.bf16.mxu0 0
  %978 = vmatpush1.bf16.msra.mxu0 %v968
  %979 = vmatprep.subr.bf16.mxu0 0
  %980 = vmatpush1.bf16.msra.mxu0 %v967
  %981 = vmatprep.subr.bf16.mxu0 0
  %982 = vmatpush1.bf16.msra.mxu0 %v966
  %983 = vmatprep.subr.bf16.mxu0 0
  %984 = vmatpush1.bf16.msra.mxu0 %v965
  %985 = vmatprep.subr.bf16.mxu0 0
  %986 = vmatpush1.bf16.msra.mxu0 %v964
  %987 = vmatprep.subr.bf16.mxu0 0
  %988 = vmatpush1.bf16.msra.mxu0 %v963
  %989 = vmatprep.subr.bf16.mxu0 0
  %990 = vmatpush1.bf16.msra.mxu0 %v962
  %991 = vmatprep.subr.bf16.mxu0 0
  %992 = vmatpush1.bf16.msra.mxu0 %v961
  %993 = vmatprep.subr.bf16.mxu0 0
  %994 = vmatpush2.bf16.msra.mxu0 0
  %995 = vmatprep.subr.bf16.mxu0 0
  %996 = vmatpush2.bf16.msra.mxu0 0
  %997 = vmatprep.subr.bf16.mxu0 0
  %998 = vmatpush2.bf16.msra.mxu0 0
  %999 = vmatprep.subr.bf16.mxu0 0
  %1000 = vmatpush2.bf16.msra.mxu0 0
  %1001 = vmatprep.subr.bf16.mxu0 0
  %1002 = vmatpush2.bf16.msra.mxu0 0
  %1003 = vmatprep.subr.bf16.mxu0 0
  %1004 = vmatpush2.bf16.msra.mxu0 0
  %1005 = vmatprep.subr.bf16.mxu0 0
  %1006 = vmatpush2.bf16.msra.mxu0 0
  %1007 = vmatprep.subr.bf16.mxu0 0
  %1008 = vmatpush2.bf16.msra.mxu0 0
  %1009 = vmatprep.mubr.bf16.mxu0 0
  %1010 = vmatmul.mubr.bf16.gmra.mxu0 %v907
  %v1011 = vpop.f32.mrf.mxu0
  %v1012 = vadd.f32 0.0, %v1011
  %v1013 = vpop.f32.mrf.mxu0
  %v1014 = vpop.f32.mrf.mxu0
  %v1015 = vadd.f32 0.0, %v1014
  %v1016 = vpop.f32.mrf.mxu0
  %1017 = vmatprep.mubr.bf16.mxu0 0
  %1018 = vmatmul.mubr.bf16.gmra.mxu0 %v908
  %v1019 = vpop.f32.mrf.mxu0
  %v1020 = vadd.f32 0.0, %v1019
  %v1021 = vpop.f32.mrf.mxu0
  %v1022 = vpop.f32.mrf.mxu0
  %v1023 = vadd.f32 0.0, %v1022
  %v1024 = vpop.f32.mrf.mxu0
  %1025 = vmatprep.mubr.bf16.mxu0 0
  %1026 = vmatmul.mubr.bf16.gmra.mxu0 %v909
  %v1027 = vpop.f32.mrf.mxu0
  %v1028 = vadd.f32 0.0, %v1027
  %v1029 = vpop.f32.mrf.mxu0
  %v1030 = vpop.f32.mrf.mxu0
  %v1031 = vadd.f32 0.0, %v1030
  %v1032 = vpop.f32.mrf.mxu0
  %1033 = vmatprep.mubr.bf16.mxu0 0
  %1034 = vmatmul.mubr.bf16.gmra.mxu0 %v910
  %v1035 = vpop.f32.mrf.mxu0
  %v1036 = vadd.f32 0.0, %v1035
  %v1037 = vpop.f32.mrf.mxu0
  %v1038 = vpop.f32.mrf.mxu0
  %v1039 = vadd.f32 0.0, %v1038
  %v1040 = vpop.f32.mrf.mxu0
  %1041 = vmatprep.mubr.bf16.mxu0 0
  %1042 = vmatmul.mubr.bf16.gmra.mxu0 %v911
  %v1043 = vpop.f32.mrf.mxu0
  %v1044 = vadd.f32 0.0, %v1043
  %v1045 = vpop.f32.mrf.mxu0
  %v1046 = vpop.f32.mrf.mxu0
  %v1047 = vadd.f32 0.0, %v1046
  %v1048 = vpop.f32.mrf.mxu0
  %1049 = vdwg.mxu0
  %v1050 = vadd.f32 %v887, %v1012
  %v1051 = vadd.f32 %v888, %v1015
  %v1052 = vadd.f32 %v889, %v1020
  %v1053 = vadd.f32 %v890, %v1023
  %v1054 = vadd.f32 %v891, %v1028
  %v1055 = vadd.f32 %v892, %v1031
  %v1056 = vadd.f32 %v893, %v1036
  %v1057 = vadd.f32 %v894, %v1039
  %v1058 = vadd.f32 %v895, %v1044
  %v1059 = vadd.f32 %v896, %v1047
  %v1060 = vld [vmem:[#allocation2 + $0x12] sm:$0xff]
  %v1061 = vld [vmem:[#allocation2 + $0x1a] sm:$0xff]
  %v1062 = vld [vmem:[#allocation2 + $0x22] sm:$0xff]
  %v1063 = vld [vmem:[#allocation2 + $0x2a] sm:$0xff]
  %v1064 = vld [vmem:[#allocation2 + $0x32] sm:$0xff]
  %v1065 = vld [vmem:[#allocation2 + $0x3a] sm:$0xff]
  %v1066 = vld [vmem:[#allocation2 + $0x42] sm:$0xff]
  %v1067 = vld [vmem:[#allocation2 + $0x4a] sm:$0xff]
  %v1068 = vld [vmem:[#allocation2 + $0x52] sm:$0xff]
  %v1069 = vld [vmem:[#allocation2 + $0x5a] sm:$0xff]
  %v1070 = vpack.c.bf16 %v1061, %v1060
  %v1071 = vpack.c.bf16 %v1063, %v1062
  %v1072 = vpack.c.bf16 %v1065, %v1064
  %v1073 = vpack.c.bf16 %v1067, %v1066
  %v1074 = vpack.c.bf16 %v1069, %v1068
  %s1075 = scalar_lea.vmem %s2, 320
  %v1076 = vld [vmem:[%s1075] sm:$0xf]
  %v1077 = vld [vmem:[%s1075 + $0x4] sm:$0xf]
  %v1078 = vld [vmem:[%s1075 + $0x8] sm:$0xf]
  %v1079 = vld [vmem:[%s1075 + $0xc] sm:$0xf]
  %v1080 = vld [vmem:[%s1075 + $0x10] sm:$0xf]
  %v1081 = vld [vmem:[%s1075 + $0x14] sm:$0xf]
  %v1082 = vld [vmem:[%s1075 + $0x18] sm:$0xf]
  %v1083 = vld [vmem:[%s1075 + $0x1c] sm:$0xf]
  %v1084 = vld [vmem:[%s1075 + $0x20] sm:$0xf]
  %v1085 = vld [vmem:[%s1075 + $0x24] sm:$0xf]
  %v1086 = vld [vmem:[%s1075 + $0x28] sm:$0xf]
  %v1087 = vld [vmem:[%s1075 + $0x2c] sm:$0xf]
  %v1088 = vld [vmem:[%s1075 + $0x30] sm:$0xf]
  %v1089 = vld [vmem:[%s1075 + $0x34] sm:$0xf]
  %v1090 = vld [vmem:[%s1075 + $0x38] sm:$0xf]
  %v1091 = vld [vmem:[%s1075 + $0x3c] sm:$0xf]
  %v1108 = vunpack.c.l.b16 %v1076
  %v1109 = vunpack.c.l.b16 %v1077
  %v1110 = vunpack.c.l.b16 %v1078
  %v1111 = vunpack.c.l.b16 %v1079
  %v1112 = vunpack.c.l.b16 %v1080
  %v1113 = vunpack.c.l.b16 %v1081
  %v1114 = vunpack.c.l.b16 %v1082
  %v1115 = vunpack.c.l.b16 %v1083
  %v1116 = vunpack.c.l.b16 %v1084
  %v1117 = vunpack.c.l.b16 %v1085
  %v1118 = vunpack.c.l.b16 %v1086
  %v1119 = vunpack.c.l.b16 %v1087
  %v1120 = vunpack.c.l.b16 %v1088
  %v1121 = vunpack.c.l.b16 %v1089
  %v1122 = vunpack.c.l.b16 %v1090
  %v1123 = vunpack.c.l.b16 %v1091
  %v1124 = vpack.c.b16 %v1109, %v1108
  %v1125 = vpack.c.b16 %v1111, %v1110
  %v1126 = vpack.c.b16 %v1113, %v1112
  %v1127 = vpack.c.b16 %v1115, %v1114
  %v1128 = vpack.c.b16 %v1117, %v1116
  %v1129 = vpack.c.b16 %v1119, %v1118
  %v1130 = vpack.c.b16 %v1121, %v1120
  %v1131 = vpack.c.b16 %v1123, %v1122
  %1140 = vmatprep.subr.bf16.mxu0 0
  %1141 = vmatpush1.bf16.msra.mxu0 %v1131
  %1142 = vmatprep.subr.bf16.mxu0 0
  %1143 = vmatpush1.bf16.msra.mxu0 %v1130
  %1144 = vmatprep.subr.bf16.mxu0 0
  %1145 = vmatpush1.bf16.msra.mxu0 %v1129
  %1146 = vmatprep.subr.bf16.mxu0 0
  %1147 = vmatpush1.bf16.msra.mxu0 %v1128
  %1148 = vmatprep.subr.bf16.mxu0 0
  %1149 = vmatpush1.bf16.msra.mxu0 %v1127
  %1150 = vmatprep.subr.bf16.mxu0 0
  %1151 = vmatpush1.bf16.msra.mxu0 %v1126
  %1152 = vmatprep.subr.bf16.mxu0 0
  %1153 = vmatpush1.bf16.msra.mxu0 %v1125
  %1154 = vmatprep.subr.bf16.mxu0 0
  %1155 = vmatpush1.bf16.msra.mxu0 %v1124
  %1156 = vmatprep.subr.bf16.mxu0 0
  %1157 = vmatpush2.bf16.msra.mxu0 0
  %1158 = vmatprep.subr.bf16.mxu0 0
  %1159 = vmatpush2.bf16.msra.mxu0 0
  %1160 = vmatprep.subr.bf16.mxu0 0
  %1161 = vmatpush2.bf16.msra.mxu0 0
  %1162 = vmatprep.subr.bf16.mxu0 0
  %1163 = vmatpush2.bf16.msra.mxu0 0
  %1164 = vmatprep.subr.bf16.mxu0 0
  %1165 = vmatpush2.bf16.msra.mxu0 0
  %1166 = vmatprep.subr.bf16.mxu0 0
  %1167 = vmatpush2.bf16.msra.mxu0 0
  %1168 = vmatprep.subr.bf16.mxu0 0
  %1169 = vmatpush2.bf16.msra.mxu0 0
  %1170 = vmatprep.subr.bf16.mxu0 0
  %1171 = vmatpush2.bf16.msra.mxu0 0
  %1172 = vmatprep.mubr.bf16.mxu0 0
  %1173 = vmatmul.mubr.bf16.gmra.mxu0 %v1070
  %v1174 = vpop.f32.mrf.mxu0
  %v1175 = vadd.f32 0.0, %v1174
  %v1176 = vpop.f32.mrf.mxu0
  %v1177 = vpop.f32.mrf.mxu0
  %v1178 = vadd.f32 0.0, %v1177
  %v1179 = vpop.f32.mrf.mxu0
  %1180 = vmatprep.mubr.bf16.mxu0 0
  %1181 = vmatmul.mubr.bf16.gmra.mxu0 %v1071
  %v1182 = vpop.f32.mrf.mxu0
  %v1183 = vadd.f32 0.0, %v1182
  %v1184 = vpop.f32.mrf.mxu0
  %v1185 = vpop.f32.mrf.mxu0
  %v1186 = vadd.f32 0.0, %v1185
  %v1187 = vpop.f32.mrf.mxu0
  %1188 = vmatprep.mubr.bf16.mxu0 0
  %1189 = vmatmul.mubr.bf16.gmra.mxu0 %v1072
  %v1190 = vpop.f32.mrf.mxu0
  %v1191 = vadd.f32 0.0, %v1190
  %v1192 = vpop.f32.mrf.mxu0
  %v1193 = vpop.f32.mrf.mxu0
  %v1194 = vadd.f32 0.0, %v1193
  %v1195 = vpop.f32.mrf.mxu0
  %1196 = vmatprep.mubr.bf16.mxu0 0
  %1197 = vmatmul.mubr.bf16.gmra.mxu0 %v1073
  %v1198 = vpop.f32.mrf.mxu0
  %v1199 = vadd.f32 0.0, %v1198
  %v1200 = vpop.f32.mrf.mxu0
  %v1201 = vpop.f32.mrf.mxu0
  %v1202 = vadd.f32 0.0, %v1201
  %v1203 = vpop.f32.mrf.mxu0
  %1204 = vmatprep.mubr.bf16.mxu0 0
  %1205 = vmatmul.mubr.bf16.gmra.mxu0 %v1074
  %v1206 = vpop.f32.mrf.mxu0
  %v1207 = vadd.f32 0.0, %v1206
  %v1208 = vpop.f32.mrf.mxu0
  %v1209 = vpop.f32.mrf.mxu0
  %v1210 = vadd.f32 0.0, %v1209
  %v1211 = vpop.f32.mrf.mxu0
  %1212 = vdwg.mxu0
  %v1213 = vadd.f32 %v1050, %v1175
  %v1214 = vadd.f32 %v1051, %v1178
  %v1215 = vadd.f32 %v1052, %v1183
  %v1216 = vadd.f32 %v1053, %v1186
  %v1217 = vadd.f32 %v1054, %v1191
  %v1218 = vadd.f32 %v1055, %v1194
  %v1219 = vadd.f32 %v1056, %v1199
  %v1220 = vadd.f32 %v1057, %v1202
  %v1221 = vadd.f32 %v1058, %v1207
  %v1222 = vadd.f32 %v1059, %v1210
  %v1223 = vld [vmem:[#allocation2 + $0x20] sm:$0xff]
  %v1224 = vld [vmem:[#allocation2 + $0x28] sm:$0xff]
  %v1225 = vld [vmem:[#allocation2 + $0x30] sm:$0xff]
  %v1226 = vld [vmem:[#allocation2 + $0x38] sm:$0xff]
  %v1227 = vld [vmem:[#allocation2 + $0x40] sm:$0xff]
  %v1228 = vld [vmem:[#allocation2 + $0x48] sm:$0xff]
  %v1229 = vld [vmem:[#allocation2 + $0x50] sm:$0xff]
  %v1230 = vld [vmem:[#allocation2 + $0x58] sm:$0xff]
  %v1231 = vld [vmem:[#allocation2 + $0x60] sm:$0xff]
  %v1232 = vld [vmem:[#allocation2 + $0x68] sm:$0xff]
  %v1233 = vpack.c.bf16 %v1224, %v1223
  %v1234 = vpack.c.bf16 %v1226, %v1225
  %v1235 = vpack.c.bf16 %v1228, %v1227
  %v1236 = vpack.c.bf16 %v1230, %v1229
  %v1237 = vpack.c.bf16 %v1232, %v1231
  %s1238 = scalar_lea.vmem %s2, 384
  %v1239 = vld [vmem:[%s1238] sm:$0xf]
  %v1240 = vld [vmem:[%s1238 + $0x4] sm:$0xf]
  %v1241 = vld [vmem:[%s1238 + $0x8] sm:$0xf]
  %v1242 = vld [vmem:[%s1238 + $0xc] sm:$0xf]
  %v1243 = vld [vmem:[%s1238 + $0x10] sm:$0xf]
  %v1244 = vld [vmem:[%s1238 + $0x14] sm:$0xf]
  %v1245 = vld [vmem:[%s1238 + $0x18] sm:$0xf]
  %v1246 = vld [vmem:[%s1238 + $0x1c] sm:$0xf]
  %v1247 = vld [vmem:[%s1238 + $0x20] sm:$0xf]
  %v1248 = vld [vmem:[%s1238 + $0x24] sm:$0xf]
  %v1249 = vld [vmem:[%s1238 + $0x28] sm:$0xf]
  %v1250 = vld [vmem:[%s1238 + $0x2c] sm:$0xf]
  %v1251 = vld [vmem:[%s1238 + $0x30] sm:$0xf]
  %v1252 = vld [vmem:[%s1238 + $0x34] sm:$0xf]
  %v1253 = vld [vmem:[%s1238 + $0x38] sm:$0xf]
  %v1254 = vld [vmem:[%s1238 + $0x3c] sm:$0xf]
  %v1271 = vunpack.c.l.b16 %v1239
  %v1272 = vunpack.c.l.b16 %v1240
  %v1273 = vunpack.c.l.b16 %v1241
  %v1274 = vunpack.c.l.b16 %v1242
  %v1275 = vunpack.c.l.b16 %v1243
  %v1276 = vunpack.c.l.b16 %v1244
  %v1277 = vunpack.c.l.b16 %v1245
  %v1278 = vunpack.c.l.b16 %v1246
  %v1279 = vunpack.c.l.b16 %v1247
  %v1280 = vunpack.c.l.b16 %v1248
  %v1281 = vunpack.c.l.b16 %v1249
  %v1282 = vunpack.c.l.b16 %v1250
  %v1283 = vunpack.c.l.b16 %v1251
  %v1284 = vunpack.c.l.b16 %v1252
  %v1285 = vunpack.c.l.b16 %v1253
  %v1286 = vunpack.c.l.b16 %v1254
  %v1287 = vpack.c.b16 %v1272, %v1271
  %v1288 = vpack.c.b16 %v1274, %v1273
  %v1289 = vpack.c.b16 %v1276, %v1275
  %v1290 = vpack.c.b16 %v1278, %v1277
  %v1291 = vpack.c.b16 %v1280, %v1279
  %v1292 = vpack.c.b16 %v1282, %v1281
  %v1293 = vpack.c.b16 %v1284, %v1283
  %v1294 = vpack.c.b16 %v1286, %v1285
  %1303 = vmatprep.subr.bf16.mxu0 0
  %1304 = vmatpush1.bf16.msra.mxu0 %v1294
  %1305 = vmatprep.subr.bf16.mxu0 0
  %1306 = vmatpush1.bf16.msra.mxu0 %v1293
  %1307 = vmatprep.subr.bf16.mxu0 0
  %1308 = vmatpush1.bf16.msra.mxu0 %v1292
  %1309 = vmatprep.subr.bf16.mxu0 0
  %1310 = vmatpush1.bf16.msra.mxu0 %v1291
  %1311 = vmatprep.subr.bf16.mxu0 0
  %1312 = vmatpush1.bf16.msra.mxu0 %v1290
  %1313 = vmatprep.subr.bf16.mxu0 0
  %1314 = vmatpush1.bf16.msra.mxu0 %v1289
  %1315 = vmatprep.subr.bf16.mxu0 0
  %1316 = vmatpush1.bf16.msra.mxu0 %v1288
  %1317 = vmatprep.subr.bf16.mxu0 0
  %1318 = vmatpush1.bf16.msra.mxu0 %v1287
  %1319 = vmatprep.subr.bf16.mxu0 0
  %1320 = vmatpush2.bf16.msra.mxu0 0
  %1321 = vmatprep.subr.bf16.mxu0 0
  %1322 = vmatpush2.bf16.msra.mxu0 0
  %1323 = vmatprep.subr.bf16.mxu0 0
  %1324 = vmatpush2.bf16.msra.mxu0 0
  %1325 = vmatprep.subr.bf16.mxu0 0
  %1326 = vmatpush2.bf16.msra.mxu0 0
  %1327 = vmatprep.subr.bf16.mxu0 0
  %1328 = vmatpush2.bf16.msra.mxu0 0
  %1329 = vmatprep.subr.bf16.mxu0 0
  %1330 = vmatpush2.bf16.msra.mxu0 0
  %1331 = vmatprep.subr.bf16.mxu0 0
  %1332 = vmatpush2.bf16.msra.mxu0 0
  %1333 = vmatprep.subr.bf16.mxu0 0
  %1334 = vmatpush2.bf16.msra.mxu0 0
  %1335 = vmatprep.mubr.bf16.mxu0 0
  %1336 = vmatmul.mubr.bf16.gmra.mxu0 %v1233
  %v1337 = vpop.f32.mrf.mxu0
  %v1338 = vadd.f32 0.0, %v1337
  %v1339 = vpop.f32.mrf.mxu0
  %v1340 = vpop.f32.mrf.mxu0
  %v1341 = vadd.f32 0.0, %v1340
  %v1342 = vpop.f32.mrf.mxu0
  %1343 = vmatprep.mubr.bf16.mxu0 0
  %1344 = vmatmul.mubr.bf16.gmra.mxu0 %v1234
  %v1345 = vpop.f32.mrf.mxu0
  %v1346 = vadd.f32 0.0, %v1345
  %v1347 = vpop.f32.mrf.mxu0
  %v1348 = vpop.f32.mrf.mxu0
  %v1349 = vadd.f32 0.0, %v1348
  %v1350 = vpop.f32.mrf.mxu0
  %1351 = vmatprep.mubr.bf16.mxu0 0
  %1352 = vmatmul.mubr.bf16.gmra.mxu0 %v1235
  %v1353 = vpop.f32.mrf.mxu0
  %v1354 = vadd.f32 0.0, %v1353
  %v1355 = vpop.f32.mrf.mxu0
  %v1356 = vpop.f32.mrf.mxu0
  %v1357 = vadd.f32 0.0, %v1356
  %v1358 = vpop.f32.mrf.mxu0
  %1359 = vmatprep.mubr.bf16.mxu0 0
  %1360 = vmatmul.mubr.bf16.gmra.mxu0 %v1236
  %v1361 = vpop.f32.mrf.mxu0
  %v1362 = vadd.f32 0.0, %v1361
  %v1363 = vpop.f32.mrf.mxu0
  %v1364 = vpop.f32.mrf.mxu0
  %v1365 = vadd.f32 0.0, %v1364
  %v1366 = vpop.f32.mrf.mxu0
  %1367 = vmatprep.mubr.bf16.mxu0 0
  %1368 = vmatmul.mubr.bf16.gmra.mxu0 %v1237
  %v1369 = vpop.f32.mrf.mxu0
  %v1370 = vadd.f32 0.0, %v1369
  %v1371 = vpop.f32.mrf.mxu0
  %v1372 = vpop.f32.mrf.mxu0
  %v1373 = vadd.f32 0.0, %v1372
  %v1374 = vpop.f32.mrf.mxu0
  %1375 = vdwg.mxu0
  %v1376 = vadd.f32 %v1213, %v1338
  %v1377 = vadd.f32 %v1214, %v1341
  %v1378 = vadd.f32 %v1215, %v1346
  %v1379 = vadd.f32 %v1216, %v1349
  %v1380 = vadd.f32 %v1217, %v1354
  %v1381 = vadd.f32 %v1218, %v1357
  %v1382 = vadd.f32 %v1219, %v1362
  %v1383 = vadd.f32 %v1220, %v1365
  %v1384 = vadd.f32 %v1221, %v1370
  %v1385 = vadd.f32 %v1222, %v1373
  %v1386 = vld [vmem:[#allocation2 + $0x21] sm:$0xff]
  %v1387 = vld [vmem:[#allocation2 + $0x29] sm:$0xff]
  %v1388 = vld [vmem:[#allocation2 + $0x31] sm:$0xff]
  %v1389 = vld [vmem:[#allocation2 + $0x39] sm:$0xff]
  %v1390 = vld [vmem:[#allocation2 + $0x41] sm:$0xff]
  %v1391 = vld [vmem:[#allocation2 + $0x49] sm:$0xff]
  %v1392 = vld [vmem:[#allocation2 + $0x51] sm:$0xff]
  %v1393 = vld [vmem:[#allocation2 + $0x59] sm:$0xff]
  %v1394 = vld [vmem:[#allocation2 + $0x61] sm:$0xff]
  %v1395 = vld [vmem:[#allocation2 + $0x69] sm:$0xff]
  %v1396 = vpack.c.bf16 %v1387, %v1386
  %v1397 = vpack.c.bf16 %v1389, %v1388
  %v1398 = vpack.c.bf16 %v1391, %v1390
  %v1399 = vpack.c.bf16 %v1393, %v1392
  %v1400 = vpack.c.bf16 %v1395, %v1394
  %s1401 = scalar_lea.vmem %s2, 448
  %v1402 = vld [vmem:[%s1401] sm:$0xf]
  %v1403 = vld [vmem:[%s1401 + $0x4] sm:$0xf]
  %v1404 = vld [vmem:[%s1401 + $0x8] sm:$0xf]
  %v1405 = vld [vmem:[%s1401 + $0xc] sm:$0xf]
  %v1406 = vld [vmem:[%s1401 + $0x10] sm:$0xf]
  %v1407 = vld [vmem:[%s1401 + $0x14] sm:$0xf]
  %v1408 = vld [vmem:[%s1401 + $0x18] sm:$0xf]
  %v1409 = vld [vmem:[%s1401 + $0x1c] sm:$0xf]
  %v1410 = vld [vmem:[%s1401 + $0x20] sm:$0xf]
  %v1411 = vld [vmem:[%s1401 + $0x24] sm:$0xf]
  %v1412 = vld [vmem:[%s1401 + $0x28] sm:$0xf]
  %v1413 = vld [vmem:[%s1401 + $0x2c] sm:$0xf]
  %v1414 = vld [vmem:[%s1401 + $0x30] sm:$0xf]
  %v1415 = vld [vmem:[%s1401 + $0x34] sm:$0xf]
  %v1416 = vld [vmem:[%s1401 + $0x38] sm:$0xf]
  %v1417 = vld [vmem:[%s1401 + $0x3c] sm:$0xf]
  %v1434 = vunpack.c.l.b16 %v1402
  %v1435 = vunpack.c.l.b16 %v1403
  %v1436 = vunpack.c.l.b16 %v1404
  %v1437 = vunpack.c.l.b16 %v1405
  %v1438 = vunpack.c.l.b16 %v1406
  %v1439 = vunpack.c.l.b16 %v1407
  %v1440 = vunpack.c.l.b16 %v1408
  %v1441 = vunpack.c.l.b16 %v1409
  %v1442 = vunpack.c.l.b16 %v1410
  %v1443 = vunpack.c.l.b16 %v1411
  %v1444 = vunpack.c.l.b16 %v1412
  %v1445 = vunpack.c.l.b16 %v1413
  %v1446 = vunpack.c.l.b16 %v1414
  %v1447 = vunpack.c.l.b16 %v1415
  %v1448 = vunpack.c.l.b16 %v1416
  %v1449 = vunpack.c.l.b16 %v1417
  %v1450 = vpack.c.b16 %v1435, %v1434
  %v1451 = vpack.c.b16 %v1437, %v1436
  %v1452 = vpack.c.b16 %v1439, %v1438
  %v1453 = vpack.c.b16 %v1441, %v1440
  %v1454 = vpack.c.b16 %v1443, %v1442
  %v1455 = vpack.c.b16 %v1445, %v1444
  %v1456 = vpack.c.b16 %v1447, %v1446
  %v1457 = vpack.c.b16 %v1449, %v1448
  %1466 = vmatprep.subr.bf16.mxu0 0
  %1467 = vmatpush1.bf16.msra.mxu0 %v1457
  %1468 = vmatprep.subr.bf16.mxu0 0
  %1469 = vmatpush1.bf16.msra.mxu0 %v1456
  %1470 = vmatprep.subr.bf16.mxu0 0
  %1471 = vmatpush1.bf16.msra.mxu0 %v1455
  %1472 = vmatprep.subr.bf16.mxu0 0
  %1473 = vmatpush1.bf16.msra.mxu0 %v1454
  %1474 = vmatprep.subr.bf16.mxu0 0
  %1475 = vmatpush1.bf16.msra.mxu0 %v1453
  %1476 = vmatprep.subr.bf16.mxu0 0
  %1477 = vmatpush1.bf16.msra.mxu0 %v1452
  %1478 = vmatprep.subr.bf16.mxu0 0
  %1479 = vmatpush1.bf16.msra.mxu0 %v1451
  %1480 = vmatprep.subr.bf16.mxu0 0
  %1481 = vmatpush1.bf16.msra.mxu0 %v1450
  %1482 = vmatprep.subr.bf16.mxu0 0
  %1483 = vmatpush2.bf16.msra.mxu0 0
  %1484 = vmatprep.subr.bf16.mxu0 0
  %1485 = vmatpush2.bf16.msra.mxu0 0
  %1486 = vmatprep.subr.bf16.mxu0 0
  %1487 = vmatpush2.bf16.msra.mxu0 0
  %1488 = vmatprep.subr.bf16.mxu0 0
  %1489 = vmatpush2.bf16.msra.mxu0 0
  %1490 = vmatprep.subr.bf16.mxu0 0
  %1491 = vmatpush2.bf16.msra.mxu0 0
  %1492 = vmatprep.subr.bf16.mxu0 0
  %1493 = vmatpush2.bf16.msra.mxu0 0
  %1494 = vmatprep.subr.bf16.mxu0 0
  %1495 = vmatpush2.bf16.msra.mxu0 0
  %1496 = vmatprep.subr.bf16.mxu0 0
  %1497 = vmatpush2.bf16.msra.mxu0 0
  %1498 = vmatprep.mubr.bf16.mxu0 0
  %1499 = vmatmul.mubr.bf16.gmra.mxu0 %v1396
  %v1500 = vpop.f32.mrf.mxu0
  %v1501 = vadd.f32 0.0, %v1500
  %v1502 = vpop.f32.mrf.mxu0
  %v1503 = vpop.f32.mrf.mxu0
  %v1504 = vadd.f32 0.0, %v1503
  %v1505 = vpop.f32.mrf.mxu0
  %1506 = vmatprep.mubr.bf16.mxu0 0
  %1507 = vmatmul.mubr.bf16.gmra.mxu0 %v1397
  %v1508 = vpop.f32.mrf.mxu0
  %v1509 = vadd.f32 0.0, %v1508
  %v1510 = vpop.f32.mrf.mxu0
  %v1511 = vpop.f32.mrf.mxu0
  %v1512 = vadd.f32 0.0, %v1511
  %v1513 = vpop.f32.mrf.mxu0
  %1514 = vmatprep.mubr.bf16.mxu0 0
  %1515 = vmatmul.mubr.bf16.gmra.mxu0 %v1398
  %v1516 = vpop.f32.mrf.mxu0
  %v1517 = vadd.f32 0.0, %v1516
  %v1518 = vpop.f32.mrf.mxu0
  %v1519 = vpop.f32.mrf.mxu0
  %v1520 = vadd.f32 0.0, %v1519
  %v1521 = vpop.f32.mrf.mxu0
  %1522 = vmatprep.mubr.bf16.mxu0 0
  %1523 = vmatmul.mubr.bf16.gmra.mxu0 %v1399
  %v1524 = vpop.f32.mrf.mxu0
  %v1525 = vadd.f32 0.0, %v1524
  %v1526 = vpop.f32.mrf.mxu0
  %v1527 = vpop.f32.mrf.mxu0
  %v1528 = vadd.f32 0.0, %v1527
  %v1529 = vpop.f32.mrf.mxu0
  %1530 = vmatprep.mubr.bf16.mxu0 0
  %1531 = vmatmul.mubr.bf16.gmra.mxu0 %v1400
  %v1532 = vpop.f32.mrf.mxu0
  %v1533 = vadd.f32 0.0, %v1532
  %v1534 = vpop.f32.mrf.mxu0
  %v1535 = vpop.f32.mrf.mxu0
  %v1536 = vadd.f32 0.0, %v1535
  %v1537 = vpop.f32.mrf.mxu0
  %1538 = vdwg.mxu0
  %v1539 = vadd.f32 %v1376, %v1501
  %v1540 = vadd.f32 %v1377, %v1504
  %v1541 = vadd.f32 %v1378, %v1509
  %v1542 = vadd.f32 %v1379, %v1512
  %v1543 = vadd.f32 %v1380, %v1517
  %v1544 = vadd.f32 %v1381, %v1520
  %v1545 = vadd.f32 %v1382, %v1525
  %v1546 = vadd.f32 %v1383, %v1528
  %v1547 = vadd.f32 %v1384, %v1533
  %v1548 = vadd.f32 %v1385, %v1536
  %v1549 = vld [vmem:[#allocation2 + $0x22] sm:$0xff]
  %v1550 = vld [vmem:[#allocation2 + $0x2a] sm:$0xff]
  %v1551 = vld [vmem:[#allocation2 + $0x32] sm:$0xff]
  %v1552 = vld [vmem:[#allocation2 + $0x3a] sm:$0xff]
  %v1553 = vld [vmem:[#allocation2 + $0x42] sm:$0xff]
  %v1554 = vld [vmem:[#allocation2 + $0x4a] sm:$0xff]
  %v1555 = vld [vmem:[#allocation2 + $0x52] sm:$0xff]
  %v1556 = vld [vmem:[#allocation2 + $0x5a] sm:$0xff]
  %v1557 = vld [vmem:[#allocation2 + $0x62] sm:$0xff]
  %v1558 = vld [vmem:[#allocation2 + $0x6a] sm:$0xff]
  %v1559 = vpack.c.bf16 %v1550, %v1549
  %v1560 = vpack.c.bf16 %v1552, %v1551
  %v1561 = vpack.c.bf16 %v1554, %v1553
  %v1562 = vpack.c.bf16 %v1556, %v1555
  %v1563 = vpack.c.bf16 %v1558, %v1557
  %s1564 = scalar_lea.vmem %s2, 512
  %v1565 = vld [vmem:[%s1564] sm:$0xf]
  %v1566 = vld [vmem:[%s1564 + $0x4] sm:$0xf]
  %v1567 = vld [vmem:[%s1564 + $0x8] sm:$0xf]
  %v1568 = vld [vmem:[%s1564 + $0xc] sm:$0xf]
  %v1569 = vld [vmem:[%s1564 + $0x10] sm:$0xf]
  %v1570 = vld [vmem:[%s1564 + $0x14] sm:$0xf]
  %v1571 = vld [vmem:[%s1564 + $0x18] sm:$0xf]
  %v1572 = vld [vmem:[%s1564 + $0x1c] sm:$0xf]
  %v1573 = vld [vmem:[%s1564 + $0x20] sm:$0xf]
  %v1574 = vld [vmem:[%s1564 + $0x24] sm:$0xf]
  %v1575 = vld [vmem:[%s1564 + $0x28] sm:$0xf]
  %v1576 = vld [vmem:[%s1564 + $0x2c] sm:$0xf]
  %v1577 = vld [vmem:[%s1564 + $0x30] sm:$0xf]
  %v1578 = vld [vmem:[%s1564 + $0x34] sm:$0xf]
  %v1579 = vld [vmem:[%s1564 + $0x38] sm:$0xf]
  %v1580 = vld [vmem:[%s1564 + $0x3c] sm:$0xf]
  %v1597 = vunpack.c.l.b16 %v1565
  %v1598 = vunpack.c.l.b16 %v1566
  %v1599 = vunpack.c.l.b16 %v1567
  %v1600 = vunpack.c.l.b16 %v1568
  %v1601 = vunpack.c.l.b16 %v1569
  %v1602 = vunpack.c.l.b16 %v1570
  %v1603 = vunpack.c.l.b16 %v1571
  %v1604 = vunpack.c.l.b16 %v1572
  %v1605 = vunpack.c.l.b16 %v1573
  %v1606 = vunpack.c.l.b16 %v1574
  %v1607 = vunpack.c.l.b16 %v1575
  %v1608 = vunpack.c.l.b16 %v1576
  %v1609 = vunpack.c.l.b16 %v1577
  %v1610 = vunpack.c.l.b16 %v1578
  %v1611 = vunpack.c.l.b16 %v1579
  %v1612 = vunpack.c.l.b16 %v1580
  %v1613 = vpack.c.b16 %v1598, %v1597
  %v1614 = vpack.c.b16 %v1600, %v1599
  %v1615 = vpack.c.b16 %v1602, %v1601
  %v1616 = vpack.c.b16 %v1604, %v1603
  %v1617 = vpack.c.b16 %v1606, %v1605
  %v1618 = vpack.c.b16 %v1608, %v1607
  %v1619 = vpack.c.b16 %v1610, %v1609
  %v1620 = vpack.c.b16 %v1612, %v1611
  %1629 = vmatprep.subr.bf16.mxu0 0
  %1630 = vmatpush1.bf16.msra.mxu0 %v1620
  %1631 = vmatprep.subr.bf16.mxu0 0
  %1632 = vmatpush1.bf16.msra.mxu0 %v1619
  %1633 = vmatprep.subr.bf16.mxu0 0
  %1634 = vmatpush1.bf16.msra.mxu0 %v1618
  %1635 = vmatprep.subr.bf16.mxu0 0
  %1636 = vmatpush1.bf16.msra.mxu0 %v1617
  %1637 = vmatprep.subr.bf16.mxu0 0
  %1638 = vmatpush1.bf16.msra.mxu0 %v1616
  %1639 = vmatprep.subr.bf16.mxu0 0
  %1640 = vmatpush1.bf16.msra.mxu0 %v1615
  %1641 = vmatprep.subr.bf16.mxu0 0
  %1642 = vmatpush1.bf16.msra.mxu0 %v1614
  %1643 = vmatprep.subr.bf16.mxu0 0
  %1644 = vmatpush1.bf16.msra.mxu0 %v1613
  %1645 = vmatprep.subr.bf16.mxu0 0
  %1646 = vmatpush2.bf16.msra.mxu0 0
  %1647 = vmatprep.subr.bf16.mxu0 0
  %1648 = vmatpush2.bf16.msra.mxu0 0
  %1649 = vmatprep.subr.bf16.mxu0 0
  %1650 = vmatpush2.bf16.msra.mxu0 0
  %1651 = vmatprep.subr.bf16.mxu0 0
  %1652 = vmatpush2.bf16.msra.mxu0 0
  %1653 = vmatprep.subr.bf16.mxu0 0
  %1654 = vmatpush2.bf16.msra.mxu0 0
  %1655 = vmatprep.subr.bf16.mxu0 0
  %1656 = vmatpush2.bf16.msra.mxu0 0
  %1657 = vmatprep.subr.bf16.mxu0 0
  %1658 = vmatpush2.bf16.msra.mxu0 0
  %1659 = vmatprep.subr.bf16.mxu0 0
  %1660 = vmatpush2.bf16.msra.mxu0 0
  %1661 = vmatprep.mubr.bf16.mxu0 0
  %1662 = vmatmul.mubr.bf16.gmra.mxu0 %v1559
  %v1663 = vpop.f32.mrf.mxu0
  %v1664 = vadd.f32 0.0, %v1663
  %v1665 = vpop.f32.mrf.mxu0
  %v1666 = vpop.f32.mrf.mxu0
  %v1667 = vadd.f32 0.0, %v1666
  %v1668 = vpop.f32.mrf.mxu0
  %1669 = vmatprep.mubr.bf16.mxu0 0
  %1670 = vmatmul.mubr.bf16.gmra.mxu0 %v1560
  %v1671 = vpop.f32.mrf.mxu0
  %v1672 = vadd.f32 0.0, %v1671
  %v1673 = vpop.f32.mrf.mxu0
  %v1674 = vpop.f32.mrf.mxu0
  %v1675 = vadd.f32 0.0, %v1674
  %v1676 = vpop.f32.mrf.mxu0
  %1677 = vmatprep.mubr.bf16.mxu0 0
  %1678 = vmatmul.mubr.bf16.gmra.mxu0 %v1561
  %v1679 = vpop.f32.mrf.mxu0
  %v1680 = vadd.f32 0.0, %v1679
  %v1681 = vpop.f32.mrf.mxu0
  %v1682 = vpop.f32.mrf.mxu0
  %v1683 = vadd.f32 0.0, %v1682
  %v1684 = vpop.f32.mrf.mxu0
  %1685 = vmatprep.mubr.bf16.mxu0 0
  %1686 = vmatmul.mubr.bf16.gmra.mxu0 %v1562
  %v1687 = vpop.f32.mrf.mxu0
  %v1688 = vadd.f32 0.0, %v1687
  %v1689 = vpop.f32.mrf.mxu0
  %v1690 = vpop.f32.mrf.mxu0
  %v1691 = vadd.f32 0.0, %v1690
  %v1692 = vpop.f32.mrf.mxu0
  %1693 = vmatprep.mubr.bf16.mxu0 0
  %1694 = vmatmul.mubr.bf16.gmra.mxu0 %v1563
  %v1695 = vpop.f32.mrf.mxu0
  %v1696 = vadd.f32 0.0, %v1695
  %v1697 = vpop.f32.mrf.mxu0
  %v1698 = vpop.f32.mrf.mxu0
  %v1699 = vadd.f32 0.0, %v1698
  %v1700 = vpop.f32.mrf.mxu0
  %1701 = vdwg.mxu0
  %v1702 = vadd.f32 %v1539, %v1664
  %v1703 = vadd.f32 %v1540, %v1667
  %v1704 = vadd.f32 %v1541, %v1672
  %v1705 = vadd.f32 %v1542, %v1675
  %v1706 = vadd.f32 %v1543, %v1680
  %v1707 = vadd.f32 %v1544, %v1683
  %v1708 = vadd.f32 %v1545, %v1688
  %v1709 = vadd.f32 %v1546, %v1691
  %v1710 = vadd.f32 %v1547, %v1696
  %v1711 = vadd.f32 %v1548, %v1699
  %v1712 = vlaneseq
  %v1713 = vshrl.u32 %v1712, 7
  %v1714 = vsub.s32 1, %v1713
  %v1715 = vrot.slane %v24, %v1714
  %v1716 = vadd.f32 %v1702, %v1715
  %v1717 = vadd.f32 %v1703, %v1715
  %v1718 = vadd.f32 %v1704, %v1715
  %v1719 = vadd.f32 %v1705, %v1715
  %v1720 = vadd.f32 %v1706, %v1715
  %v1721 = vadd.f32 %v1707, %v1715
  %v1722 = vadd.f32 %v1708, %v1715
  %v1723 = vadd.f32 %v1709, %v1715
  %v1724 = vadd.f32 %v1710, %v1715
  %v1725 = vadd.f32 %v1711, %v1715
  %v1726 = vmax.f32 %v1716, 0.0
  %v1727 = vmax.f32 %v1717, 0.0
  %v1728 = vmax.f32 %v1718, 0.0
  %v1729 = vmax.f32 %v1719, 0.0
  %v1730 = vmax.f32 %v1720, 0.0
  %v1731 = vmax.f32 %v1721, 0.0
  %v1732 = vmax.f32 %v1722, 0.0
  %v1733 = vmax.f32 %v1723, 0.0
  %v1734 = vmax.f32 %v1724, 0.0
  %v1735 = vmax.f32 %v1725, 0.0
  %1736 = vst [vmem:[#allocation3] sm:$0xff] %v1726
  %1737 = vst [vmem:[#allocation3 + $0x8] sm:$0xff] %v1727
  %1738 = vst [vmem:[#allocation3 + $0x10] sm:$0xff] %v1728
  %1739 = vst [vmem:[#allocation3 + $0x18] sm:$0xff] %v1729
  %1740 = vst [vmem:[#allocation3 + $0x20] sm:$0xff] %v1730
  %1741 = vst [vmem:[#allocation3 + $0x28] sm:$0xff] %v1731
  %1742 = vst [vmem:[#allocation3 + $0x30] sm:$0xff] %v1732
  %1743 = vst [vmem:[#allocation3 + $0x38] sm:$0xff] %v1733
  %1744 = vst [vmem:[#allocation3 + $0x40] sm:$0xff] %v1734
  %1745 = vst [vmem:[#allocation3 + $0x48] sm:$0xff] %v1735
  %v1746 = vld [vmem:[#allocation3] sm:$0xff]
  %v1747 = vld [vmem:[#allocation3 + $0x8] sm:$0xff]
  %v1748 = vld [vmem:[#allocation3 + $0x10] sm:$0xff]
  %v1749 = vld [vmem:[#allocation3 + $0x18] sm:$0xff]
  %v1750 = vld [vmem:[#allocation3 + $0x20] sm:$0xff]
  %v1751 = vld [vmem:[#allocation3 + $0x28] sm:$0xff]
  %v1752 = vpack.c.bf16 %v1747, %v1746
  %v1753 = vpack.c.bf16 %v1749, %v1748
  %v1754 = vpack.c.bf16 %v1751, %v1750
  %v1755 = vld [vmem:[%s3] sm:$0xf]
  %v1756 = vld [vmem:[%s3 + $0x4] sm:$0xf]
  %v1757 = vld [vmem:[%s3 + $0x8] sm:$0xf]
  %v1758 = vld [vmem:[%s3 + $0xc] sm:$0xf]
  %v1759 = vld [vmem:[%s3 + $0x10] sm:$0xf]
  %v1760 = vld [vmem:[%s3 + $0x14] sm:$0xf]
  %v1761 = vld [vmem:[%s3 + $0x18] sm:$0xf]
  %v1762 = vld [vmem:[%s3 + $0x1c] sm:$0xf]
  %v1763 = vld [vmem:[%s3 + $0x20] sm:$0xf]
  %v1764 = vld [vmem:[%s3 + $0x24] sm:$0xf]
  %v1765 = vld [vmem:[%s3 + $0x28] sm:$0xf]
  %v1766 = vld [vmem:[%s3 + $0x2c] sm:$0xf]
  %v1767 = vld [vmem:[%s3 + $0x30] sm:$0xf]
  %v1768 = vld [vmem:[%s3 + $0x34] sm:$0xf]
  %v1769 = vld [vmem:[%s3 + $0x38] sm:$0xf]
  %v1770 = vld [vmem:[%s3 + $0x3c] sm:$0xf]
  %v1771 = vld [vmem:[#allocation3 + $0x1] sm:$0xff]
  %v1772 = vld [vmem:[#allocation3 + $0x9] sm:$0xff]
  %v1773 = vld [vmem:[#allocation3 + $0x11] sm:$0xff]
  %v1774 = vld [vmem:[#allocation3 + $0x19] sm:$0xff]
  %v1775 = vld [vmem:[#allocation3 + $0x21] sm:$0xff]
  %v1776 = vld [vmem:[#allocation3 + $0x29] sm:$0xff]
  %v1777 = vpack.c.bf16 %v1772, %v1771
  %v1778 = vpack.c.bf16 %v1774, %v1773
  %v1779 = vpack.c.bf16 %v1776, %v1775
  %s1780 = scalar_lea.vmem %s3, 64
  %v1781 = vld [vmem:[%s1780] sm:$0xf]
  %v1782 = vld [vmem:[%s1780 + $0x4] sm:$0xf]
  %v1783 = vld [vmem:[%s1780 + $0x8] sm:$0xf]
  %v1784 = vld [vmem:[%s1780 + $0xc] sm:$0xf]
  %v1785 = vld [vmem:[%s1780 + $0x10] sm:$0xf]
  %v1786 = vld [vmem:[%s1780 + $0x14] sm:$0xf]
  %v1787 = vld [vmem:[%s1780 + $0x18] sm:$0xf]
  %v1788 = vld [vmem:[%s1780 + $0x1c] sm:$0xf]
  %v1789 = vld [vmem:[%s1780 + $0x20] sm:$0xf]
  %v1790 = vld [vmem:[%s1780 + $0x24] sm:$0xf]
  %v1791 = vld [vmem:[%s1780 + $0x28] sm:$0xf]
  %v1792 = vld [vmem:[%s1780 + $0x2c] sm:$0xf]
  %v1793 = vld [vmem:[%s1780 + $0x30] sm:$0xf]
  %v1794 = vld [vmem:[%s1780 + $0x34] sm:$0xf]
  %v1795 = vld [vmem:[%s1780 + $0x38] sm:$0xf]
  %v1796 = vld [vmem:[%s1780 + $0x3c] sm:$0xf]
  %v1813 = vunpack.c.l.b16 %v1781
  %v1814 = vunpack.c.l.b16 %v1782
  %v1815 = vunpack.c.l.b16 %v1783
  %v1816 = vunpack.c.l.b16 %v1784
  %v1817 = vunpack.c.l.b16 %v1785
  %v1818 = vunpack.c.l.b16 %v1786
  %v1819 = vunpack.c.l.b16 %v1787
  %v1820 = vunpack.c.l.b16 %v1788
  %v1821 = vunpack.c.l.b16 %v1789
  %v1822 = vunpack.c.l.b16 %v1790
  %v1823 = vunpack.c.l.b16 %v1791
  %v1824 = vunpack.c.l.b16 %v1792
  %v1825 = vunpack.c.l.b16 %v1793
  %v1826 = vunpack.c.l.b16 %v1794
  %v1827 = vunpack.c.l.b16 %v1795
  %v1828 = vunpack.c.l.b16 %v1796
  %v1829 = vpack.c.b16 %v1814, %v1813
  %v1830 = vpack.c.b16 %v1816, %v1815
  %v1831 = vpack.c.b16 %v1818, %v1817
  %v1832 = vpack.c.b16 %v1820, %v1819
  %v1833 = vpack.c.b16 %v1822, %v1821
  %v1834 = vpack.c.b16 %v1824, %v1823
  %v1835 = vpack.c.b16 %v1826, %v1825
  %v1836 = vpack.c.b16 %v1828, %v1827
  %1845 = vmatprep.subr.bf16.mxu0 0
  %1846 = vmatpush1.bf16.msra.mxu0 %v1836
  %1847 = vmatprep.subr.bf16.mxu0 0
  %1848 = vmatpush1.bf16.msra.mxu0 %v1835
  %1849 = vmatprep.subr.bf16.mxu0 0
  %1850 = vmatpush1.bf16.msra.mxu0 %v1834
  %1851 = vmatprep.subr.bf16.mxu0 0
  %1852 = vmatpush1.bf16.msra.mxu0 %v1833
  %1853 = vmatprep.subr.bf16.mxu0 0
  %1854 = vmatpush1.bf16.msra.mxu0 %v1832
  %1855 = vmatprep.subr.bf16.mxu0 0
  %1856 = vmatpush1.bf16.msra.mxu0 %v1831
  %1857 = vmatprep.subr.bf16.mxu0 0
  %1858 = vmatpush1.bf16.msra.mxu0 %v1830
  %1859 = vmatprep.subr.bf16.mxu0 0
  %1860 = vmatpush1.bf16.msra.mxu0 %v1829
  %1861 = vmatprep.subr.bf16.mxu0 0
  %1862 = vmatpush2.bf16.msra.mxu0 0
  %1863 = vmatprep.subr.bf16.mxu0 0
  %1864 = vmatpush2.bf16.msra.mxu0 0
  %1865 = vmatprep.subr.bf16.mxu0 0
  %1866 = vmatpush2.bf16.msra.mxu0 0
  %1867 = vmatprep.subr.bf16.mxu0 0
  %1868 = vmatpush2.bf16.msra.mxu0 0
  %1869 = vmatprep.subr.bf16.mxu0 0
  %1870 = vmatpush2.bf16.msra.mxu0 0
  %1871 = vmatprep.subr.bf16.mxu0 0
  %1872 = vmatpush2.bf16.msra.mxu0 0
  %1873 = vmatprep.subr.bf16.mxu0 0
  %1874 = vmatpush2.bf16.msra.mxu0 0
  %1875 = vmatprep.subr.bf16.mxu0 0
  %1876 = vmatpush2.bf16.msra.mxu0 0
  %1877 = vmatprep.mubr.bf16.mxu0 0
  %1878 = vmatmul.mubr.bf16.gmra.mxu0 %v1777
  %v1879 = vpop.f32.mrf.mxu0
  %v1880 = vadd.f32 0.0, %v1879
  %v1881 = vpop.f32.mrf.mxu0
  %v1882 = vpop.f32.mrf.mxu0
  %v1883 = vadd.f32 0.0, %v1882
  %v1884 = vpop.f32.mrf.mxu0
  %1885 = vmatprep.mubr.bf16.mxu0 0
  %1886 = vmatmul.mubr.bf16.gmra.mxu0 %v1778
  %v1887 = vpop.f32.mrf.mxu0
  %v1888 = vadd.f32 0.0, %v1887
  %v1889 = vpop.f32.mrf.mxu0
  %v1890 = vpop.f32.mrf.mxu0
  %v1891 = vadd.f32 0.0, %v1890
  %v1892 = vpop.f32.mrf.mxu0
  %1893 = vmatprep.mubr.bf16.mxu0 0
  %1894 = vmatmul.mubr.bf16.gmra.mxu0 %v1779
  %v1895 = vpop.f32.mrf.mxu0
  %v1896 = vadd.f32 0.0, %v1895
  %v1897 = vpop.f32.mrf.mxu0
  %v1898 = vpop.f32.mrf.mxu0
  %v1899 = vadd.f32 0.0, %v1898
  %v1900 = vpop.f32.mrf.mxu0
  %1901 = vdwg.mxu0
  %v1918 = vunpack.c.l.b16 %v1755
  %v1919 = vunpack.c.l.b16 %v1756
  %v1920 = vunpack.c.l.b16 %v1757
  %v1921 = vunpack.c.l.b16 %v1758
  %v1922 = vunpack.c.l.b16 %v1759
  %v1923 = vunpack.c.l.b16 %v1760
  %v1924 = vunpack.c.l.b16 %v1761
  %v1925 = vunpack.c.l.b16 %v1762
  %v1926 = vunpack.c.l.b16 %v1763
  %v1927 = vunpack.c.l.b16 %v1764
  %v1928 = vunpack.c.l.b16 %v1765
  %v1929 = vunpack.c.l.b16 %v1766
  %v1930 = vunpack.c.l.b16 %v1767
  %v1931 = vunpack.c.l.b16 %v1768
  %v1932 = vunpack.c.l.b16 %v1769
  %v1933 = vunpack.c.l.b16 %v1770
  %v1934 = vpack.c.b16 %v1919, %v1918
  %v1935 = vpack.c.b16 %v1921, %v1920
  %v1936 = vpack.c.b16 %v1923, %v1922
  %v1937 = vpack.c.b16 %v1925, %v1924
  %v1938 = vpack.c.b16 %v1927, %v1926
  %v1939 = vpack.c.b16 %v1929, %v1928
  %v1940 = vpack.c.b16 %v1931, %v1930
  %v1941 = vpack.c.b16 %v1933, %v1932
  %1950 = vmatprep.subr.bf16.mxu0 0
  %1951 = vmatpush1.bf16.msra.mxu0 %v1941
  %1952 = vmatprep.subr.bf16.mxu0 0
  %1953 = vmatpush1.bf16.msra.mxu0 %v1940
  %1954 = vmatprep.subr.bf16.mxu0 0
  %1955 = vmatpush1.bf16.msra.mxu0 %v1939
  %1956 = vmatprep.subr.bf16.mxu0 0
  %1957 = vmatpush1.bf16.msra.mxu0 %v1938
  %1958 = vmatprep.subr.bf16.mxu0 0
  %1959 = vmatpush1.bf16.msra.mxu0 %v1937
  %1960 = vmatprep.subr.bf16.mxu0 0
  %1961 = vmatpush1.bf16.msra.mxu0 %v1936
  %1962 = vmatprep.subr.bf16.mxu0 0
  %1963 = vmatpush1.bf16.msra.mxu0 %v1935
  %1964 = vmatprep.subr.bf16.mxu0 0
  %1965 = vmatpush1.bf16.msra.mxu0 %v1934
  %1966 = vmatprep.subr.bf16.mxu0 0
  %1967 = vmatpush2.bf16.msra.mxu0 0
  %1968 = vmatprep.subr.bf16.mxu0 0
  %1969 = vmatpush2.bf16.msra.mxu0 0
  %1970 = vmatprep.subr.bf16.mxu0 0
  %1971 = vmatpush2.bf16.msra.mxu0 0
  %1972 = vmatprep.subr.bf16.mxu0 0
  %1973 = vmatpush2.bf16.msra.mxu0 0
  %1974 = vmatprep.subr.bf16.mxu0 0
  %1975 = vmatpush2.bf16.msra.mxu0 0
  %1976 = vmatprep.subr.bf16.mxu0 0
  %1977 = vmatpush2.bf16.msra.mxu0 0
  %1978 = vmatprep.subr.bf16.mxu0 0
  %1979 = vmatpush2.bf16.msra.mxu0 0
  %1980 = vmatprep.subr.bf16.mxu0 0
  %1981 = vmatpush2.bf16.msra.mxu0 0
  %1982 = vmatprep.mubr.bf16.mxu0 0
  %1983 = vmatmul.mubr.bf16.gmra.mxu0 %v1752
  %v1984 = vpop.f32.mrf.mxu0
  %v1985 = vadd.f32 %v1880, %v1984
  %v1986 = vpop.f32.mrf.mxu0
  %v1987 = vpop.f32.mrf.mxu0
  %v1988 = vadd.f32 %v1883, %v1987
  %v1989 = vpop.f32.mrf.mxu0
  %1990 = vmatprep.mubr.bf16.mxu0 0
  %1991 = vmatmul.mubr.bf16.gmra.mxu0 %v1753
  %v1992 = vpop.f32.mrf.mxu0
  %v1993 = vadd.f32 %v1888, %v1992
  %v1994 = vpop.f32.mrf.mxu0
  %v1995 = vpop.f32.mrf.mxu0
  %v1996 = vadd.f32 %v1891, %v1995
  %v1997 = vpop.f32.mrf.mxu0
  %1998 = vmatprep.mubr.bf16.mxu0 0
  %1999 = vmatmul.mubr.bf16.gmra.mxu0 %v1754
  %v2000 = vpop.f32.mrf.mxu0
  %v2001 = vadd.f32 %v1896, %v2000
  %v2002 = vpop.f32.mrf.mxu0
  %v2003 = vpop.f32.mrf.mxu0
  %v2004 = vadd.f32 %v1899, %v2003
  %v2005 = vpop.f32.mrf.mxu0
  %2006 = vdwg.mxu0
  %v2007 = vld [vmem:[#allocation3 + $0x2] sm:$0xff]
  %v2008 = vld [vmem:[#allocation3 + $0xa] sm:$0xff]
  %v2009 = vld [vmem:[#allocation3 + $0x12] sm:$0xff]
  %v2010 = vld [vmem:[#allocation3 + $0x1a] sm:$0xff]
  %v2011 = vld [vmem:[#allocation3 + $0x22] sm:$0xff]
  %v2012 = vld [vmem:[#allocation3 + $0x2a] sm:$0xff]
  %v2013 = vpack.c.bf16 %v2008, %v2007
  %v2014 = vpack.c.bf16 %v2010, %v2009
  %v2015 = vpack.c.bf16 %v2012, %v2011
  %s2016 = scalar_lea.vmem %s3, 128
  %v2017 = vld [vmem:[%s2016] sm:$0xf]
  %v2018 = vld [vmem:[%s2016 + $0x4] sm:$0xf]
  %v2019 = vld [vmem:[%s2016 + $0x8] sm:$0xf]
  %v2020 = vld [vmem:[%s2016 + $0xc] sm:$0xf]
  %v2021 = vld [vmem:[%s2016 + $0x10] sm:$0xf]
  %v2022 = vld [vmem:[%s2016 + $0x14] sm:$0xf]
  %v2023 = vld [vmem:[%s2016 + $0x18] sm:$0xf]
  %v2024 = vld [vmem:[%s2016 + $0x1c] sm:$0xf]
  %v2025 = vld [vmem:[%s2016 + $0x20] sm:$0xf]
  %v2026 = vld [vmem:[%s2016 + $0x24] sm:$0xf]
  %v2027 = vld [vmem:[%s2016 + $0x28] sm:$0xf]
  %v2028 = vld [vmem:[%s2016 + $0x2c] sm:$0xf]
  %v2029 = vld [vmem:[%s2016 + $0x30] sm:$0xf]
  %v2030 = vld [vmem:[%s2016 + $0x34] sm:$0xf]
  %v2031 = vld [vmem:[%s2016 + $0x38] sm:$0xf]
  %v2032 = vld [vmem:[%s2016 + $0x3c] sm:$0xf]
  %v2049 = vunpack.c.l.b16 %v2017
  %v2050 = vunpack.c.l.b16 %v2018
  %v2051 = vunpack.c.l.b16 %v2019
  %v2052 = vunpack.c.l.b16 %v2020
  %v2053 = vunpack.c.l.b16 %v2021
  %v2054 = vunpack.c.l.b16 %v2022
  %v2055 = vunpack.c.l.b16 %v2023
  %v2056 = vunpack.c.l.b16 %v2024
  %v2057 = vunpack.c.l.b16 %v2025
  %v2058 = vunpack.c.l.b16 %v2026
  %v2059 = vunpack.c.l.b16 %v2027
  %v2060 = vunpack.c.l.b16 %v2028
  %v2061 = vunpack.c.l.b16 %v2029
  %v2062 = vunpack.c.l.b16 %v2030
  %v2063 = vunpack.c.l.b16 %v2031
  %v2064 = vunpack.c.l.b16 %v2032
  %v2065 = vpack.c.b16 %v2050, %v2049
  %v2066 = vpack.c.b16 %v2052, %v2051
  %v2067 = vpack.c.b16 %v2054, %v2053
  %v2068 = vpack.c.b16 %v2056, %v2055
  %v2069 = vpack.c.b16 %v2058, %v2057
  %v2070 = vpack.c.b16 %v2060, %v2059
  %v2071 = vpack.c.b16 %v2062, %v2061
  %v2072 = vpack.c.b16 %v2064, %v2063
  %2081 = vmatprep.subr.bf16.mxu0 0
  %2082 = vmatpush1.bf16.msra.mxu0 %v2072
  %2083 = vmatprep.subr.bf16.mxu0 0
  %2084 = vmatpush1.bf16.msra.mxu0 %v2071
  %2085 = vmatprep.subr.bf16.mxu0 0
  %2086 = vmatpush1.bf16.msra.mxu0 %v2070
  %2087 = vmatprep.subr.bf16.mxu0 0
  %2088 = vmatpush1.bf16.msra.mxu0 %v2069
  %2089 = vmatprep.subr.bf16.mxu0 0
  %2090 = vmatpush1.bf16.msra.mxu0 %v2068
  %2091 = vmatprep.subr.bf16.mxu0 0
  %2092 = vmatpush1.bf16.msra.mxu0 %v2067
  %2093 = vmatprep.subr.bf16.mxu0 0
  %2094 = vmatpush1.bf16.msra.mxu0 %v2066
  %2095 = vmatprep.subr.bf16.mxu0 0
  %2096 = vmatpush1.bf16.msra.mxu0 %v2065
  %2097 = vmatprep.subr.bf16.mxu0 0
  %2098 = vmatpush2.bf16.msra.mxu0 0
  %2099 = vmatprep.subr.bf16.mxu0 0
  %2100 = vmatpush2.bf16.msra.mxu0 0
  %2101 = vmatprep.subr.bf16.mxu0 0
  %2102 = vmatpush2.bf16.msra.mxu0 0
  %2103 = vmatprep.subr.bf16.mxu0 0
  %2104 = vmatpush2.bf16.msra.mxu0 0
  %2105 = vmatprep.subr.bf16.mxu0 0
  %2106 = vmatpush2.bf16.msra.mxu0 0
  %2107 = vmatprep.subr.bf16.mxu0 0
  %2108 = vmatpush2.bf16.msra.mxu0 0
  %2109 = vmatprep.subr.bf16.mxu0 0
  %2110 = vmatpush2.bf16.msra.mxu0 0
  %2111 = vmatprep.subr.bf16.mxu0 0
  %2112 = vmatpush2.bf16.msra.mxu0 0
  %2113 = vmatprep.mubr.bf16.mxu0 0
  %2114 = vmatmul.mubr.bf16.gmra.mxu0 %v2013
  %v2115 = vpop.f32.mrf.mxu0
  %v2116 = vadd.f32 0.0, %v2115
  %v2117 = vpop.f32.mrf.mxu0
  %v2118 = vpop.f32.mrf.mxu0
  %v2119 = vadd.f32 0.0, %v2118
  %v2120 = vpop.f32.mrf.mxu0
  %2121 = vmatprep.mubr.bf16.mxu0 0
  %2122 = vmatmul.mubr.bf16.gmra.mxu0 %v2014
  %v2123 = vpop.f32.mrf.mxu0
  %v2124 = vadd.f32 0.0, %v2123
  %v2125 = vpop.f32.mrf.mxu0
  %v2126 = vpop.f32.mrf.mxu0
  %v2127 = vadd.f32 0.0, %v2126
  %v2128 = vpop.f32.mrf.mxu0
  %2129 = vmatprep.mubr.bf16.mxu0 0
  %2130 = vmatmul.mubr.bf16.gmra.mxu0 %v2015
  %v2131 = vpop.f32.mrf.mxu0
  %v2132 = vadd.f32 0.0, %v2131
  %v2133 = vpop.f32.mrf.mxu0
  %v2134 = vpop.f32.mrf.mxu0
  %v2135 = vadd.f32 0.0, %v2134
  %v2136 = vpop.f32.mrf.mxu0
  %2137 = vdwg.mxu0
  %v2138 = vadd.f32 %v1985, %v2116
  %v2139 = vadd.f32 %v1988, %v2119
  %v2140 = vadd.f32 %v1993, %v2124
  %v2141 = vadd.f32 %v1996, %v2127
  %v2142 = vadd.f32 %v2001, %v2132
  %v2143 = vadd.f32 %v2004, %v2135
  %v2144 = vld [vmem:[#allocation3 + $0x10] sm:$0xff]
  %v2145 = vld [vmem:[#allocation3 + $0x18] sm:$0xff]
  %v2146 = vld [vmem:[#allocation3 + $0x20] sm:$0xff]
  %v2147 = vld [vmem:[#allocation3 + $0x28] sm:$0xff]
  %v2148 = vld [vmem:[#allocation3 + $0x30] sm:$0xff]
  %v2149 = vld [vmem:[#allocation3 + $0x38] sm:$0xff]
  %v2150 = vpack.c.bf16 %v2145, %v2144
  %v2151 = vpack.c.bf16 %v2147, %v2146
  %v2152 = vpack.c.bf16 %v2149, %v2148
  %s2153 = scalar_lea.vmem %s3, 192
  %v2154 = vld [vmem:[%s2153] sm:$0xf]
  %v2155 = vld [vmem:[%s2153 + $0x4] sm:$0xf]
  %v2156 = vld [vmem:[%s2153 + $0x8] sm:$0xf]
  %v2157 = vld [vmem:[%s2153 + $0xc] sm:$0xf]
  %v2158 = vld [vmem:[%s2153 + $0x10] sm:$0xf]
  %v2159 = vld [vmem:[%s2153 + $0x14] sm:$0xf]
  %v2160 = vld [vmem:[%s2153 + $0x18] sm:$0xf]
  %v2161 = vld [vmem:[%s2153 + $0x1c] sm:$0xf]
  %v2162 = vld [vmem:[%s2153 + $0x20] sm:$0xf]
  %v2163 = vld [vmem:[%s2153 + $0x24] sm:$0xf]
  %v2164 = vld [vmem:[%s2153 + $0x28] sm:$0xf]
  %v2165 = vld [vmem:[%s2153 + $0x2c] sm:$0xf]
  %v2166 = vld [vmem:[%s2153 + $0x30] sm:$0xf]
  %v2167 = vld [vmem:[%s2153 + $0x34] sm:$0xf]
  %v2168 = vld [vmem:[%s2153 + $0x38] sm:$0xf]
  %v2169 = vld [vmem:[%s2153 + $0x3c] sm:$0xf]
  %v2186 = vunpack.c.l.b16 %v2154
  %v2187 = vunpack.c.l.b16 %v2155
  %v2188 = vunpack.c.l.b16 %v2156
  %v2189 = vunpack.c.l.b16 %v2157
  %v2190 = vunpack.c.l.b16 %v2158
  %v2191 = vunpack.c.l.b16 %v2159
  %v2192 = vunpack.c.l.b16 %v2160
  %v2193 = vunpack.c.l.b16 %v2161
  %v2194 = vunpack.c.l.b16 %v2162
  %v2195 = vunpack.c.l.b16 %v2163
  %v2196 = vunpack.c.l.b16 %v2164
  %v2197 = vunpack.c.l.b16 %v2165
  %v2198 = vunpack.c.l.b16 %v2166
  %v2199 = vunpack.c.l.b16 %v2167
  %v2200 = vunpack.c.l.b16 %v2168
  %v2201 = vunpack.c.l.b16 %v2169
  %v2202 = vpack.c.b16 %v2187, %v2186
  %v2203 = vpack.c.b16 %v2189, %v2188
  %v2204 = vpack.c.b16 %v2191, %v2190
  %v2205 = vpack.c.b16 %v2193, %v2192
  %v2206 = vpack.c.b16 %v2195, %v2194
  %v2207 = vpack.c.b16 %v2197, %v2196
  %v2208 = vpack.c.b16 %v2199, %v2198
  %v2209 = vpack.c.b16 %v2201, %v2200
  %2218 = vmatprep.subr.bf16.mxu0 0
  %2219 = vmatpush1.bf16.msra.mxu0 %v2209
  %2220 = vmatprep.subr.bf16.mxu0 0
  %2221 = vmatpush1.bf16.msra.mxu0 %v2208
  %2222 = vmatprep.subr.bf16.mxu0 0
  %2223 = vmatpush1.bf16.msra.mxu0 %v2207
  %2224 = vmatprep.subr.bf16.mxu0 0
  %2225 = vmatpush1.bf16.msra.mxu0 %v2206
  %2226 = vmatprep.subr.bf16.mxu0 0
  %2227 = vmatpush1.bf16.msra.mxu0 %v2205
  %2228 = vmatprep.subr.bf16.mxu0 0
  %2229 = vmatpush1.bf16.msra.mxu0 %v2204
  %2230 = vmatprep.subr.bf16.mxu0 0
  %2231 = vmatpush1.bf16.msra.mxu0 %v2203
  %2232 = vmatprep.subr.bf16.mxu0 0
  %2233 = vmatpush1.bf16.msra.mxu0 %v2202
  %2234 = vmatprep.subr.bf16.mxu0 0
  %2235 = vmatpush2.bf16.msra.mxu0 0
  %2236 = vmatprep.subr.bf16.mxu0 0
  %2237 = vmatpush2.bf16.msra.mxu0 0
  %2238 = vmatprep.subr.bf16.mxu0 0
  %2239 = vmatpush2.bf16.msra.mxu0 0
  %2240 = vmatprep.subr.bf16.mxu0 0
  %2241 = vmatpush2.bf16.msra.mxu0 0
  %2242 = vmatprep.subr.bf16.mxu0 0
  %2243 = vmatpush2.bf16.msra.mxu0 0
  %2244 = vmatprep.subr.bf16.mxu0 0
  %2245 = vmatpush2.bf16.msra.mxu0 0
  %2246 = vmatprep.subr.bf16.mxu0 0
  %2247 = vmatpush2.bf16.msra.mxu0 0
  %2248 = vmatprep.subr.bf16.mxu0 0
  %2249 = vmatpush2.bf16.msra.mxu0 0
  %2250 = vmatprep.mubr.bf16.mxu0 0
  %2251 = vmatmul.mubr.bf16.gmra.mxu0 %v2150
  %v2252 = vpop.f32.mrf.mxu0
  %v2253 = vadd.f32 0.0, %v2252
  %v2254 = vpop.f32.mrf.mxu0
  %v2255 = vpop.f32.mrf.mxu0
  %v2256 = vadd.f32 0.0, %v2255
  %v2257 = vpop.f32.mrf.mxu0
  %2258 = vmatprep.mubr.bf16.mxu0 0
  %2259 = vmatmul.mubr.bf16.gmra.mxu0 %v2151
  %v2260 = vpop.f32.mrf.mxu0
  %v2261 = vadd.f32 0.0, %v2260
  %v2262 = vpop.f32.mrf.mxu0
  %v2263 = vpop.f32.mrf.mxu0
  %v2264 = vadd.f32 0.0, %v2263
  %v2265 = vpop.f32.mrf.mxu0
  %2266 = vmatprep.mubr.bf16.mxu0 0
  %2267 = vmatmul.mubr.bf16.gmra.mxu0 %v2152
  %v2268 = vpop.f32.mrf.mxu0
  %v2269 = vadd.f32 0.0, %v2268
  %v2270 = vpop.f32.mrf.mxu0
  %v2271 = vpop.f32.mrf.mxu0
  %v2272 = vadd.f32 0.0, %v2271
  %v2273 = vpop.f32.mrf.mxu0
  %2274 = vdwg.mxu0
  %v2275 = vadd.f32 %v2138, %v2253
  %v2276 = vadd.f32 %v2139, %v2256
  %v2277 = vadd.f32 %v2140, %v2261
  %v2278 = vadd.f32 %v2141, %v2264
  %v2279 = vadd.f32 %v2142, %v2269
  %v2280 = vadd.f32 %v2143, %v2272
  %v2281 = vld [vmem:[#allocation3 + $0x11] sm:$0xff]
  %v2282 = vld [vmem:[#allocation3 + $0x19] sm:$0xff]
  %v2283 = vld [vmem:[#allocation3 + $0x21] sm:$0xff]
  %v2284 = vld [vmem:[#allocation3 + $0x29] sm:$0xff]
  %v2285 = vld [vmem:[#allocation3 + $0x31] sm:$0xff]
  %v2286 = vld [vmem:[#allocation3 + $0x39] sm:$0xff]
  %v2287 = vpack.c.bf16 %v2282, %v2281
  %v2288 = vpack.c.bf16 %v2284, %v2283
  %v2289 = vpack.c.bf16 %v2286, %v2285
  %s2290 = scalar_lea.vmem %s3, 256
  %v2291 = vld [vmem:[%s2290] sm:$0xf]
  %v2292 = vld [vmem:[%s2290 + $0x4] sm:$0xf]
  %v2293 = vld [vmem:[%s2290 + $0x8] sm:$0xf]
  %v2294 = vld [vmem:[%s2290 + $0xc] sm:$0xf]
  %v2295 = vld [vmem:[%s2290 + $0x10] sm:$0xf]
  %v2296 = vld [vmem:[%s2290 + $0x14] sm:$0xf]
  %v2297 = vld [vmem:[%s2290 + $0x18] sm:$0xf]
  %v2298 = vld [vmem:[%s2290 + $0x1c] sm:$0xf]
  %v2299 = vld [vmem:[%s2290 + $0x20] sm:$0xf]
  %v2300 = vld [vmem:[%s2290 + $0x24] sm:$0xf]
  %v2301 = vld [vmem:[%s2290 + $0x28] sm:$0xf]
  %v2302 = vld [vmem:[%s2290 + $0x2c] sm:$0xf]
  %v2303 = vld [vmem:[%s2290 + $0x30] sm:$0xf]
  %v2304 = vld [vmem:[%s2290 + $0x34] sm:$0xf]
  %v2305 = vld [vmem:[%s2290 + $0x38] sm:$0xf]
  %v2306 = vld [vmem:[%s2290 + $0x3c] sm:$0xf]
  %v2323 = vunpack.c.l.b16 %v2291
  %v2324 = vunpack.c.l.b16 %v2292
  %v2325 = vunpack.c.l.b16 %v2293
  %v2326 = vunpack.c.l.b16 %v2294
  %v2327 = vunpack.c.l.b16 %v2295
  %v2328 = vunpack.c.l.b16 %v2296
  %v2329 = vunpack.c.l.b16 %v2297
  %v2330 = vunpack.c.l.b16 %v2298
  %v2331 = vunpack.c.l.b16 %v2299
  %v2332 = vunpack.c.l.b16 %v2300
  %v2333 = vunpack.c.l.b16 %v2301
  %v2334 = vunpack.c.l.b16 %v2302
  %v2335 = vunpack.c.l.b16 %v2303
  %v2336 = vunpack.c.l.b16 %v2304
  %v2337 = vunpack.c.l.b16 %v2305
  %v2338 = vunpack.c.l.b16 %v2306
  %v2339 = vpack.c.b16 %v2324, %v2323
  %v2340 = vpack.c.b16 %v2326, %v2325
  %v2341 = vpack.c.b16 %v2328, %v2327
  %v2342 = vpack.c.b16 %v2330, %v2329
  %v2343 = vpack.c.b16 %v2332, %v2331
  %v2344 = vpack.c.b16 %v2334, %v2333
  %v2345 = vpack.c.b16 %v2336, %v2335
  %v2346 = vpack.c.b16 %v2338, %v2337
  %2355 = vmatprep.subr.bf16.mxu0 0
  %2356 = vmatpush1.bf16.msra.mxu0 %v2346
  %2357 = vmatprep.subr.bf16.mxu0 0
  %2358 = vmatpush1.bf16.msra.mxu0 %v2345
  %2359 = vmatprep.subr.bf16.mxu0 0
  %2360 = vmatpush1.bf16.msra.mxu0 %v2344
  %2361 = vmatprep.subr.bf16.mxu0 0
  %2362 = vmatpush1.bf16.msra.mxu0 %v2343
  %2363 = vmatprep.subr.bf16.mxu0 0
  %2364 = vmatpush1.bf16.msra.mxu0 %v2342
  %2365 = vmatprep.subr.bf16.mxu0 0
  %2366 = vmatpush1.bf16.msra.mxu0 %v2341
  %2367 = vmatprep.subr.bf16.mxu0 0
  %2368 = vmatpush1.bf16.msra.mxu0 %v2340
  %2369 = vmatprep.subr.bf16.mxu0 0
  %2370 = vmatpush1.bf16.msra.mxu0 %v2339
  %2371 = vmatprep.subr.bf16.mxu0 0
  %2372 = vmatpush2.bf16.msra.mxu0 0
  %2373 = vmatprep.subr.bf16.mxu0 0
  %2374 = vmatpush2.bf16.msra.mxu0 0
  %2375 = vmatprep.subr.bf16.mxu0 0
  %2376 = vmatpush2.bf16.msra.mxu0 0
  %2377 = vmatprep.subr.bf16.mxu0 0
  %2378 = vmatpush2.bf16.msra.mxu0 0
  %2379 = vmatprep.subr.bf16.mxu0 0
  %2380 = vmatpush2.bf16.msra.mxu0 0
  %2381 = vmatprep.subr.bf16.mxu0 0
  %2382 = vmatpush2.bf16.msra.mxu0 0
  %2383 = vmatprep.subr.bf16.mxu0 0
  %2384 = vmatpush2.bf16.msra.mxu0 0
  %2385 = vmatprep.subr.bf16.mxu0 0
  %2386 = vmatpush2.bf16.msra.mxu0 0
  %2387 = vmatprep.mubr.bf16.mxu0 0
  %2388 = vmatmul.mubr.bf16.gmra.mxu0 %v2287
  %v2389 = vpop.f32.mrf.mxu0
  %v2390 = vadd.f32 0.0, %v2389
  %v2391 = vpop.f32.mrf.mxu0
  %v2392 = vpop.f32.mrf.mxu0
  %v2393 = vadd.f32 0.0, %v2392
  %v2394 = vpop.f32.mrf.mxu0
  %2395 = vmatprep.mubr.bf16.mxu0 0
  %2396 = vmatmul.mubr.bf16.gmra.mxu0 %v2288
  %v2397 = vpop.f32.mrf.mxu0
  %v2398 = vadd.f32 0.0, %v2397
  %v2399 = vpop.f32.mrf.mxu0
  %v2400 = vpop.f32.mrf.mxu0
  %v2401 = vadd.f32 0.0, %v2400
  %v2402 = vpop.f32.mrf.mxu0
  %2403 = vmatprep.mubr.bf16.mxu0 0
  %2404 = vmatmul.mubr.bf16.gmra.mxu0 %v2289
  %v2405 = vpop.f32.mrf.mxu0
  %v2406 = vadd.f32 0.0, %v2405
  %v2407 = vpop.f32.mrf.mxu0
  %v2408 = vpop.f32.mrf.mxu0
  %v2409 = vadd.f32 0.0, %v2408
  %v2410 = vpop.f32.mrf.mxu0
  %2411 = vdwg.mxu0
  %v2412 = vadd.f32 %v2275, %v2390
  %v2413 = vadd.f32 %v2276, %v2393
  %v2414 = vadd.f32 %v2277, %v2398
  %v2415 = vadd.f32 %v2278, %v2401
  %v2416 = vadd.f32 %v2279, %v2406
  %v2417 = vadd.f32 %v2280, %v2409
  %v2418 = vld [vmem:[#allocation3 + $0x12] sm:$0xff]
  %v2419 = vld [vmem:[#allocation3 + $0x1a] sm:$0xff]
  %v2420 = vld [vmem:[#allocation3 + $0x22] sm:$0xff]
  %v2421 = vld [vmem:[#allocation3 + $0x2a] sm:$0xff]
  %v2422 = vld [vmem:[#allocation3 + $0x32] sm:$0xff]
  %v2423 = vld [vmem:[#allocation3 + $0x3a] sm:$0xff]
  %v2424 = vpack.c.bf16 %v2419, %v2418
  %v2425 = vpack.c.bf16 %v2421, %v2420
  %v2426 = vpack.c.bf16 %v2423, %v2422
  %s2427 = scalar_lea.vmem %s3, 320
  %v2428 = vld [vmem:[%s2427] sm:$0xf]
  %v2429 = vld [vmem:[%s2427 + $0x4] sm:$0xf]
  %v2430 = vld [vmem:[%s2427 + $0x8] sm:$0xf]
  %v2431 = vld [vmem:[%s2427 + $0xc] sm:$0xf]
  %v2432 = vld [vmem:[%s2427 + $0x10] sm:$0xf]
  %v2433 = vld [vmem:[%s2427 + $0x14] sm:$0xf]
  %v2434 = vld [vmem:[%s2427 + $0x18] sm:$0xf]
  %v2435 = vld [vmem:[%s2427 + $0x1c] sm:$0xf]
  %v2436 = vld [vmem:[%s2427 + $0x20] sm:$0xf]
  %v2437 = vld [vmem:[%s2427 + $0x24] sm:$0xf]
  %v2438 = vld [vmem:[%s2427 + $0x28] sm:$0xf]
  %v2439 = vld [vmem:[%s2427 + $0x2c] sm:$0xf]
  %v2440 = vld [vmem:[%s2427 + $0x30] sm:$0xf]
  %v2441 = vld [vmem:[%s2427 + $0x34] sm:$0xf]
  %v2442 = vld [vmem:[%s2427 + $0x38] sm:$0xf]
  %v2443 = vld [vmem:[%s2427 + $0x3c] sm:$0xf]
  %v2460 = vunpack.c.l.b16 %v2428
  %v2461 = vunpack.c.l.b16 %v2429
  %v2462 = vunpack.c.l.b16 %v2430
  %v2463 = vunpack.c.l.b16 %v2431
  %v2464 = vunpack.c.l.b16 %v2432
  %v2465 = vunpack.c.l.b16 %v2433
  %v2466 = vunpack.c.l.b16 %v2434
  %v2467 = vunpack.c.l.b16 %v2435
  %v2468 = vunpack.c.l.b16 %v2436
  %v2469 = vunpack.c.l.b16 %v2437
  %v2470 = vunpack.c.l.b16 %v2438
  %v2471 = vunpack.c.l.b16 %v2439
  %v2472 = vunpack.c.l.b16 %v2440
  %v2473 = vunpack.c.l.b16 %v2441
  %v2474 = vunpack.c.l.b16 %v2442
  %v2475 = vunpack.c.l.b16 %v2443
  %v2476 = vpack.c.b16 %v2461, %v2460
  %v2477 = vpack.c.b16 %v2463, %v2462
  %v2478 = vpack.c.b16 %v2465, %v2464
  %v2479 = vpack.c.b16 %v2467, %v2466
  %v2480 = vpack.c.b16 %v2469, %v2468
  %v2481 = vpack.c.b16 %v2471, %v2470
  %v2482 = vpack.c.b16 %v2473, %v2472
  %v2483 = vpack.c.b16 %v2475, %v2474
  %2492 = vmatprep.subr.bf16.mxu0 0
  %2493 = vmatpush1.bf16.msra.mxu0 %v2483
  %2494 = vmatprep.subr.bf16.mxu0 0
  %2495 = vmatpush1.bf16.msra.mxu0 %v2482
  %2496 = vmatprep.subr.bf16.mxu0 0
  %2497 = vmatpush1.bf16.msra.mxu0 %v2481
  %2498 = vmatprep.subr.bf16.mxu0 0
  %2499 = vmatpush1.bf16.msra.mxu0 %v2480
  %2500 = vmatprep.subr.bf16.mxu0 0
  %2501 = vmatpush1.bf16.msra.mxu0 %v2479
  %2502 = vmatprep.subr.bf16.mxu0 0
  %2503 = vmatpush1.bf16.msra.mxu0 %v2478
  %2504 = vmatprep.subr.bf16.mxu0 0
  %2505 = vmatpush1.bf16.msra.mxu0 %v2477
  %2506 = vmatprep.subr.bf16.mxu0 0
  %2507 = vmatpush1.bf16.msra.mxu0 %v2476
  %2508 = vmatprep.subr.bf16.mxu0 0
  %2509 = vmatpush2.bf16.msra.mxu0 0
  %2510 = vmatprep.subr.bf16.mxu0 0
  %2511 = vmatpush2.bf16.msra.mxu0 0
  %2512 = vmatprep.subr.bf16.mxu0 0
  %2513 = vmatpush2.bf16.msra.mxu0 0
  %2514 = vmatprep.subr.bf16.mxu0 0
  %2515 = vmatpush2.bf16.msra.mxu0 0
  %2516 = vmatprep.subr.bf16.mxu0 0
  %2517 = vmatpush2.bf16.msra.mxu0 0
  %2518 = vmatprep.subr.bf16.mxu0 0
  %2519 = vmatpush2.bf16.msra.mxu0 0
  %2520 = vmatprep.subr.bf16.mxu0 0
  %2521 = vmatpush2.bf16.msra.mxu0 0
  %2522 = vmatprep.subr.bf16.mxu0 0
  %2523 = vmatpush2.bf16.msra.mxu0 0
  %2524 = vmatprep.mubr.bf16.mxu0 0
  %2525 = vmatmul.mubr.bf16.gmra.mxu0 %v2424
  %v2526 = vpop.f32.mrf.mxu0
  %v2527 = vadd.f32 0.0, %v2526
  %v2528 = vpop.f32.mrf.mxu0
  %v2529 = vpop.f32.mrf.mxu0
  %v2530 = vadd.f32 0.0, %v2529
  %v2531 = vpop.f32.mrf.mxu0
  %2532 = vmatprep.mubr.bf16.mxu0 0
  %2533 = vmatmul.mubr.bf16.gmra.mxu0 %v2425
  %v2534 = vpop.f32.mrf.mxu0
  %v2535 = vadd.f32 0.0, %v2534
  %v2536 = vpop.f32.mrf.mxu0
  %v2537 = vpop.f32.mrf.mxu0
  %v2538 = vadd.f32 0.0, %v2537
  %v2539 = vpop.f32.mrf.mxu0
  %2540 = vmatprep.mubr.bf16.mxu0 0
  %2541 = vmatmul.mubr.bf16.gmra.mxu0 %v2426
  %v2542 = vpop.f32.mrf.mxu0
  %v2543 = vadd.f32 0.0, %v2542
  %v2544 = vpop.f32.mrf.mxu0
  %v2545 = vpop.f32.mrf.mxu0
  %v2546 = vadd.f32 0.0, %v2545
  %v2547 = vpop.f32.mrf.mxu0
  %2548 = vdwg.mxu0
  %v2549 = vadd.f32 %v2412, %v2527
  %v2550 = vadd.f32 %v2413, %v2530
  %v2551 = vadd.f32 %v2414, %v2535
  %v2552 = vadd.f32 %v2415, %v2538
  %v2553 = vadd.f32 %v2416, %v2543
  %v2554 = vadd.f32 %v2417, %v2546
  %v2555 = vld [vmem:[#allocation3 + $0x20] sm:$0xff]
  %v2556 = vld [vmem:[#allocation3 + $0x28] sm:$0xff]
  %v2557 = vld [vmem:[#allocation3 + $0x30] sm:$0xff]
  %v2558 = vld [vmem:[#allocation3 + $0x38] sm:$0xff]
  %v2559 = vld [vmem:[#allocation3 + $0x40] sm:$0xff]
  %v2560 = vld [vmem:[#allocation3 + $0x48] sm:$0xff]
  %v2561 = vpack.c.bf16 %v2556, %v2555
  %v2562 = vpack.c.bf16 %v2558, %v2557
  %v2563 = vpack.c.bf16 %v2560, %v2559
  %s2564 = scalar_lea.vmem %s3, 384
  %v2565 = vld [vmem:[%s2564] sm:$0xf]
  %v2566 = vld [vmem:[%s2564 + $0x4] sm:$0xf]
  %v2567 = vld [vmem:[%s2564 + $0x8] sm:$0xf]
  %v2568 = vld [vmem:[%s2564 + $0xc] sm:$0xf]
  %v2569 = vld [vmem:[%s2564 + $0x10] sm:$0xf]
  %v2570 = vld [vmem:[%s2564 + $0x14] sm:$0xf]
  %v2571 = vld [vmem:[%s2564 + $0x18] sm:$0xf]
  %v2572 = vld [vmem:[%s2564 + $0x1c] sm:$0xf]
  %v2573 = vld [vmem:[%s2564 + $0x20] sm:$0xf]
  %v2574 = vld [vmem:[%s2564 + $0x24] sm:$0xf]
  %v2575 = vld [vmem:[%s2564 + $0x28] sm:$0xf]
  %v2576 = vld [vmem:[%s2564 + $0x2c] sm:$0xf]
  %v2577 = vld [vmem:[%s2564 + $0x30] sm:$0xf]
  %v2578 = vld [vmem:[%s2564 + $0x34] sm:$0xf]
  %v2579 = vld [vmem:[%s2564 + $0x38] sm:$0xf]
  %v2580 = vld [vmem:[%s2564 + $0x3c] sm:$0xf]
  %v2597 = vunpack.c.l.b16 %v2565
  %v2598 = vunpack.c.l.b16 %v2566
  %v2599 = vunpack.c.l.b16 %v2567
  %v2600 = vunpack.c.l.b16 %v2568
  %v2601 = vunpack.c.l.b16 %v2569
  %v2602 = vunpack.c.l.b16 %v2570
  %v2603 = vunpack.c.l.b16 %v2571
  %v2604 = vunpack.c.l.b16 %v2572
  %v2605 = vunpack.c.l.b16 %v2573
  %v2606 = vunpack.c.l.b16 %v2574
  %v2607 = vunpack.c.l.b16 %v2575
  %v2608 = vunpack.c.l.b16 %v2576
  %v2609 = vunpack.c.l.b16 %v2577
  %v2610 = vunpack.c.l.b16 %v2578
  %v2611 = vunpack.c.l.b16 %v2579
  %v2612 = vunpack.c.l.b16 %v2580
  %v2613 = vpack.c.b16 %v2598, %v2597
  %v2614 = vpack.c.b16 %v2600, %v2599
  %v2615 = vpack.c.b16 %v2602, %v2601
  %v2616 = vpack.c.b16 %v2604, %v2603
  %v2617 = vpack.c.b16 %v2606, %v2605
  %v2618 = vpack.c.b16 %v2608, %v2607
  %v2619 = vpack.c.b16 %v2610, %v2609
  %v2620 = vpack.c.b16 %v2612, %v2611
  %2629 = vmatprep.subr.bf16.mxu0 0
  %2630 = vmatpush1.bf16.msra.mxu0 %v2620
  %2631 = vmatprep.subr.bf16.mxu0 0
  %2632 = vmatpush1.bf16.msra.mxu0 %v2619
  %2633 = vmatprep.subr.bf16.mxu0 0
  %2634 = vmatpush1.bf16.msra.mxu0 %v2618
  %2635 = vmatprep.subr.bf16.mxu0 0
  %2636 = vmatpush1.bf16.msra.mxu0 %v2617
  %2637 = vmatprep.subr.bf16.mxu0 0
  %2638 = vmatpush1.bf16.msra.mxu0 %v2616
  %2639 = vmatprep.subr.bf16.mxu0 0
  %2640 = vmatpush1.bf16.msra.mxu0 %v2615
  %2641 = vmatprep.subr.bf16.mxu0 0
  %2642 = vmatpush1.bf16.msra.mxu0 %v2614
  %2643 = vmatprep.subr.bf16.mxu0 0
  %2644 = vmatpush1.bf16.msra.mxu0 %v2613
  %2645 = vmatprep.subr.bf16.mxu0 0
  %2646 = vmatpush2.bf16.msra.mxu0 0
  %2647 = vmatprep.subr.bf16.mxu0 0
  %2648 = vmatpush2.bf16.msra.mxu0 0
  %2649 = vmatprep.subr.bf16.mxu0 0
  %2650 = vmatpush2.bf16.msra.mxu0 0
  %2651 = vmatprep.subr.bf16.mxu0 0
  %2652 = vmatpush2.bf16.msra.mxu0 0
  %2653 = vmatprep.subr.bf16.mxu0 0
  %2654 = vmatpush2.bf16.msra.mxu0 0
  %2655 = vmatprep.subr.bf16.mxu0 0
  %2656 = vmatpush2.bf16.msra.mxu0 0
  %2657 = vmatprep.subr.bf16.mxu0 0
  %2658 = vmatpush2.bf16.msra.mxu0 0
  %2659 = vmatprep.subr.bf16.mxu0 0
  %2660 = vmatpush2.bf16.msra.mxu0 0
  %2661 = vmatprep.mubr.bf16.mxu0 0
  %2662 = vmatmul.mubr.bf16.gmra.mxu0 %v2561
  %v2663 = vpop.f32.mrf.mxu0
  %v2664 = vadd.f32 0.0, %v2663
  %v2665 = vpop.f32.mrf.mxu0
  %v2666 = vpop.f32.mrf.mxu0
  %v2667 = vadd.f32 0.0, %v2666
  %v2668 = vpop.f32.mrf.mxu0
  %2669 = vmatprep.mubr.bf16.mxu0 0
  %2670 = vmatmul.mubr.bf16.gmra.mxu0 %v2562
  %v2671 = vpop.f32.mrf.mxu0
  %v2672 = vadd.f32 0.0, %v2671
  %v2673 = vpop.f32.mrf.mxu0
  %v2674 = vpop.f32.mrf.mxu0
  %v2675 = vadd.f32 0.0, %v2674
  %v2676 = vpop.f32.mrf.mxu0
  %2677 = vmatprep.mubr.bf16.mxu0 0
  %2678 = vmatmul.mubr.bf16.gmra.mxu0 %v2563
  %v2679 = vpop.f32.mrf.mxu0
  %v2680 = vadd.f32 0.0, %v2679
  %v2681 = vpop.f32.mrf.mxu0
  %v2682 = vpop.f32.mrf.mxu0
  %v2683 = vadd.f32 0.0, %v2682
  %v2684 = vpop.f32.mrf.mxu0
  %2685 = vdwg.mxu0
  %v2686 = vadd.f32 %v2549, %v2664
  %v2687 = vadd.f32 %v2550, %v2667
  %v2688 = vadd.f32 %v2551, %v2672
  %v2689 = vadd.f32 %v2552, %v2675
  %v2690 = vadd.f32 %v2553, %v2680
  %v2691 = vadd.f32 %v2554, %v2683
  %v2692 = vld [vmem:[#allocation3 + $0x21] sm:$0xff]
  %v2693 = vld [vmem:[#allocation3 + $0x29] sm:$0xff]
  %v2694 = vld [vmem:[#allocation3 + $0x31] sm:$0xff]
  %v2695 = vld [vmem:[#allocation3 + $0x39] sm:$0xff]
  %v2696 = vld [vmem:[#allocation3 + $0x41] sm:$0xff]
  %v2697 = vld [vmem:[#allocation3 + $0x49] sm:$0xff]
  %v2698 = vpack.c.bf16 %v2693, %v2692
  %v2699 = vpack.c.bf16 %v2695, %v2694
  %v2700 = vpack.c.bf16 %v2697, %v2696
  %s2701 = scalar_lea.vmem %s3, 448
  %v2702 = vld [vmem:[%s2701] sm:$0xf]
  %v2703 = vld [vmem:[%s2701 + $0x4] sm:$0xf]
  %v2704 = vld [vmem:[%s2701 + $0x8] sm:$0xf]
  %v2705 = vld [vmem:[%s2701 + $0xc] sm:$0xf]
  %v2706 = vld [vmem:[%s2701 + $0x10] sm:$0xf]
  %v2707 = vld [vmem:[%s2701 + $0x14] sm:$0xf]
  %v2708 = vld [vmem:[%s2701 + $0x18] sm:$0xf]
  %v2709 = vld [vmem:[%s2701 + $0x1c] sm:$0xf]
  %v2710 = vld [vmem:[%s2701 + $0x20] sm:$0xf]
  %v2711 = vld [vmem:[%s2701 + $0x24] sm:$0xf]
  %v2712 = vld [vmem:[%s2701 + $0x28] sm:$0xf]
  %v2713 = vld [vmem:[%s2701 + $0x2c] sm:$0xf]
  %v2714 = vld [vmem:[%s2701 + $0x30] sm:$0xf]
  %v2715 = vld [vmem:[%s2701 + $0x34] sm:$0xf]
  %v2716 = vld [vmem:[%s2701 + $0x38] sm:$0xf]
  %v2717 = vld [vmem:[%s2701 + $0x3c] sm:$0xf]
  %v2734 = vunpack.c.l.b16 %v2702
  %v2735 = vunpack.c.l.b16 %v2703
  %v2736 = vunpack.c.l.b16 %v2704
  %v2737 = vunpack.c.l.b16 %v2705
  %v2738 = vunpack.c.l.b16 %v2706
  %v2739 = vunpack.c.l.b16 %v2707
  %v2740 = vunpack.c.l.b16 %v2708
  %v2741 = vunpack.c.l.b16 %v2709
  %v2742 = vunpack.c.l.b16 %v2710
  %v2743 = vunpack.c.l.b16 %v2711
  %v2744 = vunpack.c.l.b16 %v2712
  %v2745 = vunpack.c.l.b16 %v2713
  %v2746 = vunpack.c.l.b16 %v2714
  %v2747 = vunpack.c.l.b16 %v2715
  %v2748 = vunpack.c.l.b16 %v2716
  %v2749 = vunpack.c.l.b16 %v2717
  %v2750 = vpack.c.b16 %v2735, %v2734
  %v2751 = vpack.c.b16 %v2737, %v2736
  %v2752 = vpack.c.b16 %v2739, %v2738
  %v2753 = vpack.c.b16 %v2741, %v2740
  %v2754 = vpack.c.b16 %v2743, %v2742
  %v2755 = vpack.c.b16 %v2745, %v2744
  %v2756 = vpack.c.b16 %v2747, %v2746
  %v2757 = vpack.c.b16 %v2749, %v2748
  %2766 = vmatprep.subr.bf16.mxu0 0
  %2767 = vmatpush1.bf16.msra.mxu0 %v2757
  %2768 = vmatprep.subr.bf16.mxu0 0
  %2769 = vmatpush1.bf16.msra.mxu0 %v2756
  %2770 = vmatprep.subr.bf16.mxu0 0
  %2771 = vmatpush1.bf16.msra.mxu0 %v2755
  %2772 = vmatprep.subr.bf16.mxu0 0
  %2773 = vmatpush1.bf16.msra.mxu0 %v2754
  %2774 = vmatprep.subr.bf16.mxu0 0
  %2775 = vmatpush1.bf16.msra.mxu0 %v2753
  %2776 = vmatprep.subr.bf16.mxu0 0
  %2777 = vmatpush1.bf16.msra.mxu0 %v2752
  %2778 = vmatprep.subr.bf16.mxu0 0
  %2779 = vmatpush1.bf16.msra.mxu0 %v2751
  %2780 = vmatprep.subr.bf16.mxu0 0
  %2781 = vmatpush1.bf16.msra.mxu0 %v2750
  %2782 = vmatprep.subr.bf16.mxu0 0
  %2783 = vmatpush2.bf16.msra.mxu0 0
  %2784 = vmatprep.subr.bf16.mxu0 0
  %2785 = vmatpush2.bf16.msra.mxu0 0
  %2786 = vmatprep.subr.bf16.mxu0 0
  %2787 = vmatpush2.bf16.msra.mxu0 0
  %2788 = vmatprep.subr.bf16.mxu0 0
  %2789 = vmatpush2.bf16.msra.mxu0 0
  %2790 = vmatprep.subr.bf16.mxu0 0
  %2791 = vmatpush2.bf16.msra.mxu0 0
  %2792 = vmatprep.subr.bf16.mxu0 0
  %2793 = vmatpush2.bf16.msra.mxu0 0
  %2794 = vmatprep.subr.bf16.mxu0 0
  %2795 = vmatpush2.bf16.msra.mxu0 0
  %2796 = vmatprep.subr.bf16.mxu0 0
  %2797 = vmatpush2.bf16.msra.mxu0 0
  %2798 = vmatprep.mubr.bf16.mxu0 0
  %2799 = vmatmul.mubr.bf16.gmra.mxu0 %v2698
  %v2800 = vpop.f32.mrf.mxu0
  %v2801 = vadd.f32 0.0, %v2800
  %v2802 = vpop.f32.mrf.mxu0
  %v2803 = vpop.f32.mrf.mxu0
  %v2804 = vadd.f32 0.0, %v2803
  %v2805 = vpop.f32.mrf.mxu0
  %2806 = vmatprep.mubr.bf16.mxu0 0
  %2807 = vmatmul.mubr.bf16.gmra.mxu0 %v2699
  %v2808 = vpop.f32.mrf.mxu0
  %v2809 = vadd.f32 0.0, %v2808
  %v2810 = vpop.f32.mrf.mxu0
  %v2811 = vpop.f32.mrf.mxu0
  %v2812 = vadd.f32 0.0, %v2811
  %v2813 = vpop.f32.mrf.mxu0
  %2814 = vmatprep.mubr.bf16.mxu0 0
  %2815 = vmatmul.mubr.bf16.gmra.mxu0 %v2700
  %v2816 = vpop.f32.mrf.mxu0
  %v2817 = vadd.f32 0.0, %v2816
  %v2818 = vpop.f32.mrf.mxu0
  %v2819 = vpop.f32.mrf.mxu0
  %v2820 = vadd.f32 0.0, %v2819
  %v2821 = vpop.f32.mrf.mxu0
  %2822 = vdwg.mxu0
  %v2823 = vadd.f32 %v2686, %v2801
  %v2824 = vadd.f32 %v2687, %v2804
  %v2825 = vadd.f32 %v2688, %v2809
  %v2826 = vadd.f32 %v2689, %v2812
  %v2827 = vadd.f32 %v2690, %v2817
  %v2828 = vadd.f32 %v2691, %v2820
  %v2829 = vld [vmem:[#allocation3 + $0x22] sm:$0xff]
  %v2830 = vld [vmem:[#allocation3 + $0x2a] sm:$0xff]
  %v2831 = vld [vmem:[#allocation3 + $0x32] sm:$0xff]
  %v2832 = vld [vmem:[#allocation3 + $0x3a] sm:$0xff]
  %v2833 = vld [vmem:[#allocation3 + $0x42] sm:$0xff]
  %v2834 = vld [vmem:[#allocation3 + $0x4a] sm:$0xff]
  %v2835 = vpack.c.bf16 %v2830, %v2829
  %v2836 = vpack.c.bf16 %v2832, %v2831
  %v2837 = vpack.c.bf16 %v2834, %v2833
  %s2838 = scalar_lea.vmem %s3, 512
  %v2839 = vld [vmem:[%s2838] sm:$0xf]
  %v2840 = vld [vmem:[%s2838 + $0x4] sm:$0xf]
  %v2841 = vld [vmem:[%s2838 + $0x8] sm:$0xf]
  %v2842 = vld [vmem:[%s2838 + $0xc] sm:$0xf]
  %v2843 = vld [vmem:[%s2838 + $0x10] sm:$0xf]
  %v2844 = vld [vmem:[%s2838 + $0x14] sm:$0xf]
  %v2845 = vld [vmem:[%s2838 + $0x18] sm:$0xf]
  %v2846 = vld [vmem:[%s2838 + $0x1c] sm:$0xf]
  %v2847 = vld [vmem:[%s2838 + $0x20] sm:$0xf]
  %v2848 = vld [vmem:[%s2838 + $0x24] sm:$0xf]
  %v2849 = vld [vmem:[%s2838 + $0x28] sm:$0xf]
  %v2850 = vld [vmem:[%s2838 + $0x2c] sm:$0xf]
  %v2851 = vld [vmem:[%s2838 + $0x30] sm:$0xf]
  %v2852 = vld [vmem:[%s2838 + $0x34] sm:$0xf]
  %v2853 = vld [vmem:[%s2838 + $0x38] sm:$0xf]
  %v2854 = vld [vmem:[%s2838 + $0x3c] sm:$0xf]
  %v2871 = vunpack.c.l.b16 %v2839
  %v2872 = vunpack.c.l.b16 %v2840
  %v2873 = vunpack.c.l.b16 %v2841
  %v2874 = vunpack.c.l.b16 %v2842
  %v2875 = vunpack.c.l.b16 %v2843
  %v2876 = vunpack.c.l.b16 %v2844
  %v2877 = vunpack.c.l.b16 %v2845
  %v2878 = vunpack.c.l.b16 %v2846
  %v2879 = vunpack.c.l.b16 %v2847
  %v2880 = vunpack.c.l.b16 %v2848
  %v2881 = vunpack.c.l.b16 %v2849
  %v2882 = vunpack.c.l.b16 %v2850
  %v2883 = vunpack.c.l.b16 %v2851
  %v2884 = vunpack.c.l.b16 %v2852
  %v2885 = vunpack.c.l.b16 %v2853
  %v2886 = vunpack.c.l.b16 %v2854
  %v2887 = vpack.c.b16 %v2872, %v2871
  %v2888 = vpack.c.b16 %v2874, %v2873
  %v2889 = vpack.c.b16 %v2876, %v2875
  %v2890 = vpack.c.b16 %v2878, %v2877
  %v2891 = vpack.c.b16 %v2880, %v2879
  %v2892 = vpack.c.b16 %v2882, %v2881
  %v2893 = vpack.c.b16 %v2884, %v2883
  %v2894 = vpack.c.b16 %v2886, %v2885
  %2903 = vmatprep.subr.bf16.mxu0 0
  %2904 = vmatpush1.bf16.msra.mxu0 %v2894
  %2905 = vmatprep.subr.bf16.mxu0 0
  %2906 = vmatpush1.bf16.msra.mxu0 %v2893
  %2907 = vmatprep.subr.bf16.mxu0 0
  %2908 = vmatpush1.bf16.msra.mxu0 %v2892
  %2909 = vmatprep.subr.bf16.mxu0 0
  %2910 = vmatpush1.bf16.msra.mxu0 %v2891
  %2911 = vmatprep.subr.bf16.mxu0 0
  %2912 = vmatpush1.bf16.msra.mxu0 %v2890
  %2913 = vmatprep.subr.bf16.mxu0 0
  %2914 = vmatpush1.bf16.msra.mxu0 %v2889
  %2915 = vmatprep.subr.bf16.mxu0 0
  %2916 = vmatpush1.bf16.msra.mxu0 %v2888
  %2917 = vmatprep.subr.bf16.mxu0 0
  %2918 = vmatpush1.bf16.msra.mxu0 %v2887
  %2919 = vmatprep.subr.bf16.mxu0 0
  %2920 = vmatpush2.bf16.msra.mxu0 0
  %2921 = vmatprep.subr.bf16.mxu0 0
  %2922 = vmatpush2.bf16.msra.mxu0 0
  %2923 = vmatprep.subr.bf16.mxu0 0
  %2924 = vmatpush2.bf16.msra.mxu0 0
  %2925 = vmatprep.subr.bf16.mxu0 0
  %2926 = vmatpush2.bf16.msra.mxu0 0
  %2927 = vmatprep.subr.bf16.mxu0 0
  %2928 = vmatpush2.bf16.msra.mxu0 0
  %2929 = vmatprep.subr.bf16.mxu0 0
  %2930 = vmatpush2.bf16.msra.mxu0 0
  %2931 = vmatprep.subr.bf16.mxu0 0
  %2932 = vmatpush2.bf16.msra.mxu0 0
  %2933 = vmatprep.subr.bf16.mxu0 0
  %2934 = vmatpush2.bf16.msra.mxu0 0
  %2935 = vmatprep.mubr.bf16.mxu0 0
  %2936 = vmatmul.mubr.bf16.gmra.mxu0 %v2835
  %v2937 = vpop.f32.mrf.mxu0
  %v2938 = vadd.f32 0.0, %v2937
  %v2939 = vpop.f32.mrf.mxu0
  %v2940 = vpop.f32.mrf.mxu0
  %v2941 = vadd.f32 0.0, %v2940
  %v2942 = vpop.f32.mrf.mxu0
  %2943 = vmatprep.mubr.bf16.mxu0 0
  %2944 = vmatmul.mubr.bf16.gmra.mxu0 %v2836
  %v2945 = vpop.f32.mrf.mxu0
  %v2946 = vadd.f32 0.0, %v2945
  %v2947 = vpop.f32.mrf.mxu0
  %v2948 = vpop.f32.mrf.mxu0
  %v2949 = vadd.f32 0.0, %v2948
  %v2950 = vpop.f32.mrf.mxu0
  %2951 = vmatprep.mubr.bf16.mxu0 0
  %2952 = vmatmul.mubr.bf16.gmra.mxu0 %v2837
  %v2953 = vpop.f32.mrf.mxu0
  %v2954 = vadd.f32 0.0, %v2953
  %v2955 = vpop.f32.mrf.mxu0
  %v2956 = vpop.f32.mrf.mxu0
  %v2957 = vadd.f32 0.0, %v2956
  %v2958 = vpop.f32.mrf.mxu0
  %2959 = vdwg.mxu0
  %v2960 = vadd.f32 %v2823, %v2938
  %v2961 = vadd.f32 %v2824, %v2941
  %v2962 = vadd.f32 %v2825, %v2946
  %v2963 = vadd.f32 %v2826, %v2949
  %v2964 = vadd.f32 %v2827, %v2954
  %v2965 = vadd.f32 %v2828, %v2957
  %v2966 = vlaneseq
  %v2967 = vshrl.u32 %v2966, 7
  %v2968 = vsub.s32 2, %v2967
  %v2969 = vrot.slane %v24, %v2968
  %v2970 = vadd.f32 %v2960, %v2969
  %v2971 = vadd.f32 %v2961, %v2969
  %v2972 = vadd.f32 %v2962, %v2969
  %v2973 = vadd.f32 %v2963, %v2969
  %v2974 = vadd.f32 %v2964, %v2969
  %v2975 = vadd.f32 %v2965, %v2969
  %v2976 = vmax.f32 %v2970, 0.0
  %v2977 = vmax.f32 %v2971, 0.0
  %v2978 = vmax.f32 %v2972, 0.0
  %v2979 = vmax.f32 %v2973, 0.0
  %v2980 = vmax.f32 %v2974, 0.0
  %v2981 = vmax.f32 %v2975, 0.0
  %2982 = vst [vmem:[#allocation4] sm:$0xff] %v2976
  %2983 = vst [vmem:[#allocation4 + $0x8] sm:$0xff] %v2977
  %2984 = vst [vmem:[#allocation4 + $0x10] sm:$0xff] %v2978
  %2985 = vst [vmem:[#allocation4 + $0x18] sm:$0xff] %v2979
  %2986 = vst [vmem:[#allocation4 + $0x20] sm:$0xff] %v2980
  %2987 = vst [vmem:[#allocation4 + $0x28] sm:$0xff] %v2981
  %v2988 = vld [vmem:[#allocation4] sm:$0xff]
  %v2989 = vld [vmem:[#allocation4 + $0x8] sm:$0xff]
  %v2990 = vpack.c.bf16 %v2989, %v2988
  %v2991 = vld [vmem:[%s4] sm:$0xf]
  %v2992 = vld [vmem:[%s4 + $0x4] sm:$0xf]
  %v2993 = vld [vmem:[%s4 + $0x8] sm:$0xf]
  %v2994 = vld [vmem:[%s4 + $0xc] sm:$0xf]
  %v2995 = vld [vmem:[%s4 + $0x10] sm:$0xf]
  %v2996 = vld [vmem:[%s4 + $0x14] sm:$0xf]
  %v2997 = vld [vmem:[%s4 + $0x18] sm:$0xf]
  %v2998 = vld [vmem:[%s4 + $0x1c] sm:$0xf]
  %v2999 = vld [vmem:[%s4 + $0x20] sm:$0xf]
  %v3000 = vld [vmem:[%s4 + $0x24] sm:$0xf]
  %v3001 = vld [vmem:[%s4 + $0x28] sm:$0xf]
  %v3002 = vld [vmem:[%s4 + $0x2c] sm:$0xf]
  %v3003 = vld [vmem:[%s4 + $0x30] sm:$0xf]
  %v3004 = vld [vmem:[%s4 + $0x34] sm:$0xf]
  %v3005 = vld [vmem:[%s4 + $0x38] sm:$0xf]
  %v3006 = vld [vmem:[%s4 + $0x3c] sm:$0xf]
  %v3007 = vld [vmem:[#allocation4 + $0x1] sm:$0xff]
  %v3008 = vld [vmem:[#allocation4 + $0x9] sm:$0xff]
  %v3009 = vpack.c.bf16 %v3008, %v3007
  %s3010 = scalar_lea.vmem %s4, 64
  %v3011 = vld [vmem:[%s3010] sm:$0xf]
  %v3012 = vld [vmem:[%s3010 + $0x4] sm:$0xf]
  %v3013 = vld [vmem:[%s3010 + $0x8] sm:$0xf]
  %v3014 = vld [vmem:[%s3010 + $0xc] sm:$0xf]
  %v3015 = vld [vmem:[%s3010 + $0x10] sm:$0xf]
  %v3016 = vld [vmem:[%s3010 + $0x14] sm:$0xf]
  %v3017 = vld [vmem:[%s3010 + $0x18] sm:$0xf]
  %v3018 = vld [vmem:[%s3010 + $0x1c] sm:$0xf]
  %v3019 = vld [vmem:[%s3010 + $0x20] sm:$0xf]
  %v3020 = vld [vmem:[%s3010 + $0x24] sm:$0xf]
  %v3021 = vld [vmem:[%s3010 + $0x28] sm:$0xf]
  %v3022 = vld [vmem:[%s3010 + $0x2c] sm:$0xf]
  %v3023 = vld [vmem:[%s3010 + $0x30] sm:$0xf]
  %v3024 = vld [vmem:[%s3010 + $0x34] sm:$0xf]
  %v3025 = vld [vmem:[%s3010 + $0x38] sm:$0xf]
  %v3026 = vld [vmem:[%s3010 + $0x3c] sm:$0xf]
  %v3043 = vunpack.c.l.b16 %v3011
  %v3044 = vunpack.c.l.b16 %v3012
  %v3045 = vunpack.c.l.b16 %v3013
  %v3046 = vunpack.c.l.b16 %v3014
  %v3047 = vunpack.c.l.b16 %v3015
  %v3048 = vunpack.c.l.b16 %v3016
  %v3049 = vunpack.c.l.b16 %v3017
  %v3050 = vunpack.c.l.b16 %v3018
  %v3051 = vunpack.c.l.b16 %v3019
  %v3052 = vunpack.c.l.b16 %v3020
  %v3053 = vunpack.c.l.b16 %v3021
  %v3054 = vunpack.c.l.b16 %v3022
  %v3055 = vunpack.c.l.b16 %v3023
  %v3056 = vunpack.c.l.b16 %v3024
  %v3057 = vunpack.c.l.b16 %v3025
  %v3058 = vunpack.c.l.b16 %v3026
  %v3059 = vpack.c.b16 %v3044, %v3043
  %v3060 = vpack.c.b16 %v3046, %v3045
  %v3061 = vpack.c.b16 %v3048, %v3047
  %v3062 = vpack.c.b16 %v3050, %v3049
  %v3063 = vpack.c.b16 %v3052, %v3051
  %v3064 = vpack.c.b16 %v3054, %v3053
  %v3065 = vpack.c.b16 %v3056, %v3055
  %v3066 = vpack.c.b16 %v3058, %v3057
  %3075 = vmatprep.subr.bf16.mxu0 0
  %3076 = vmatpush1.bf16.msra.mxu0 %v3066
  %3077 = vmatprep.subr.bf16.mxu0 0
  %3078 = vmatpush1.bf16.msra.mxu0 %v3065
  %3079 = vmatprep.subr.bf16.mxu0 0
  %3080 = vmatpush1.bf16.msra.mxu0 %v3064
  %3081 = vmatprep.subr.bf16.mxu0 0
  %3082 = vmatpush1.bf16.msra.mxu0 %v3063
  %3083 = vmatprep.subr.bf16.mxu0 0
  %3084 = vmatpush1.bf16.msra.mxu0 %v3062
  %3085 = vmatprep.subr.bf16.mxu0 0
  %3086 = vmatpush1.bf16.msra.mxu0 %v3061
  %3087 = vmatprep.subr.bf16.mxu0 0
  %3088 = vmatpush1.bf16.msra.mxu0 %v3060
  %3089 = vmatprep.subr.bf16.mxu0 0
  %3090 = vmatpush1.bf16.msra.mxu0 %v3059
  %3091 = vmatprep.subr.bf16.mxu0 0
  %3092 = vmatpush2.bf16.msra.mxu0 0
  %3093 = vmatprep.subr.bf16.mxu0 0
  %3094 = vmatpush2.bf16.msra.mxu0 0
  %3095 = vmatprep.subr.bf16.mxu0 0
  %3096 = vmatpush2.bf16.msra.mxu0 0
  %3097 = vmatprep.subr.bf16.mxu0 0
  %3098 = vmatpush2.bf16.msra.mxu0 0
  %3099 = vmatprep.subr.bf16.mxu0 0
  %3100 = vmatpush2.bf16.msra.mxu0 0
  %3101 = vmatprep.subr.bf16.mxu0 0
  %3102 = vmatpush2.bf16.msra.mxu0 0
  %3103 = vmatprep.subr.bf16.mxu0 0
  %3104 = vmatpush2.bf16.msra.mxu0 0
  %3105 = vmatprep.subr.bf16.mxu0 0
  %3106 = vmatpush2.bf16.msra.mxu0 0
  %3107 = vmatprep.mubr.bf16.mxu0 0
  %3108 = vmatmul.mubr.bf16.gmra.mxu0 %v3009
  %v3109 = vpop.f32.mrf.mxu0
  %v3110 = vadd.f32 0.0, %v3109
  %v3111 = vpop.f32.mrf.mxu0
  %v3112 = vpop.f32.mrf.mxu0
  %v3113 = vadd.f32 0.0, %v3112
  %v3114 = vpop.f32.mrf.mxu0
  %3115 = vdwg.mxu0
  %v3132 = vunpack.c.l.b16 %v2991
  %v3133 = vunpack.c.l.b16 %v2992
  %v3134 = vunpack.c.l.b16 %v2993
  %v3135 = vunpack.c.l.b16 %v2994
  %v3136 = vunpack.c.l.b16 %v2995
  %v3137 = vunpack.c.l.b16 %v2996
  %v3138 = vunpack.c.l.b16 %v2997
  %v3139 = vunpack.c.l.b16 %v2998
  %v3140 = vunpack.c.l.b16 %v2999
  %v3141 = vunpack.c.l.b16 %v3000
  %v3142 = vunpack.c.l.b16 %v3001
  %v3143 = vunpack.c.l.b16 %v3002
  %v3144 = vunpack.c.l.b16 %v3003
  %v3145 = vunpack.c.l.b16 %v3004
  %v3146 = vunpack.c.l.b16 %v3005
  %v3147 = vunpack.c.l.b16 %v3006
  %v3148 = vpack.c.b16 %v3133, %v3132
  %v3149 = vpack.c.b16 %v3135, %v3134
  %v3150 = vpack.c.b16 %v3137, %v3136
  %v3151 = vpack.c.b16 %v3139, %v3138
  %v3152 = vpack.c.b16 %v3141, %v3140
  %v3153 = vpack.c.b16 %v3143, %v3142
  %v3154 = vpack.c.b16 %v3145, %v3144
  %v3155 = vpack.c.b16 %v3147, %v3146
  %3164 = vmatprep.subr.bf16.mxu0 0
  %3165 = vmatpush1.bf16.msra.mxu0 %v3155
  %3166 = vmatprep.subr.bf16.mxu0 0
  %3167 = vmatpush1.bf16.msra.mxu0 %v3154
  %3168 = vmatprep.subr.bf16.mxu0 0
  %3169 = vmatpush1.bf16.msra.mxu0 %v3153
  %3170 = vmatprep.subr.bf16.mxu0 0
  %3171 = vmatpush1.bf16.msra.mxu0 %v3152
  %3172 = vmatprep.subr.bf16.mxu0 0
  %3173 = vmatpush1.bf16.msra.mxu0 %v3151
  %3174 = vmatprep.subr.bf16.mxu0 0
  %3175 = vmatpush1.bf16.msra.mxu0 %v3150
  %3176 = vmatprep.subr.bf16.mxu0 0
  %3177 = vmatpush1.bf16.msra.mxu0 %v3149
  %3178 = vmatprep.subr.bf16.mxu0 0
  %3179 = vmatpush1.bf16.msra.mxu0 %v3148
  %3180 = vmatprep.subr.bf16.mxu0 0
  %3181 = vmatpush2.bf16.msra.mxu0 0
  %3182 = vmatprep.subr.bf16.mxu0 0
  %3183 = vmatpush2.bf16.msra.mxu0 0
  %3184 = vmatprep.subr.bf16.mxu0 0
  %3185 = vmatpush2.bf16.msra.mxu0 0
  %3186 = vmatprep.subr.bf16.mxu0 0
  %3187 = vmatpush2.bf16.msra.mxu0 0
  %3188 = vmatprep.subr.bf16.mxu0 0
  %3189 = vmatpush2.bf16.msra.mxu0 0
  %3190 = vmatprep.subr.bf16.mxu0 0
  %3191 = vmatpush2.bf16.msra.mxu0 0
  %3192 = vmatprep.subr.bf16.mxu0 0
  %3193 = vmatpush2.bf16.msra.mxu0 0
  %3194 = vmatprep.subr.bf16.mxu0 0
  %3195 = vmatpush2.bf16.msra.mxu0 0
  %3196 = vmatprep.mubr.bf16.mxu0 0
  %3197 = vmatmul.mubr.bf16.gmra.mxu0 %v2990
  %v3198 = vpop.f32.mrf.mxu0
  %v3199 = vadd.f32 %v3110, %v3198
  %v3200 = vpop.f32.mrf.mxu0
  %v3201 = vpop.f32.mrf.mxu0
  %v3202 = vadd.f32 %v3113, %v3201
  %v3203 = vpop.f32.mrf.mxu0
  %3204 = vdwg.mxu0
  %v3205 = vld [vmem:[#allocation4 + $0x2] sm:$0xff]
  %v3206 = vld [vmem:[#allocation4 + $0xa] sm:$0xff]
  %v3207 = vpack.c.bf16 %v3206, %v3205
  %s3208 = scalar_lea.vmem %s4, 128
  %v3209 = vld [vmem:[%s3208] sm:$0xf]
  %v3210 = vld [vmem:[%s3208 + $0x4] sm:$0xf]
  %v3211 = vld [vmem:[%s3208 + $0x8] sm:$0xf]
  %v3212 = vld [vmem:[%s3208 + $0xc] sm:$0xf]
  %v3213 = vld [vmem:[%s3208 + $0x10] sm:$0xf]
  %v3214 = vld [vmem:[%s3208 + $0x14] sm:$0xf]
  %v3215 = vld [vmem:[%s3208 + $0x18] sm:$0xf]
  %v3216 = vld [vmem:[%s3208 + $0x1c] sm:$0xf]
  %v3217 = vld [vmem:[%s3208 + $0x20] sm:$0xf]
  %v3218 = vld [vmem:[%s3208 + $0x24] sm:$0xf]
  %v3219 = vld [vmem:[%s3208 + $0x28] sm:$0xf]
  %v3220 = vld [vmem:[%s3208 + $0x2c] sm:$0xf]
  %v3221 = vld [vmem:[%s3208 + $0x30] sm:$0xf]
  %v3222 = vld [vmem:[%s3208 + $0x34] sm:$0xf]
  %v3223 = vld [vmem:[%s3208 + $0x38] sm:$0xf]
  %v3224 = vld [vmem:[%s3208 + $0x3c] sm:$0xf]
  %v3241 = vunpack.c.l.b16 %v3209
  %v3242 = vunpack.c.l.b16 %v3210
  %v3243 = vunpack.c.l.b16 %v3211
  %v3244 = vunpack.c.l.b16 %v3212
  %v3245 = vunpack.c.l.b16 %v3213
  %v3246 = vunpack.c.l.b16 %v3214
  %v3247 = vunpack.c.l.b16 %v3215
  %v3248 = vunpack.c.l.b16 %v3216
  %v3249 = vunpack.c.l.b16 %v3217
  %v3250 = vunpack.c.l.b16 %v3218
  %v3251 = vunpack.c.l.b16 %v3219
  %v3252 = vunpack.c.l.b16 %v3220
  %v3253 = vunpack.c.l.b16 %v3221
  %v3254 = vunpack.c.l.b16 %v3222
  %v3255 = vunpack.c.l.b16 %v3223
  %v3256 = vunpack.c.l.b16 %v3224
  %v3257 = vpack.c.b16 %v3242, %v3241
  %v3258 = vpack.c.b16 %v3244, %v3243
  %v3259 = vpack.c.b16 %v3246, %v3245
  %v3260 = vpack.c.b16 %v3248, %v3247
  %v3261 = vpack.c.b16 %v3250, %v3249
  %v3262 = vpack.c.b16 %v3252, %v3251
  %v3263 = vpack.c.b16 %v3254, %v3253
  %v3264 = vpack.c.b16 %v3256, %v3255
  %3273 = vmatprep.subr.bf16.mxu0 0
  %3274 = vmatpush1.bf16.msra.mxu0 %v3264
  %3275 = vmatprep.subr.bf16.mxu0 0
  %3276 = vmatpush1.bf16.msra.mxu0 %v3263
  %3277 = vmatprep.subr.bf16.mxu0 0
  %3278 = vmatpush1.bf16.msra.mxu0 %v3262
  %3279 = vmatprep.subr.bf16.mxu0 0
  %3280 = vmatpush1.bf16.msra.mxu0 %v3261
  %3281 = vmatprep.subr.bf16.mxu0 0
  %3282 = vmatpush1.bf16.msra.mxu0 %v3260
  %3283 = vmatprep.subr.bf16.mxu0 0
  %3284 = vmatpush1.bf16.msra.mxu0 %v3259
  %3285 = vmatprep.subr.bf16.mxu0 0
  %3286 = vmatpush1.bf16.msra.mxu0 %v3258
  %3287 = vmatprep.subr.bf16.mxu0 0
  %3288 = vmatpush1.bf16.msra.mxu0 %v3257
  %3289 = vmatprep.subr.bf16.mxu0 0
  %3290 = vmatpush2.bf16.msra.mxu0 0
  %3291 = vmatprep.subr.bf16.mxu0 0
  %3292 = vmatpush2.bf16.msra.mxu0 0
  %3293 = vmatprep.subr.bf16.mxu0 0
  %3294 = vmatpush2.bf16.msra.mxu0 0
  %3295 = vmatprep.subr.bf16.mxu0 0
  %3296 = vmatpush2.bf16.msra.mxu0 0
  %3297 = vmatprep.subr.bf16.mxu0 0
  %3298 = vmatpush2.bf16.msra.mxu0 0
  %3299 = vmatprep.subr.bf16.mxu0 0
  %3300 = vmatpush2.bf16.msra.mxu0 0
  %3301 = vmatprep.subr.bf16.mxu0 0
  %3302 = vmatpush2.bf16.msra.mxu0 0
  %3303 = vmatprep.subr.bf16.mxu0 0
  %3304 = vmatpush2.bf16.msra.mxu0 0
  %3305 = vmatprep.mubr.bf16.mxu0 0
  %3306 = vmatmul.mubr.bf16.gmra.mxu0 %v3207
  %v3307 = vpop.f32.mrf.mxu0
  %v3308 = vadd.f32 0.0, %v3307
  %v3309 = vpop.f32.mrf.mxu0
  %v3310 = vpop.f32.mrf.mxu0
  %v3311 = vadd.f32 0.0, %v3310
  %v3312 = vpop.f32.mrf.mxu0
  %3313 = vdwg.mxu0
  %v3314 = vadd.f32 %v3199, %v3308
  %v3315 = vadd.f32 %v3202, %v3311
  %v3316 = vld [vmem:[#allocation4 + $0x10] sm:$0xff]
  %v3317 = vld [vmem:[#allocation4 + $0x18] sm:$0xff]
  %v3318 = vpack.c.bf16 %v3317, %v3316
  %s3319 = scalar_lea.vmem %s4, 192
  %v3320 = vld [vmem:[%s3319] sm:$0xf]
  %v3321 = vld [vmem:[%s3319 + $0x4] sm:$0xf]
  %v3322 = vld [vmem:[%s3319 + $0x8] sm:$0xf]
  %v3323 = vld [vmem:[%s3319 + $0xc] sm:$0xf]
  %v3324 = vld [vmem:[%s3319 + $0x10] sm:$0xf]
  %v3325 = vld [vmem:[%s3319 + $0x14] sm:$0xf]
  %v3326 = vld [vmem:[%s3319 + $0x18] sm:$0xf]
  %v3327 = vld [vmem:[%s3319 + $0x1c] sm:$0xf]
  %v3328 = vld [vmem:[%s3319 + $0x20] sm:$0xf]
  %v3329 = vld [vmem:[%s3319 + $0x24] sm:$0xf]
  %v3330 = vld [vmem:[%s3319 + $0x28] sm:$0xf]
  %v3331 = vld [vmem:[%s3319 + $0x2c] sm:$0xf]
  %v3332 = vld [vmem:[%s3319 + $0x30] sm:$0xf]
  %v3333 = vld [vmem:[%s3319 + $0x34] sm:$0xf]
  %v3334 = vld [vmem:[%s3319 + $0x38] sm:$0xf]
  %v3335 = vld [vmem:[%s3319 + $0x3c] sm:$0xf]
  %v3352 = vunpack.c.l.b16 %v3320
  %v3353 = vunpack.c.l.b16 %v3321
  %v3354 = vunpack.c.l.b16 %v3322
  %v3355 = vunpack.c.l.b16 %v3323
  %v3356 = vunpack.c.l.b16 %v3324
  %v3357 = vunpack.c.l.b16 %v3325
  %v3358 = vunpack.c.l.b16 %v3326
  %v3359 = vunpack.c.l.b16 %v3327
  %v3360 = vunpack.c.l.b16 %v3328
  %v3361 = vunpack.c.l.b16 %v3329
  %v3362 = vunpack.c.l.b16 %v3330
  %v3363 = vunpack.c.l.b16 %v3331
  %v3364 = vunpack.c.l.b16 %v3332
  %v3365 = vunpack.c.l.b16 %v3333
  %v3366 = vunpack.c.l.b16 %v3334
  %v3367 = vunpack.c.l.b16 %v3335
  %v3368 = vpack.c.b16 %v3353, %v3352
  %v3369 = vpack.c.b16 %v3355, %v3354
  %v3370 = vpack.c.b16 %v3357, %v3356
  %v3371 = vpack.c.b16 %v3359, %v3358
  %v3372 = vpack.c.b16 %v3361, %v3360
  %v3373 = vpack.c.b16 %v3363, %v3362
  %v3374 = vpack.c.b16 %v3365, %v3364
  %v3375 = vpack.c.b16 %v3367, %v3366
  %3384 = vmatprep.subr.bf16.mxu0 0
  %3385 = vmatpush1.bf16.msra.mxu0 %v3375
  %3386 = vmatprep.subr.bf16.mxu0 0
  %3387 = vmatpush1.bf16.msra.mxu0 %v3374
  %3388 = vmatprep.subr.bf16.mxu0 0
  %3389 = vmatpush1.bf16.msra.mxu0 %v3373
  %3390 = vmatprep.subr.bf16.mxu0 0
  %3391 = vmatpush1.bf16.msra.mxu0 %v3372
  %3392 = vmatprep.subr.bf16.mxu0 0
  %3393 = vmatpush1.bf16.msra.mxu0 %v3371
  %3394 = vmatprep.subr.bf16.mxu0 0
  %3395 = vmatpush1.bf16.msra.mxu0 %v3370
  %3396 = vmatprep.subr.bf16.mxu0 0
  %3397 = vmatpush1.bf16.msra.mxu0 %v3369
  %3398 = vmatprep.subr.bf16.mxu0 0
  %3399 = vmatpush1.bf16.msra.mxu0 %v3368
  %3400 = vmatprep.subr.bf16.mxu0 0
  %3401 = vmatpush2.bf16.msra.mxu0 0
  %3402 = vmatprep.subr.bf16.mxu0 0
  %3403 = vmatpush2.bf16.msra.mxu0 0
  %3404 = vmatprep.subr.bf16.mxu0 0
  %3405 = vmatpush2.bf16.msra.mxu0 0
  %3406 = vmatprep.subr.bf16.mxu0 0
  %3407 = vmatpush2.bf16.msra.mxu0 0
  %3408 = vmatprep.subr.bf16.mxu0 0
  %3409 = vmatpush2.bf16.msra.mxu0 0
  %3410 = vmatprep.subr.bf16.mxu0 0
  %3411 = vmatpush2.bf16.msra.mxu0 0
  %3412 = vmatprep.subr.bf16.mxu0 0
  %3413 = vmatpush2.bf16.msra.mxu0 0
  %3414 = vmatprep.subr.bf16.mxu0 0
  %3415 = vmatpush2.bf16.msra.mxu0 0
  %3416 = vmatprep.mubr.bf16.mxu0 0
  %3417 = vmatmul.mubr.bf16.gmra.mxu0 %v3318
  %v3418 = vpop.f32.mrf.mxu0
  %v3419 = vadd.f32 0.0, %v3418
  %v3420 = vpop.f32.mrf.mxu0
  %v3421 = vpop.f32.mrf.mxu0
  %v3422 = vadd.f32 0.0, %v3421
  %v3423 = vpop.f32.mrf.mxu0
  %3424 = vdwg.mxu0
  %v3425 = vadd.f32 %v3314, %v3419
  %v3426 = vadd.f32 %v3315, %v3422
  %v3427 = vld [vmem:[#allocation4 + $0x11] sm:$0xff]
  %v3428 = vld [vmem:[#allocation4 + $0x19] sm:$0xff]
  %v3429 = vpack.c.bf16 %v3428, %v3427
  %s3430 = scalar_lea.vmem %s4, 256
  %v3431 = vld [vmem:[%s3430] sm:$0xf]
  %v3432 = vld [vmem:[%s3430 + $0x4] sm:$0xf]
  %v3433 = vld [vmem:[%s3430 + $0x8] sm:$0xf]
  %v3434 = vld [vmem:[%s3430 + $0xc] sm:$0xf]
  %v3435 = vld [vmem:[%s3430 + $0x10] sm:$0xf]
  %v3436 = vld [vmem:[%s3430 + $0x14] sm:$0xf]
  %v3437 = vld [vmem:[%s3430 + $0x18] sm:$0xf]
  %v3438 = vld [vmem:[%s3430 + $0x1c] sm:$0xf]
  %v3439 = vld [vmem:[%s3430 + $0x20] sm:$0xf]
  %v3440 = vld [vmem:[%s3430 + $0x24] sm:$0xf]
  %v3441 = vld [vmem:[%s3430 + $0x28] sm:$0xf]
  %v3442 = vld [vmem:[%s3430 + $0x2c] sm:$0xf]
  %v3443 = vld [vmem:[%s3430 + $0x30] sm:$0xf]
  %v3444 = vld [vmem:[%s3430 + $0x34] sm:$0xf]
  %v3445 = vld [vmem:[%s3430 + $0x38] sm:$0xf]
  %v3446 = vld [vmem:[%s3430 + $0x3c] sm:$0xf]
  %v3463 = vunpack.c.l.b16 %v3431
  %v3464 = vunpack.c.l.b16 %v3432
  %v3465 = vunpack.c.l.b16 %v3433
  %v3466 = vunpack.c.l.b16 %v3434
  %v3467 = vunpack.c.l.b16 %v3435
  %v3468 = vunpack.c.l.b16 %v3436
  %v3469 = vunpack.c.l.b16 %v3437
  %v3470 = vunpack.c.l.b16 %v3438
  %v3471 = vunpack.c.l.b16 %v3439
  %v3472 = vunpack.c.l.b16 %v3440
  %v3473 = vunpack.c.l.b16 %v3441
  %v3474 = vunpack.c.l.b16 %v3442
  %v3475 = vunpack.c.l.b16 %v3443
  %v3476 = vunpack.c.l.b16 %v3444
  %v3477 = vunpack.c.l.b16 %v3445
  %v3478 = vunpack.c.l.b16 %v3446
  %v3479 = vpack.c.b16 %v3464, %v3463
  %v3480 = vpack.c.b16 %v3466, %v3465
  %v3481 = vpack.c.b16 %v3468, %v3467
  %v3482 = vpack.c.b16 %v3470, %v3469
  %v3483 = vpack.c.b16 %v3472, %v3471
  %v3484 = vpack.c.b16 %v3474, %v3473
  %v3485 = vpack.c.b16 %v3476, %v3475
  %v3486 = vpack.c.b16 %v3478, %v3477
  %3495 = vmatprep.subr.bf16.mxu0 0
  %3496 = vmatpush1.bf16.msra.mxu0 %v3486
  %3497 = vmatprep.subr.bf16.mxu0 0
  %3498 = vmatpush1.bf16.msra.mxu0 %v3485
  %3499 = vmatprep.subr.bf16.mxu0 0
  %3500 = vmatpush1.bf16.msra.mxu0 %v3484
  %3501 = vmatprep.subr.bf16.mxu0 0
  %3502 = vmatpush1.bf16.msra.mxu0 %v3483
  %3503 = vmatprep.subr.bf16.mxu0 0
  %3504 = vmatpush1.bf16.msra.mxu0 %v3482
  %3505 = vmatprep.subr.bf16.mxu0 0
  %3506 = vmatpush1.bf16.msra.mxu0 %v3481
  %3507 = vmatprep.subr.bf16.mxu0 0
  %3508 = vmatpush1.bf16.msra.mxu0 %v3480
  %3509 = vmatprep.subr.bf16.mxu0 0
  %3510 = vmatpush1.bf16.msra.mxu0 %v3479
  %3511 = vmatprep.subr.bf16.mxu0 0
  %3512 = vmatpush2.bf16.msra.mxu0 0
  %3513 = vmatprep.subr.bf16.mxu0 0
  %3514 = vmatpush2.bf16.msra.mxu0 0
  %3515 = vmatprep.subr.bf16.mxu0 0
  %3516 = vmatpush2.bf16.msra.mxu0 0
  %3517 = vmatprep.subr.bf16.mxu0 0
  %3518 = vmatpush2.bf16.msra.mxu0 0
  %3519 = vmatprep.subr.bf16.mxu0 0
  %3520 = vmatpush2.bf16.msra.mxu0 0
  %3521 = vmatprep.subr.bf16.mxu0 0
  %3522 = vmatpush2.bf16.msra.mxu0 0
  %3523 = vmatprep.subr.bf16.mxu0 0
  %3524 = vmatpush2.bf16.msra.mxu0 0
  %3525 = vmatprep.subr.bf16.mxu0 0
  %3526 = vmatpush2.bf16.msra.mxu0 0
  %3527 = vmatprep.mubr.bf16.mxu0 0
  %3528 = vmatmul.mubr.bf16.gmra.mxu0 %v3429
  %v3529 = vpop.f32.mrf.mxu0
  %v3530 = vadd.f32 0.0, %v3529
  %v3531 = vpop.f32.mrf.mxu0
  %v3532 = vpop.f32.mrf.mxu0
  %v3533 = vadd.f32 0.0, %v3532
  %v3534 = vpop.f32.mrf.mxu0
  %3535 = vdwg.mxu0
  %v3536 = vadd.f32 %v3425, %v3530
  %v3537 = vadd.f32 %v3426, %v3533
  %v3538 = vld [vmem:[#allocation4 + $0x12] sm:$0xff]
  %v3539 = vld [vmem:[#allocation4 + $0x1a] sm:$0xff]
  %v3540 = vpack.c.bf16 %v3539, %v3538
  %s3541 = scalar_lea.vmem %s4, 320
  %v3542 = vld [vmem:[%s3541] sm:$0xf]
  %v3543 = vld [vmem:[%s3541 + $0x4] sm:$0xf]
  %v3544 = vld [vmem:[%s3541 + $0x8] sm:$0xf]
  %v3545 = vld [vmem:[%s3541 + $0xc] sm:$0xf]
  %v3546 = vld [vmem:[%s3541 + $0x10] sm:$0xf]
  %v3547 = vld [vmem:[%s3541 + $0x14] sm:$0xf]
  %v3548 = vld [vmem:[%s3541 + $0x18] sm:$0xf]
  %v3549 = vld [vmem:[%s3541 + $0x1c] sm:$0xf]
  %v3550 = vld [vmem:[%s3541 + $0x20] sm:$0xf]
  %v3551 = vld [vmem:[%s3541 + $0x24] sm:$0xf]
  %v3552 = vld [vmem:[%s3541 + $0x28] sm:$0xf]
  %v3553 = vld [vmem:[%s3541 + $0x2c] sm:$0xf]
  %v3554 = vld [vmem:[%s3541 + $0x30] sm:$0xf]
  %v3555 = vld [vmem:[%s3541 + $0x34] sm:$0xf]
  %v3556 = vld [vmem:[%s3541 + $0x38] sm:$0xf]
  %v3557 = vld [vmem:[%s3541 + $0x3c] sm:$0xf]
  %v3574 = vunpack.c.l.b16 %v3542
  %v3575 = vunpack.c.l.b16 %v3543
  %v3576 = vunpack.c.l.b16 %v3544
  %v3577 = vunpack.c.l.b16 %v3545
  %v3578 = vunpack.c.l.b16 %v3546
  %v3579 = vunpack.c.l.b16 %v3547
  %v3580 = vunpack.c.l.b16 %v3548
  %v3581 = vunpack.c.l.b16 %v3549
  %v3582 = vunpack.c.l.b16 %v3550
  %v3583 = vunpack.c.l.b16 %v3551
  %v3584 = vunpack.c.l.b16 %v3552
  %v3585 = vunpack.c.l.b16 %v3553
  %v3586 = vunpack.c.l.b16 %v3554
  %v3587 = vunpack.c.l.b16 %v3555
  %v3588 = vunpack.c.l.b16 %v3556
  %v3589 = vunpack.c.l.b16 %v3557
  %v3590 = vpack.c.b16 %v3575, %v3574
  %v3591 = vpack.c.b16 %v3577, %v3576
  %v3592 = vpack.c.b16 %v3579, %v3578
  %v3593 = vpack.c.b16 %v3581, %v3580
  %v3594 = vpack.c.b16 %v3583, %v3582
  %v3595 = vpack.c.b16 %v3585, %v3584
  %v3596 = vpack.c.b16 %v3587, %v3586
  %v3597 = vpack.c.b16 %v3589, %v3588
  %3606 = vmatprep.subr.bf16.mxu0 0
  %3607 = vmatpush1.bf16.msra.mxu0 %v3597
  %3608 = vmatprep.subr.bf16.mxu0 0
  %3609 = vmatpush1.bf16.msra.mxu0 %v3596
  %3610 = vmatprep.subr.bf16.mxu0 0
  %3611 = vmatpush1.bf16.msra.mxu0 %v3595
  %3612 = vmatprep.subr.bf16.mxu0 0
  %3613 = vmatpush1.bf16.msra.mxu0 %v3594
  %3614 = vmatprep.subr.bf16.mxu0 0
  %3615 = vmatpush1.bf16.msra.mxu0 %v3593
  %3616 = vmatprep.subr.bf16.mxu0 0
  %3617 = vmatpush1.bf16.msra.mxu0 %v3592
  %3618 = vmatprep.subr.bf16.mxu0 0
  %3619 = vmatpush1.bf16.msra.mxu0 %v3591
  %3620 = vmatprep.subr.bf16.mxu0 0
  %3621 = vmatpush1.bf16.msra.mxu0 %v3590
  %3622 = vmatprep.subr.bf16.mxu0 0
  %3623 = vmatpush2.bf16.msra.mxu0 0
  %3624 = vmatprep.subr.bf16.mxu0 0
  %3625 = vmatpush2.bf16.msra.mxu0 0
  %3626 = vmatprep.subr.bf16.mxu0 0
  %3627 = vmatpush2.bf16.msra.mxu0 0
  %3628 = vmatprep.subr.bf16.mxu0 0
  %3629 = vmatpush2.bf16.msra.mxu0 0
  %3630 = vmatprep.subr.bf16.mxu0 0
  %3631 = vmatpush2.bf16.msra.mxu0 0
  %3632 = vmatprep.subr.bf16.mxu0 0
  %3633 = vmatpush2.bf16.msra.mxu0 0
  %3634 = vmatprep.subr.bf16.mxu0 0
  %3635 = vmatpush2.bf16.msra.mxu0 0
  %3636 = vmatprep.subr.bf16.mxu0 0
  %3637 = vmatpush2.bf16.msra.mxu0 0
  %3638 = vmatprep.mubr.bf16.mxu0 0
  %3639 = vmatmul.mubr.bf16.gmra.mxu0 %v3540
  %v3640 = vpop.f32.mrf.mxu0
  %v3641 = vadd.f32 0.0, %v3640
  %v3642 = vpop.f32.mrf.mxu0
  %v3643 = vpop.f32.mrf.mxu0
  %v3644 = vadd.f32 0.0, %v3643
  %v3645 = vpop.f32.mrf.mxu0
  %3646 = vdwg.mxu0
  %v3647 = vadd.f32 %v3536, %v3641
  %v3648 = vadd.f32 %v3537, %v3644
  %v3649 = vld [vmem:[#allocation4 + $0x20] sm:$0xff]
  %v3650 = vld [vmem:[#allocation4 + $0x28] sm:$0xff]
  %v3651 = vpack.c.bf16 %v3650, %v3649
  %s3652 = scalar_lea.vmem %s4, 384
  %v3653 = vld [vmem:[%s3652] sm:$0xf]
  %v3654 = vld [vmem:[%s3652 + $0x4] sm:$0xf]
  %v3655 = vld [vmem:[%s3652 + $0x8] sm:$0xf]
  %v3656 = vld [vmem:[%s3652 + $0xc] sm:$0xf]
  %v3657 = vld [vmem:[%s3652 + $0x10] sm:$0xf]
  %v3658 = vld [vmem:[%s3652 + $0x14] sm:$0xf]
  %v3659 = vld [vmem:[%s3652 + $0x18] sm:$0xf]
  %v3660 = vld [vmem:[%s3652 + $0x1c] sm:$0xf]
  %v3661 = vld [vmem:[%s3652 + $0x20] sm:$0xf]
  %v3662 = vld [vmem:[%s3652 + $0x24] sm:$0xf]
  %v3663 = vld [vmem:[%s3652 + $0x28] sm:$0xf]
  %v3664 = vld [vmem:[%s3652 + $0x2c] sm:$0xf]
  %v3665 = vld [vmem:[%s3652 + $0x30] sm:$0xf]
  %v3666 = vld [vmem:[%s3652 + $0x34] sm:$0xf]
  %v3667 = vld [vmem:[%s3652 + $0x38] sm:$0xf]
  %v3668 = vld [vmem:[%s3652 + $0x3c] sm:$0xf]
  %v3685 = vunpack.c.l.b16 %v3653
  %v3686 = vunpack.c.l.b16 %v3654
  %v3687 = vunpack.c.l.b16 %v3655
  %v3688 = vunpack.c.l.b16 %v3656
  %v3689 = vunpack.c.l.b16 %v3657
  %v3690 = vunpack.c.l.b16 %v3658
  %v3691 = vunpack.c.l.b16 %v3659
  %v3692 = vunpack.c.l.b16 %v3660
  %v3693 = vunpack.c.l.b16 %v3661
  %v3694 = vunpack.c.l.b16 %v3662
  %v3695 = vunpack.c.l.b16 %v3663
  %v3696 = vunpack.c.l.b16 %v3664
  %v3697 = vunpack.c.l.b16 %v3665
  %v3698 = vunpack.c.l.b16 %v3666
  %v3699 = vunpack.c.l.b16 %v3667
  %v3700 = vunpack.c.l.b16 %v3668
  %v3701 = vpack.c.b16 %v3686, %v3685
  %v3702 = vpack.c.b16 %v3688, %v3687
  %v3703 = vpack.c.b16 %v3690, %v3689
  %v3704 = vpack.c.b16 %v3692, %v3691
  %v3705 = vpack.c.b16 %v3694, %v3693
  %v3706 = vpack.c.b16 %v3696, %v3695
  %v3707 = vpack.c.b16 %v3698, %v3697
  %v3708 = vpack.c.b16 %v3700, %v3699
  %3717 = vmatprep.subr.bf16.mxu0 0
  %3718 = vmatpush1.bf16.msra.mxu0 %v3708
  %3719 = vmatprep.subr.bf16.mxu0 0
  %3720 = vmatpush1.bf16.msra.mxu0 %v3707
  %3721 = vmatprep.subr.bf16.mxu0 0
  %3722 = vmatpush1.bf16.msra.mxu0 %v3706
  %3723 = vmatprep.subr.bf16.mxu0 0
  %3724 = vmatpush1.bf16.msra.mxu0 %v3705
  %3725 = vmatprep.subr.bf16.mxu0 0
  %3726 = vmatpush1.bf16.msra.mxu0 %v3704
  %3727 = vmatprep.subr.bf16.mxu0 0
  %3728 = vmatpush1.bf16.msra.mxu0 %v3703
  %3729 = vmatprep.subr.bf16.mxu0 0
  %3730 = vmatpush1.bf16.msra.mxu0 %v3702
  %3731 = vmatprep.subr.bf16.mxu0 0
  %3732 = vmatpush1.bf16.msra.mxu0 %v3701
  %3733 = vmatprep.subr.bf16.mxu0 0
  %3734 = vmatpush2.bf16.msra.mxu0 0
  %3735 = vmatprep.subr.bf16.mxu0 0
  %3736 = vmatpush2.bf16.msra.mxu0 0
  %3737 = vmatprep.subr.bf16.mxu0 0
  %3738 = vmatpush2.bf16.msra.mxu0 0
  %3739 = vmatprep.subr.bf16.mxu0 0
  %3740 = vmatpush2.bf16.msra.mxu0 0
  %3741 = vmatprep.subr.bf16.mxu0 0
  %3742 = vmatpush2.bf16.msra.mxu0 0
  %3743 = vmatprep.subr.bf16.mxu0 0
  %3744 = vmatpush2.bf16.msra.mxu0 0
  %3745 = vmatprep.subr.bf16.mxu0 0
  %3746 = vmatpush2.bf16.msra.mxu0 0
  %3747 = vmatprep.subr.bf16.mxu0 0
  %3748 = vmatpush2.bf16.msra.mxu0 0
  %3749 = vmatprep.mubr.bf16.mxu0 0
  %3750 = vmatmul.mubr.bf16.gmra.mxu0 %v3651
  %v3751 = vpop.f32.mrf.mxu0
  %v3752 = vadd.f32 0.0, %v3751
  %v3753 = vpop.f32.mrf.mxu0
  %v3754 = vpop.f32.mrf.mxu0
  %v3755 = vadd.f32 0.0, %v3754
  %v3756 = vpop.f32.mrf.mxu0
  %3757 = vdwg.mxu0
  %v3758 = vadd.f32 %v3647, %v3752
  %v3759 = vadd.f32 %v3648, %v3755
  %v3760 = vld [vmem:[#allocation4 + $0x21] sm:$0xff]
  %v3761 = vld [vmem:[#allocation4 + $0x29] sm:$0xff]
  %v3762 = vpack.c.bf16 %v3761, %v3760
  %s3763 = scalar_lea.vmem %s4, 448
  %v3764 = vld [vmem:[%s3763] sm:$0xf]
  %v3765 = vld [vmem:[%s3763 + $0x4] sm:$0xf]
  %v3766 = vld [vmem:[%s3763 + $0x8] sm:$0xf]
  %v3767 = vld [vmem:[%s3763 + $0xc] sm:$0xf]
  %v3768 = vld [vmem:[%s3763 + $0x10] sm:$0xf]
  %v3769 = vld [vmem:[%s3763 + $0x14] sm:$0xf]
  %v3770 = vld [vmem:[%s3763 + $0x18] sm:$0xf]
  %v3771 = vld [vmem:[%s3763 + $0x1c] sm:$0xf]
  %v3772 = vld [vmem:[%s3763 + $0x20] sm:$0xf]
  %v3773 = vld [vmem:[%s3763 + $0x24] sm:$0xf]
  %v3774 = vld [vmem:[%s3763 + $0x28] sm:$0xf]
  %v3775 = vld [vmem:[%s3763 + $0x2c] sm:$0xf]
  %v3776 = vld [vmem:[%s3763 + $0x30] sm:$0xf]
  %v3777 = vld [vmem:[%s3763 + $0x34] sm:$0xf]
  %v3778 = vld [vmem:[%s3763 + $0x38] sm:$0xf]
  %v3779 = vld [vmem:[%s3763 + $0x3c] sm:$0xf]
  %v3796 = vunpack.c.l.b16 %v3764
  %v3797 = vunpack.c.l.b16 %v3765
  %v3798 = vunpack.c.l.b16 %v3766
  %v3799 = vunpack.c.l.b16 %v3767
  %v3800 = vunpack.c.l.b16 %v3768
  %v3801 = vunpack.c.l.b16 %v3769
  %v3802 = vunpack.c.l.b16 %v3770
  %v3803 = vunpack.c.l.b16 %v3771
  %v3804 = vunpack.c.l.b16 %v3772
  %v3805 = vunpack.c.l.b16 %v3773
  %v3806 = vunpack.c.l.b16 %v3774
  %v3807 = vunpack.c.l.b16 %v3775
  %v3808 = vunpack.c.l.b16 %v3776
  %v3809 = vunpack.c.l.b16 %v3777
  %v3810 = vunpack.c.l.b16 %v3778
  %v3811 = vunpack.c.l.b16 %v3779
  %v3812 = vpack.c.b16 %v3797, %v3796
  %v3813 = vpack.c.b16 %v3799, %v3798
  %v3814 = vpack.c.b16 %v3801, %v3800
  %v3815 = vpack.c.b16 %v3803, %v3802
  %v3816 = vpack.c.b16 %v3805, %v3804
  %v3817 = vpack.c.b16 %v3807, %v3806
  %v3818 = vpack.c.b16 %v3809, %v3808
  %v3819 = vpack.c.b16 %v3811, %v3810
  %3828 = vmatprep.subr.bf16.mxu0 0
  %3829 = vmatpush1.bf16.msra.mxu0 %v3819
  %3830 = vmatprep.subr.bf16.mxu0 0
  %3831 = vmatpush1.bf16.msra.mxu0 %v3818
  %3832 = vmatprep.subr.bf16.mxu0 0
  %3833 = vmatpush1.bf16.msra.mxu0 %v3817
  %3834 = vmatprep.subr.bf16.mxu0 0
  %3835 = vmatpush1.bf16.msra.mxu0 %v3816
  %3836 = vmatprep.subr.bf16.mxu0 0
  %3837 = vmatpush1.bf16.msra.mxu0 %v3815
  %3838 = vmatprep.subr.bf16.mxu0 0
  %3839 = vmatpush1.bf16.msra.mxu0 %v3814
  %3840 = vmatprep.subr.bf16.mxu0 0
  %3841 = vmatpush1.bf16.msra.mxu0 %v3813
  %3842 = vmatprep.subr.bf16.mxu0 0
  %3843 = vmatpush1.bf16.msra.mxu0 %v3812
  %3844 = vmatprep.subr.bf16.mxu0 0
  %3845 = vmatpush2.bf16.msra.mxu0 0
  %3846 = vmatprep.subr.bf16.mxu0 0
  %3847 = vmatpush2.bf16.msra.mxu0 0
  %3848 = vmatprep.subr.bf16.mxu0 0
  %3849 = vmatpush2.bf16.msra.mxu0 0
  %3850 = vmatprep.subr.bf16.mxu0 0
  %3851 = vmatpush2.bf16.msra.mxu0 0
  %3852 = vmatprep.subr.bf16.mxu0 0
  %3853 = vmatpush2.bf16.msra.mxu0 0
  %3854 = vmatprep.subr.bf16.mxu0 0
  %3855 = vmatpush2.bf16.msra.mxu0 0
  %3856 = vmatprep.subr.bf16.mxu0 0
  %3857 = vmatpush2.bf16.msra.mxu0 0
  %3858 = vmatprep.subr.bf16.mxu0 0
  %3859 = vmatpush2.bf16.msra.mxu0 0
  %3860 = vmatprep.mubr.bf16.mxu0 0
  %3861 = vmatmul.mubr.bf16.gmra.mxu0 %v3762
  %v3862 = vpop.f32.mrf.mxu0
  %v3863 = vadd.f32 0.0, %v3862
  %v3864 = vpop.f32.mrf.mxu0
  %v3865 = vpop.f32.mrf.mxu0
  %v3866 = vadd.f32 0.0, %v3865
  %v3867 = vpop.f32.mrf.mxu0
  %3868 = vdwg.mxu0
  %v3869 = vadd.f32 %v3758, %v3863
  %v3870 = vadd.f32 %v3759, %v3866
  %v3871 = vld [vmem:[#allocation4 + $0x22] sm:$0xff]
  %v3872 = vld [vmem:[#allocation4 + $0x2a] sm:$0xff]
  %v3873 = vpack.c.bf16 %v3872, %v3871
  %s3874 = scalar_lea.vmem %s4, 512
  %v3875 = vld [vmem:[%s3874] sm:$0xf]
  %v3876 = vld [vmem:[%s3874 + $0x4] sm:$0xf]
  %v3877 = vld [vmem:[%s3874 + $0x8] sm:$0xf]
  %v3878 = vld [vmem:[%s3874 + $0xc] sm:$0xf]
  %v3879 = vld [vmem:[%s3874 + $0x10] sm:$0xf]
  %v3880 = vld [vmem:[%s3874 + $0x14] sm:$0xf]
  %v3881 = vld [vmem:[%s3874 + $0x18] sm:$0xf]
  %v3882 = vld [vmem:[%s3874 + $0x1c] sm:$0xf]
  %v3883 = vld [vmem:[%s3874 + $0x20] sm:$0xf]
  %v3884 = vld [vmem:[%s3874 + $0x24] sm:$0xf]
  %v3885 = vld [vmem:[%s3874 + $0x28] sm:$0xf]
  %v3886 = vld [vmem:[%s3874 + $0x2c] sm:$0xf]
  %v3887 = vld [vmem:[%s3874 + $0x30] sm:$0xf]
  %v3888 = vld [vmem:[%s3874 + $0x34] sm:$0xf]
  %v3889 = vld [vmem:[%s3874 + $0x38] sm:$0xf]
  %v3890 = vld [vmem:[%s3874 + $0x3c] sm:$0xf]
  %v3907 = vunpack.c.l.b16 %v3875
  %v3908 = vunpack.c.l.b16 %v3876
  %v3909 = vunpack.c.l.b16 %v3877
  %v3910 = vunpack.c.l.b16 %v3878
  %v3911 = vunpack.c.l.b16 %v3879
  %v3912 = vunpack.c.l.b16 %v3880
  %v3913 = vunpack.c.l.b16 %v3881
  %v3914 = vunpack.c.l.b16 %v3882
  %v3915 = vunpack.c.l.b16 %v3883
  %v3916 = vunpack.c.l.b16 %v3884
  %v3917 = vunpack.c.l.b16 %v3885
  %v3918 = vunpack.c.l.b16 %v3886
  %v3919 = vunpack.c.l.b16 %v3887
  %v3920 = vunpack.c.l.b16 %v3888
  %v3921 = vunpack.c.l.b16 %v3889
  %v3922 = vunpack.c.l.b16 %v3890
  %v3923 = vpack.c.b16 %v3908, %v3907
  %v3924 = vpack.c.b16 %v3910, %v3909
  %v3925 = vpack.c.b16 %v3912, %v3911
  %v3926 = vpack.c.b16 %v3914, %v3913
  %v3927 = vpack.c.b16 %v3916, %v3915
  %v3928 = vpack.c.b16 %v3918, %v3917
  %v3929 = vpack.c.b16 %v3920, %v3919
  %v3930 = vpack.c.b16 %v3922, %v3921
  %3939 = vmatprep.subr.bf16.mxu0 0
  %3940 = vmatpush1.bf16.msra.mxu0 %v3930
  %3941 = vmatprep.subr.bf16.mxu0 0
  %3942 = vmatpush1.bf16.msra.mxu0 %v3929
  %3943 = vmatprep.subr.bf16.mxu0 0
  %3944 = vmatpush1.bf16.msra.mxu0 %v3928
  %3945 = vmatprep.subr.bf16.mxu0 0
  %3946 = vmatpush1.bf16.msra.mxu0 %v3927
  %3947 = vmatprep.subr.bf16.mxu0 0
  %3948 = vmatpush1.bf16.msra.mxu0 %v3926
  %3949 = vmatprep.subr.bf16.mxu0 0
  %3950 = vmatpush1.bf16.msra.mxu0 %v3925
  %3951 = vmatprep.subr.bf16.mxu0 0
  %3952 = vmatpush1.bf16.msra.mxu0 %v3924
  %3953 = vmatprep.subr.bf16.mxu0 0
  %3954 = vmatpush1.bf16.msra.mxu0 %v3923
  %3955 = vmatprep.subr.bf16.mxu0 0
  %3956 = vmatpush2.bf16.msra.mxu0 0
  %3957 = vmatprep.subr.bf16.mxu0 0
  %3958 = vmatpush2.bf16.msra.mxu0 0
  %3959 = vmatprep.subr.bf16.mxu0 0
  %3960 = vmatpush2.bf16.msra.mxu0 0
  %3961 = vmatprep.subr.bf16.mxu0 0
  %3962 = vmatpush2.bf16.msra.mxu0 0
  %3963 = vmatprep.subr.bf16.mxu0 0
  %3964 = vmatpush2.bf16.msra.mxu0 0
  %3965 = vmatprep.subr.bf16.mxu0 0
  %3966 = vmatpush2.bf16.msra.mxu0 0
  %3967 = vmatprep.subr.bf16.mxu0 0
  %3968 = vmatpush2.bf16.msra.mxu0 0
  %3969 = vmatprep.subr.bf16.mxu0 0
  %3970 = vmatpush2.bf16.msra.mxu0 0
  %3971 = vmatprep.mubr.bf16.mxu0 0
  %3972 = vmatmul.mubr.bf16.gmra.mxu0 %v3873
  %v3973 = vpop.f32.mrf.mxu0
  %v3974 = vadd.f32 0.0, %v3973
  %v3975 = vpop.f32.mrf.mxu0
  %v3976 = vpop.f32.mrf.mxu0
  %v3977 = vadd.f32 0.0, %v3976
  %v3978 = vpop.f32.mrf.mxu0
  %3979 = vdwg.mxu0
  %v3980 = vadd.f32 %v3869, %v3974
  %v3981 = vadd.f32 %v3870, %v3977
  %v3982 = vlaneseq
  %v3983 = vshrl.u32 %v3982, 7
  %v3984 = vsub.s32 3, %v3983
  %v3985 = vrot.slane %v24, %v3984
  %v3986 = vadd.f32 %v3980, %v3985
  %v3987 = vadd.f32 %v3981, %v3985
  %v3988 = vmax.f32 %v3986, 0.0
  %v3989 = vmax.f32 %v3987, 0.0
  %3990 = vst [vmem:[%s6] sm:$0xff] %v3988
  %3991 = vst [vmem:[%s6 + $0x8] sm:$0xff] %v3989
  // Predicated region
  $region26: #{encoder_forward.1} parent=0 // pred_check
    _
  $region27: #{encoder_forward.1} parent=0 // pred_check_branch
    %3993 = sbr.rel (0) target = $region29
  $region28: #{encoder_forward.1} parent=0 // pred_region
    _
  $region29: #{encoder_forward.1} parent=0 // pred_fallthru
    _
  // Predicated region
  $region30: #{encoder_forward.1} parent=0 // pred_check
    _
  $region31: #{encoder_forward.1} parent=0 // pred_check_branch
    %3995 = sbr.rel (0) target = $region33
  $region32: #{encoder_forward.1} parent=0 // pred_region
    _
  $region33: #{encoder_forward.1} parent=0 // pred_fallthru
    _

</llo_original>
